<compile_context>
chip_gen: v7x
topology: tpu7x:2x2x1
jax: 0.10.0
libtpu: 0.0.40
codegen_flags: <defaults>
</compile_context>

<pallas_src>
import functools

import numpy as np
import jax
import jax.numpy as jnp
from jax.experimental import pallas as pl
from jax.experimental.pallas import tpu as pltpu


# ----------------------------------------------------------------------------
# Pallas kernel
# ----------------------------------------------------------------------------
def _spodnet_kernel(wemb_ref, theta_ref, w_ref, out_ref, *, P, P_pad, K_passes):
    f32 = jnp.float32
    Theta = theta_ref[...].astype(f32)   # (P_pad, P_pad, Bt): [row, col, batch]
    W = w_ref[...].astype(f32)           # (P_pad, P_pad, Bt)

    # Row / column / vector index iotas (>= 2D as required on TPU).
    iota_r = jax.lax.broadcasted_iota(jnp.int32, (P_pad, 1, 1), 0)
    iota_c = jax.lax.broadcasted_iota(jnp.int32, (1, P_pad, 1), 1)
    iota_v = jax.lax.broadcasted_iota(jnp.int32, (P_pad, 1), 0)

    for kk in range(K_passes):
        for col in range(P):           # fully unrolled: `col` is static -> static slices
            last_update = (kk == K_passes - 1) and (col == P - 1)

            e_r = (iota_r == col).astype(f32)   # (P_pad, 1, 1) one-hot row
            e_c = (iota_c == col).astype(f32)   # (1, P_pad, 1) one-hot column
            e_v = (iota_v == col).astype(f32)   # (P_pad, 1) one-hot vector
            m_v = 1.0 - e_v

            # --- gather column `col` (== row `col` by symmetry): static slab slices ---
            th_col = Theta[col]                 # (P_pad, Bt)  == Theta[:, col, :]
            w_col = W[col]                      # (P_pad, Bt)  == W[:, col, :]
            t12 = th_col * m_v                  # theta_12 (zero at index col / padding)
            w12 = w_col * m_v                   # w_12
            theta_22 = th_col[col:col + 1]      # (1, Bt)
            w_22 = w_col[col:col + 1]           # (1, Bt)
            inv_w22 = 1.0 / w_22                # (1, Bt), reused as multiplies

            # --- learned column update on the MXU ---
            A = wemb_ref[col]                                     # (P_pad, P_pad)
            t12n = jnp.dot(A, t12, preferred_element_type=f32)    # (P_pad, Bt), zero at col

            # --- inv(Theta_11) applied implicitly via the Schur rank-1 identity ---
            #   inv_T11 @ x = m_v * (W @ x) - w12 * ((w12 . x) * inv_w22)   (x zero at col)
            u_n = jnp.sum(W * t12n[None, :, :], axis=1)            # W @ t12n  (per-lane matvec)
            u_c = jnp.sum(W * t12[None, :, :], axis=1)             # W @ t12
            dot_w_n = jnp.sum(w12 * t12n, axis=0, keepdims=True)   # (1, Bt)
            dot_w_c = jnp.sum(w12 * t12, axis=0, keepdims=True)
            tmp_n = m_v * u_n - w12 * (dot_w_n * inv_w22)          # inv_T11 @ t12n
            tmp_c = m_v * u_c - w12 * (dot_w_c * inv_w22)          # inv_T11 @ t12

            # --- quadratic forms (sublane reductions) ---
            schur = jnp.sum(t12n * tmp_n, axis=0, keepdims=True)              # (1, Bt)
            gy = theta_22 - jnp.sum(t12 * tmp_c, axis=0, keepdims=True)       # (1, Bt)
            theta_22_next = gy + schur

            # --- Theta update (exact Delta formulation, matches torch scatter) ---
            d_vec = t12n - t12                                      # zero at col / padding
            d_col = d_vec + (theta_22_next - theta_22) * e_v
            Theta = Theta + e_c * d_col[:, None, :] + e_r * d_vec[None, :, :]

            # --- W update (internal state; dead work on the very last column) ---
            if not last_update:
                w_22_next = 1.0 / gy                                # (1, Bt)
                w12n = -w_22_next * tmp_n                           # zero at col / padding
                # Delta_11 = W_11 - (inv_T11 + gy * w12n w12n^T)
                #          = (w12 w12^T) * inv_w22 - gy * (w12n w12n^T)
                dW11 = ((w12 * inv_w22)[:, None, :] * w12[None, :, :]
                        - (gy * w12n)[:, None, :] * w12n[None, :, :])
                dw_vec = w12 - w12n
                dw_col = dw_vec + (w_22 - w_22_next) * e_v
                W = W + dW11 + e_c * dw_col[:, None, :] + e_r * dw_vec[None, :, :]

    # The module's forward returns only Theta; the updated W is internal state.
    out_ref[...] = Theta.astype(out_ref.dtype)


# ----------------------------------------------------------------------------
# Wrapper (glue)
# ----------------------------------------------------------------------------
def build_embedded_weights(w_lin, P, P_pad):
    """Embed the (P-1, P-1) Linear weight into P different (P_pad, P_pad)
    matrices, one per excluded column, zeros on the excluded row/column and
    on all padding."""
    wemb = np.zeros((P, P_pad, P_pad), dtype=np.float32)
    wl = np.asarray(w_lin, dtype=np.float32)
    for c in range(P):
        idx = np.array([i for i in range(P) if i != c])
        wemb[c][np.ix_(idx, idx)] = wl
    return jnp.asarray(wemb)


def spodnet_forward(Theta, W, w_lin, K_passes=1, block_b=None):
    """Theta, W: (B, P, P) symmetric (W = Theta^{-1}, SPD). Returns updated Theta.

    The kernel exploits symmetry of Theta/W (reads row `col` in place of
    column `col`), which is the module's intended regime.
    """
    B, P, _ = Theta.shape
    P_pad = ((P + 7) // 8) * 8
    if block_b is None:
        # Lane-aligned batch block; grow with B to amortize the ~0.35us/step
        # grid overhead. (On v7x prefer >=2 blocks so both TensorCores work.)
        block_b = min(1024, 128 * pl.cdiv(B, 128))
    assert block_b % 128 == 0
    num_blocks = pl.cdiv(B, block_b)
    B_pad = num_blocks * block_b

    def to_kernel_layout(M):
        # (B, P, P) -> (P_pad, P_pad, B_pad): batch on lanes, P on sublanes.
        Mt = jnp.transpose(M, (1, 2, 0))
        Mt = jnp.pad(Mt, ((0, P_pad - P), (0, P_pad - P), (0, B_pad - B)))
        # Padded batch lanes hold identity so 1/w_22 and 1/gy stay finite.
        eye = jnp.eye(P_pad, dtype=Mt.dtype)[:, :, None]
        b_iota = jax.lax.broadcasted_iota(jnp.int32, (1, 1, B_pad), 2)
        return jnp.where(b_iota >= B, eye, Mt)

    theta_t = to_kernel_layout(Theta)
    w_t = to_kernel_layout(W)
    wemb = build_embedded_weights(w_lin, P, P_pad)   # tiny for small P; see TODO for large P

    kern = functools.partial(_spodnet_kernel, P=P, P_pad=P_pad, K_passes=K_passes)
    out_t = pl.pallas_call(
        kern,
        out_shape=jax.ShapeDtypeStruct((P_pad, P_pad, B_pad), Theta.dtype),
        grid=(num_blocks,),
        in_specs=[
            pl.BlockSpec((P, P_pad, P_pad), lambda b: (0, 0, 0)),         # embedded weights
            pl.BlockSpec((P_pad, P_pad, block_b), lambda b: (0, 0, b)),   # Theta (batch on lanes)
            pl.BlockSpec((P_pad, P_pad, block_b), lambda b: (0, 0, b)),   # W
        ],
        out_specs=pl.BlockSpec((P_pad, P_pad, block_b), lambda b: (0, 0, b)),
        compiler_params=pltpu.CompilerParams(dimension_semantics=("parallel",)),
    )(wemb, theta_t, w_t)

    return jnp.transpose(out_t[:P, :P, :B], (2, 0, 1))


# ----------------------------------------------------------------------------
# Pure-JAX reference (torch-style indexing), for correctness check
# ----------------------------------------------------------------------------
def spodnet_reference(Theta, W, w_lin, K_passes=1):
    P = Theta.shape[-1]
    for _ in range(K_passes):
        for col in range(P):
            idx = np.array([i for i in range(P) if i != col])
            W_11 = W[:, idx[:, None], idx[None, :]]
            w_12 = W[:, idx, col]
            w_22 = W[:, col, col]
            theta_12 = Theta[:, idx, col]
            theta_22 = Theta[:, col, col]
            inv_T11 = W_11 - (w_12[:, :, None] * w_12[:, None, :]) / w_22[:, None, None]
            t12n = jnp.sum(w_lin[None, :, :] * theta_12[:, None, :], axis=-1)
            schur = jnp.sum(t12n[:, :, None] * inv_T11 * t12n[:, None, :], axis=(1, 2))
            gy = theta_22 - jnp.sum(theta_12[:, :, None] * inv_T11 * theta_12[:, None, :],
                                    axis=(1, 2))
            theta_22_next = gy + schur
            DeltaT = jnp.zeros_like(Theta)
            DeltaT = DeltaT.at[:, col, col].set(theta_22_next - theta_22)
            DeltaT = DeltaT.at[:, idx, col].set(t12n - theta_12)
            DeltaT = DeltaT.at[:, col, idx].set(t12n - theta_12)
            Theta = Theta + DeltaT
            w_22_next = 1.0 / gy
            w_12_next = -w_22_next[:, None] * jnp.sum(inv_T11 * t12n[:, None, :], axis=-1)
            DeltaW = jnp.zeros_like(W)
            DeltaW = DeltaW.at[:, idx[:, None], idx[None, :]].set(
                W_11 - (inv_T11 + gy[:, None, None]
                        * (w_12_next[:, :, None] * w_12_next[:, None, :])))
            DeltaW = DeltaW.at[:, idx, col].set(w_12 - w_12_next)
            DeltaW = DeltaW.at[:, col, idx].set(w_12 - w_12_next)
            DeltaW = DeltaW.at[:, col, col].set(w_22 - w_22_next)
            W = W + DeltaW
    return Theta


# ----------------------------------------------------------------------------
if __name__ == "__main__":
    B, P, K_PASSES = 8, 5, 1

    key = jax.random.PRNGKey(0)
    k1, k2 = jax.random.split(key)

    # SPD Theta and its (symmetrized) inverse W — well-conditioned synthetic inputs.
    A0 = jax.random.normal(k1, (B, P, P), dtype=jnp.float32)
    Theta0 = 0.1 * jnp.einsum("bij,bkj->bik", A0, A0) + 2.0 * jnp.eye(P, dtype=jnp.float32)[None]
    Theta0 = Theta0.astype(jnp.float32)
    W0 = jnp.linalg.inv(Theta0).astype(jnp.float32)
    W0 = 0.5 * (W0 + jnp.transpose(W0, (0, 2, 1)))   # enforce exact symmetry

    # Deterministic col_learner weight (nn.Linear(p-1, p-1, bias=False) style init).
    bound = 1.0 / np.sqrt(P - 1)
    w_lin = jax.random.uniform(k2, (P - 1, P - 1), dtype=jnp.float32,
                               minval=-bound, maxval=bound)

    out = spodnet_forward(Theta0, W0, w_lin, K_passes=K_PASSES)
    out = jax.block_until_ready(out)

    ref = jax.block_until_ready(spodnet_reference(Theta0, W0, w_lin, K_passes=K_PASSES))
    np.testing.assert_allclose(np.asarray(out), np.asarray(ref), rtol=1e-2, atol=1e-4)

    print("KERNEL_OK")
</pallas_src>

<mosaic_0001>
module attributes {stable_mosaic.version = 11 : i64} {
  func.func @_spodnet_kernel(%arg0: i32, %arg1: memref<5x8x8xf32, #tpu.memory_space<vmem>>, %arg2: memref<8x8x128xf32, #tpu.memory_space<vmem>>, %arg3: memref<8x8x128xf32, #tpu.memory_space<vmem>>, %arg4: memref<8x8x128xf32, #tpu.memory_space<vmem>>) attributes {dimension_semantics = [#tpu.dimension_semantics<parallel>], iteration_bounds = array<i64: 1>, scalar_prefetch = 0 : i64, scratch_operands = 0 : i64, tpu.core_type = #tpu.core_type<tc>, window_params = [{pipeline_mode = #tpu.pipeline_mode<synchronous>, transform_indices = @transform_0, window_bounds = array<i64: 5, 8, 8>}, {transform_indices = @transform_1, window_bounds = array<i64: 8, 8, 128>}, {transform_indices = @transform_2, window_bounds = array<i64: 8, 8, 128>}, {transform_indices = @transform_3, window_bounds = array<i64: 8, 8, 128>}]} {
    %c0 = arith.constant 0 : index
    %c0_0 = arith.constant 0 : index
    %c0_1 = arith.constant 0 : index
    %0 = vector.load %arg2[%c0, %c0_0, %c0_1] : memref<8x8x128xf32, #tpu.memory_space<vmem>>, vector<8x8x128xf32>
    %c0_2 = arith.constant 0 : index
    %c0_3 = arith.constant 0 : index
    %c0_4 = arith.constant 0 : index
    %1 = vector.load %arg3[%c0_2, %c0_3, %c0_4] : memref<8x8x128xf32, #tpu.memory_space<vmem>>, vector<8x8x128xf32>
    %2 = tpu.iota {dimensions = array<i32: 0>} : vector<8x1x1xi32>
    %3 = tpu.iota {dimensions = array<i32: 1>} : vector<1x8x1xi32>
    %4 = tpu.iota {dimensions = array<i32: 0>} : vector<8x1xi32>
    %c0_i32 = arith.constant 0 : i32
    %5 = vector.broadcast %c0_i32 : i32 to vector<8x1x1xi32>
    %6 = arith.cmpi eq, %2, %5 : vector<8x1x1xi32>
    %7 = arith.extui %6 : vector<8x1x1xi1> to vector<8x1x1xi32>
    %8 = arith.sitofp %7 : vector<8x1x1xi32> to vector<8x1x1xf32>
    %c0_i32_5 = arith.constant 0 : i32
    %9 = vector.broadcast %c0_i32_5 : i32 to vector<1x8x1xi32>
    %10 = arith.cmpi eq, %3, %9 : vector<1x8x1xi32>
    %11 = arith.extui %10 : vector<1x8x1xi1> to vector<1x8x1xi32>
    %12 = arith.sitofp %11 : vector<1x8x1xi32> to vector<1x8x1xf32>
    %c0_i32_6 = arith.constant 0 : i32
    %13 = vector.broadcast %c0_i32_6 : i32 to vector<8x1xi32>
    %14 = arith.cmpi eq, %4, %13 : vector<8x1xi32>
    %15 = arith.extui %14 : vector<8x1xi1> to vector<8x1xi32>
    %16 = arith.sitofp %15 : vector<8x1xi32> to vector<8x1xf32>
    %cst = arith.constant 1.000000e+00 : f32
    %17 = vector.broadcast %cst : f32 to vector<8x1xf32>
    %18 = arith.subf %17, %16 : vector<8x1xf32>
    %19 = vector.extract_strided_slice %0 {offsets = [0, 0, 0], sizes = [1, 8, 128], strides = [1, 1, 1]} : vector<8x8x128xf32> to vector<1x8x128xf32>
    %20 = vector.shape_cast %19 : vector<1x8x128xf32> to vector<8x128xf32>
    %21 = vector.extract_strided_slice %1 {offsets = [0, 0, 0], sizes = [1, 8, 128], strides = [1, 1, 1]} : vector<8x8x128xf32> to vector<1x8x128xf32>
    %22 = vector.shape_cast %21 : vector<1x8x128xf32> to vector<8x128xf32>
    %23 = vector.broadcast %18 : vector<8x1xf32> to vector<8x128xf32>
    %24 = arith.mulf %20, %23 : vector<8x128xf32>
    %25 = vector.broadcast %18 : vector<8x1xf32> to vector<8x128xf32>
    %26 = arith.mulf %22, %25 : vector<8x128xf32>
    %27 = vector.extract_strided_slice %20 {offsets = [0, 0], sizes = [1, 128], strides = [1, 1]} : vector<8x128xf32> to vector<1x128xf32>
    %28 = vector.extract_strided_slice %22 {offsets = [0, 0], sizes = [1, 128], strides = [1, 1]} : vector<8x128xf32> to vector<1x128xf32>
    %cst_7 = arith.constant 1.000000e+00 : f32
    %29 = vector.broadcast %cst_7 : f32 to vector<1x128xf32>
    %30 = arith.divf %29, %28 : vector<1x128xf32>
    %c0_8 = arith.constant 0 : index
    %c0_9 = arith.constant 0 : index
    %c0_10 = arith.constant 0 : index
    %31 = vector.load %arg1[%c0_8, %c0_9, %c0_10] : memref<5x8x8xf32, #tpu.memory_space<vmem>>, vector<1x8x8xf32>
    %32 = vector.shape_cast %31 : vector<1x8x8xf32> to vector<8x8xf32>
    %cst_11 = arith.constant dense<0.000000e+00> : vector<8x128xf32>
    %33 = tpu.matmul %32, %24, %cst_11 {dimension_numbers = #tpu.dot_dimension_numbers<[1], [0], [0], [1], [0, 0, 1, 1], [], []>} : vector<8x8xf32>, vector<8x128xf32>, vector<8x128xf32> -> vector<8x128xf32>
    %34 = vector.shape_cast %33 : vector<8x128xf32> to vector<1x8x128xf32>
    %35 = vector.broadcast %34 : vector<1x8x128xf32> to vector<8x8x128xf32>
    %36 = arith.mulf %1, %35 : vector<8x8x128xf32>
    %cst_12 = arith.constant dense<0.000000e+00> : vector<8x128xf32>
    %37 = vector.multi_reduction <add>, %36, %cst_12 [1] : vector<8x8x128xf32> to vector<8x128xf32>
    %38 = vector.shape_cast %24 : vector<8x128xf32> to vector<1x8x128xf32>
    %39 = vector.broadcast %38 : vector<1x8x128xf32> to vector<8x8x128xf32>
    %40 = arith.mulf %1, %39 : vector<8x8x128xf32>
    %cst_13 = arith.constant dense<0.000000e+00> : vector<8x128xf32>
    %41 = vector.multi_reduction <add>, %40, %cst_13 [1] : vector<8x8x128xf32> to vector<8x128xf32>
    %42 = arith.mulf %26, %33 : vector<8x128xf32>
    %cst_14 = arith.constant dense<0.000000e+00> : vector<128xf32>
    %43 = vector.multi_reduction <add>, %42, %cst_14 [0] : vector<8x128xf32> to vector<128xf32>
    %44 = vector.shape_cast %43 : vector<128xf32> to vector<1x128xf32>
    %45 = arith.mulf %26, %24 : vector<8x128xf32>
    %cst_15 = arith.constant dense<0.000000e+00> : vector<128xf32>
    %46 = vector.multi_reduction <add>, %45, %cst_15 [0] : vector<8x128xf32> to vector<128xf32>
    %47 = vector.shape_cast %46 : vector<128xf32> to vector<1x128xf32>
    %48 = vector.broadcast %18 : vector<8x1xf32> to vector<8x128xf32>
    %49 = arith.mulf %48, %37 : vector<8x128xf32>
    %50 = arith.mulf %44, %30 : vector<1x128xf32>
    %51 = vector.broadcast %50 : vector<1x128xf32> to vector<8x128xf32>
    %52 = arith.mulf %26, %51 : vector<8x128xf32>
    %53 = arith.subf %49, %52 : vector<8x128xf32>
    %54 = vector.broadcast %18 : vector<8x1xf32> to vector<8x128xf32>
    %55 = arith.mulf %54, %41 : vector<8x128xf32>
    %56 = arith.mulf %47, %30 : vector<1x128xf32>
    %57 = vector.broadcast %56 : vector<1x128xf32> to vector<8x128xf32>
    %58 = arith.mulf %26, %57 : vector<8x128xf32>
    %59 = arith.subf %55, %58 : vector<8x128xf32>
    %60 = arith.mulf %33, %53 : vector<8x128xf32>
    %cst_16 = arith.constant dense<0.000000e+00> : vector<128xf32>
    %61 = vector.multi_reduction <add>, %60, %cst_16 [0] : vector<8x128xf32> to vector<128xf32>
    %62 = vector.shape_cast %61 : vector<128xf32> to vector<1x128xf32>
    %63 = arith.mulf %24, %59 : vector<8x128xf32>
    %cst_17 = arith.constant dense<0.000000e+00> : vector<128xf32>
    %64 = vector.multi_reduction <add>, %63, %cst_17 [0] : vector<8x128xf32> to vector<128xf32>
    %65 = vector.shape_cast %64 : vector<128xf32> to vector<1x128xf32>
    %66 = arith.subf %27, %65 : vector<1x128xf32>
    %67 = arith.addf %66, %62 : vector<1x128xf32>
    %68 = arith.subf %33, %24 : vector<8x128xf32>
    %69 = arith.subf %67, %27 : vector<1x128xf32>
    %70 = vector.broadcast %69 : vector<1x128xf32> to vector<8x128xf32>
    %71 = vector.broadcast %16 : vector<8x1xf32> to vector<8x128xf32>
    %72 = arith.mulf %70, %71 : vector<8x128xf32>
    %73 = arith.addf %68, %72 : vector<8x128xf32>
    %74 = vector.shape_cast %73 : vector<8x128xf32> to vector<8x1x128xf32>
    %75 = vector.broadcast %12 : vector<1x8x1xf32> to vector<8x8x128xf32>
    %76 = vector.broadcast %74 : vector<8x1x128xf32> to vector<8x8x128xf32>
    %77 = arith.mulf %75, %76 : vector<8x8x128xf32>
    %78 = arith.addf %0, %77 : vector<8x8x128xf32>
    %79 = vector.shape_cast %68 : vector<8x128xf32> to vector<1x8x128xf32>
    %80 = vector.broadcast %8 : vector<8x1x1xf32> to vector<8x8x128xf32>
    %81 = vector.broadcast %79 : vector<1x8x128xf32> to vector<8x8x128xf32>
    %82 = arith.mulf %80, %81 : vector<8x8x128xf32>
    %83 = arith.addf %78, %82 : vector<8x8x128xf32>
    %cst_18 = arith.constant 1.000000e+00 : f32
    %84 = vector.broadcast %cst_18 : f32 to vector<1x128xf32>
    %85 = arith.divf %84, %66 : vector<1x128xf32>
    %cst_19 = arith.constant 0.000000e+00 : f32
    %86 = vector.broadcast %cst_19 : f32 to vector<1x128xf32>
    %87 = arith.subf %86, %85 : vector<1x128xf32>
    %88 = vector.broadcast %87 : vector<1x128xf32> to vector<8x128xf32>
    %89 = arith.mulf %88, %53 : vector<8x128xf32>
    %90 = vector.broadcast %30 : vector<1x128xf32> to vector<8x128xf32>
    %91 = arith.mulf %26, %90 : vector<8x128xf32>
    %92 = vector.shape_cast %91 : vector<8x128xf32> to vector<8x1x128xf32>
    %93 = vector.shape_cast %26 : vector<8x128xf32> to vector<1x8x128xf32>
    %94 = vector.broadcast %92 : vector<8x1x128xf32> to vector<8x8x128xf32>
    %95 = vector.broadcast %93 : vector<1x8x128xf32> to vector<8x8x128xf32>
    %96 = arith.mulf %94, %95 : vector<8x8x128xf32>
    %97 = vector.broadcast %66 : vector<1x128xf32> to vector<8x128xf32>
    %98 = arith.mulf %97, %89 : vector<8x128xf32>
    %99 = vector.shape_cast %98 : vector<8x128xf32> to vector<8x1x128xf32>
    %100 = vector.shape_cast %89 : vector<8x128xf32> to vector<1x8x128xf32>
    %101 = vector.broadcast %99 : vector<8x1x128xf32> to vector<8x8x128xf32>
    %102 = vector.broadcast %100 : vector<1x8x128xf32> to vector<8x8x128xf32>
    %103 = arith.mulf %101, %102 : vector<8x8x128xf32>
    %104 = arith.subf %96, %103 : vector<8x8x128xf32>
    %105 = arith.subf %26, %89 : vector<8x128xf32>
    %106 = arith.subf %28, %85 : vector<1x128xf32>
    %107 = vector.broadcast %106 : vector<1x128xf32> to vector<8x128xf32>
    %108 = vector.broadcast %16 : vector<8x1xf32> to vector<8x128xf32>
    %109 = arith.mulf %107, %108 : vector<8x128xf32>
    %110 = arith.addf %105, %109 : vector<8x128xf32>
    %111 = arith.addf %1, %104 : vector<8x8x128xf32>
    %112 = vector.shape_cast %110 : vector<8x128xf32> to vector<8x1x128xf32>
    %113 = vector.broadcast %12 : vector<1x8x1xf32> to vector<8x8x128xf32>
    %114 = vector.broadcast %112 : vector<8x1x128xf32> to vector<8x8x128xf32>
    %115 = arith.mulf %113, %114 : vector<8x8x128xf32>
    %116 = arith.addf %111, %115 : vector<8x8x128xf32>
    %117 = vector.shape_cast %105 : vector<8x128xf32> to vector<1x8x128xf32>
    %118 = vector.broadcast %8 : vector<8x1x1xf32> to vector<8x8x128xf32>
    %119 = vector.broadcast %117 : vector<1x8x128xf32> to vector<8x8x128xf32>
    %120 = arith.mulf %118, %119 : vector<8x8x128xf32>
    %121 = arith.addf %116, %120 : vector<8x8x128xf32>
    %c1_i32 = arith.constant 1 : i32
    %122 = vector.broadcast %c1_i32 : i32 to vector<8x1x1xi32>
    %123 = arith.cmpi eq, %2, %122 : vector<8x1x1xi32>
    %124 = arith.extui %123 : vector<8x1x1xi1> to vector<8x1x1xi32>
    %125 = arith.sitofp %124 : vector<8x1x1xi32> to vector<8x1x1xf32>
    %c1_i32_20 = arith.constant 1 : i32
    %126 = vector.broadcast %c1_i32_20 : i32 to vector<1x8x1xi32>
    %127 = arith.cmpi eq, %3, %126 : vector<1x8x1xi32>
    %128 = arith.extui %127 : vector<1x8x1xi1> to vector<1x8x1xi32>
    %129 = arith.sitofp %128 : vector<1x8x1xi32> to vector<1x8x1xf32>
    %c1_i32_21 = arith.constant 1 : i32
    %130 = vector.broadcast %c1_i32_21 : i32 to vector<8x1xi32>
    %131 = arith.cmpi eq, %4, %130 : vector<8x1xi32>
    %132 = arith.extui %131 : vector<8x1xi1> to vector<8x1xi32>
    %133 = arith.sitofp %132 : vector<8x1xi32> to vector<8x1xf32>
    %cst_22 = arith.constant 1.000000e+00 : f32
    %134 = vector.broadcast %cst_22 : f32 to vector<8x1xf32>
    %135 = arith.subf %134, %133 : vector<8x1xf32>
    %136 = vector.extract_strided_slice %83 {offsets = [1, 0, 0], sizes = [1, 8, 128], strides = [1, 1, 1]} : vector<8x8x128xf32> to vector<1x8x128xf32>
    %137 = vector.shape_cast %136 : vector<1x8x128xf32> to vector<8x128xf32>
    %138 = vector.extract_strided_slice %121 {offsets = [1, 0, 0], sizes = [1, 8, 128], strides = [1, 1, 1]} : vector<8x8x128xf32> to vector<1x8x128xf32>
    %139 = vector.shape_cast %138 : vector<1x8x128xf32> to vector<8x128xf32>
    %140 = vector.broadcast %135 : vector<8x1xf32> to vector<8x128xf32>
    %141 = arith.mulf %137, %140 : vector<8x128xf32>
    %142 = vector.broadcast %135 : vector<8x1xf32> to vector<8x128xf32>
    %143 = arith.mulf %139, %142 : vector<8x128xf32>
    %144 = vector.extract_strided_slice %137 {offsets = [1, 0], sizes = [1, 128], strides = [1, 1]} : vector<8x128xf32> to vector<1x128xf32>
    %145 = vector.extract_strided_slice %139 {offsets = [1, 0], sizes = [1, 128], strides = [1, 1]} : vector<8x128xf32> to vector<1x128xf32>
    %cst_23 = arith.constant 1.000000e+00 : f32
    %146 = vector.broadcast %cst_23 : f32 to vector<1x128xf32>
    %147 = arith.divf %146, %145 : vector<1x128xf32>
    %c1 = arith.constant 1 : index
    %c0_24 = arith.constant 0 : index
    %c0_25 = arith.constant 0 : index
    %148 = vector.load %arg1[%c1, %c0_24, %c0_25] : memref<5x8x8xf32, #tpu.memory_space<vmem>>, vector<1x8x8xf32>
    %149 = vector.shape_cast %148 : vector<1x8x8xf32> to vector<8x8xf32>
    %cst_26 = arith.constant dense<0.000000e+00> : vector<8x128xf32>
    %150 = tpu.matmul %149, %141, %cst_26 {dimension_numbers = #tpu.dot_dimension_numbers<[1], [0], [0], [1], [0, 0, 1, 1], [], []>} : vector<8x8xf32>, vector<8x128xf32>, vector<8x128xf32> -> vector<8x128xf32>
    %151 = vector.shape_cast %150 : vector<8x128xf32> to vector<1x8x128xf32>
    %152 = vector.broadcast %151 : vector<1x8x128xf32> to vector<8x8x128xf32>
    %153 = arith.mulf %121, %152 : vector<8x8x128xf32>
    %cst_27 = arith.constant dense<0.000000e+00> : vector<8x128xf32>
    %154 = vector.multi_reduction <add>, %153, %cst_27 [1] : vector<8x8x128xf32> to vector<8x128xf32>
    %155 = vector.shape_cast %141 : vector<8x128xf32> to vector<1x8x128xf32>
    %156 = vector.broadcast %155 : vector<1x8x128xf32> to vector<8x8x128xf32>
    %157 = arith.mulf %121, %156 : vector<8x8x128xf32>
    %cst_28 = arith.constant dense<0.000000e+00> : vector<8x128xf32>
    %158 = vector.multi_reduction <add>, %157, %cst_28 [1] : vector<8x8x128xf32> to vector<8x128xf32>
    %159 = arith.mulf %143, %150 : vector<8x128xf32>
    %cst_29 = arith.constant dense<0.000000e+00> : vector<128xf32>
    %160 = vector.multi_reduction <add>, %159, %cst_29 [0] : vector<8x128xf32> to vector<128xf32>
    %161 = vector.shape_cast %160 : vector<128xf32> to vector<1x128xf32>
    %162 = arith.mulf %143, %141 : vector<8x128xf32>
    %cst_30 = arith.constant dense<0.000000e+00> : vector<128xf32>
    %163 = vector.multi_reduction <add>, %162, %cst_30 [0] : vector<8x128xf32> to vector<128xf32>
    %164 = vector.shape_cast %163 : vector<128xf32> to vector<1x128xf32>
    %165 = vector.broadcast %135 : vector<8x1xf32> to vector<8x128xf32>
    %166 = arith.mulf %165, %154 : vector<8x128xf32>
    %167 = arith.mulf %161, %147 : vector<1x128xf32>
    %168 = vector.broadcast %167 : vector<1x128xf32> to vector<8x128xf32>
    %169 = arith.mulf %143, %168 : vector<8x128xf32>
    %170 = arith.subf %166, %169 : vector<8x128xf32>
    %171 = vector.broadcast %135 : vector<8x1xf32> to vector<8x128xf32>
    %172 = arith.mulf %171, %158 : vector<8x128xf32>
    %173 = arith.mulf %164, %147 : vector<1x128xf32>
    %174 = vector.broadcast %173 : vector<1x128xf32> to vector<8x128xf32>
    %175 = arith.mulf %143, %174 : vector<8x128xf32>
    %176 = arith.subf %172, %175 : vector<8x128xf32>
    %177 = arith.mulf %150, %170 : vector<8x128xf32>
    %cst_31 = arith.constant dense<0.000000e+00> : vector<128xf32>
    %178 = vector.multi_reduction <add>, %177, %cst_31 [0] : vector<8x128xf32> to vector<128xf32>
    %179 = vector.shape_cast %178 : vector<128xf32> to vector<1x128xf32>
    %180 = arith.mulf %141, %176 : vector<8x128xf32>
    %cst_32 = arith.constant dense<0.000000e+00> : vector<128xf32>
    %181 = vector.multi_reduction <add>, %180, %cst_32 [0] : vector<8x128xf32> to vector<128xf32>
    %182 = vector.shape_cast %181 : vector<128xf32> to vector<1x128xf32>
    %183 = arith.subf %144, %182 : vector<1x128xf32>
    %184 = arith.addf %183, %179 : vector<1x128xf32>
    %185 = arith.subf %150, %141 : vector<8x128xf32>
    %186 = arith.subf %184, %144 : vector<1x128xf32>
    %187 = vector.broadcast %186 : vector<1x128xf32> to vector<8x128xf32>
    %188 = vector.broadcast %133 : vector<8x1xf32> to vector<8x128xf32>
    %189 = arith.mulf %187, %188 : vector<8x128xf32>
    %190 = arith.addf %185, %189 : vector<8x128xf32>
    %191 = vector.shape_cast %190 : vector<8x128xf32> to vector<8x1x128xf32>
    %192 = vector.broadcast %129 : vector<1x8x1xf32> to vector<8x8x128xf32>
    %193 = vector.broadcast %191 : vector<8x1x128xf32> to vector<8x8x128xf32>
    %194 = arith.mulf %192, %193 : vector<8x8x128xf32>
    %195 = arith.addf %83, %194 : vector<8x8x128xf32>
    %196 = vector.shape_cast %185 : vector<8x128xf32> to vector<1x8x128xf32>
    %197 = vector.broadcast %125 : vector<8x1x1xf32> to vector<8x8x128xf32>
    %198 = vector.broadcast %196 : vector<1x8x128xf32> to vector<8x8x128xf32>
    %199 = arith.mulf %197, %198 : vector<8x8x128xf32>
    %200 = arith.addf %195, %199 : vector<8x8x128xf32>
    %cst_33 = arith.constant 1.000000e+00 : f32
    %201 = vector.broadcast %cst_33 : f32 to vector<1x128xf32>
    %202 = arith.divf %201, %183 : vector<1x128xf32>
    %cst_34 = arith.constant 0.000000e+00 : f32
    %203 = vector.broadcast %cst_34 : f32 to vector<1x128xf32>
    %204 = arith.subf %203, %202 : vector<1x128xf32>
    %205 = vector.broadcast %204 : vector<1x128xf32> to vector<8x128xf32>
    %206 = arith.mulf %205, %170 : vector<8x128xf32>
    %207 = vector.broadcast %147 : vector<1x128xf32> to vector<8x128xf32>
    %208 = arith.mulf %143, %207 : vector<8x128xf32>
    %209 = vector.shape_cast %208 : vector<8x128xf32> to vector<8x1x128xf32>
    %210 = vector.shape_cast %143 : vector<8x128xf32> to vector<1x8x128xf32>
    %211 = vector.broadcast %209 : vector<8x1x128xf32> to vector<8x8x128xf32>
    %212 = vector.broadcast %210 : vector<1x8x128xf32> to vector<8x8x128xf32>
    %213 = arith.mulf %211, %212 : vector<8x8x128xf32>
    %214 = vector.broadcast %183 : vector<1x128xf32> to vector<8x128xf32>
    %215 = arith.mulf %214, %206 : vector<8x128xf32>
    %216 = vector.shape_cast %215 : vector<8x128xf32> to vector<8x1x128xf32>
    %217 = vector.shape_cast %206 : vector<8x128xf32> to vector<1x8x128xf32>
    %218 = vector.broadcast %216 : vector<8x1x128xf32> to vector<8x8x128xf32>
    %219 = vector.broadcast %217 : vector<1x8x128xf32> to vector<8x8x128xf32>
    %220 = arith.mulf %218, %219 : vector<8x8x128xf32>
    %221 = arith.subf %213, %220 : vector<8x8x128xf32>
    %222 = arith.subf %143, %206 : vector<8x128xf32>
    %223 = arith.subf %145, %202 : vector<1x128xf32>
    %224 = vector.broadcast %223 : vector<1x128xf32> to vector<8x128xf32>
    %225 = vector.broadcast %133 : vector<8x1xf32> to vector<8x128xf32>
    %226 = arith.mulf %224, %225 : vector<8x128xf32>
    %227 = arith.addf %222, %226 : vector<8x128xf32>
    %228 = arith.addf %121, %221 : vector<8x8x128xf32>
    %229 = vector.shape_cast %227 : vector<8x128xf32> to vector<8x1x128xf32>
    %230 = vector.broadcast %129 : vector<1x8x1xf32> to vector<8x8x128xf32>
    %231 = vector.broadcast %229 : vector<8x1x128xf32> to vector<8x8x128xf32>
    %232 = arith.mulf %230, %231 : vector<8x8x128xf32>
    %233 = arith.addf %228, %232 : vector<8x8x128xf32>
    %234 = vector.shape_cast %222 : vector<8x128xf32> to vector<1x8x128xf32>
    %235 = vector.broadcast %125 : vector<8x1x1xf32> to vector<8x8x128xf32>
    %236 = vector.broadcast %234 : vector<1x8x128xf32> to vector<8x8x128xf32>
    %237 = arith.mulf %235, %236 : vector<8x8x128xf32>
    %238 = arith.addf %233, %237 : vector<8x8x128xf32>
    %c2_i32 = arith.constant 2 : i32
    %239 = vector.broadcast %c2_i32 : i32 to vector<8x1x1xi32>
    %240 = arith.cmpi eq, %2, %239 : vector<8x1x1xi32>
    %241 = arith.extui %240 : vector<8x1x1xi1> to vector<8x1x1xi32>
    %242 = arith.sitofp %241 : vector<8x1x1xi32> to vector<8x1x1xf32>
    %c2_i32_35 = arith.constant 2 : i32
    %243 = vector.broadcast %c2_i32_35 : i32 to vector<1x8x1xi32>
    %244 = arith.cmpi eq, %3, %243 : vector<1x8x1xi32>
    %245 = arith.extui %244 : vector<1x8x1xi1> to vector<1x8x1xi32>
    %246 = arith.sitofp %245 : vector<1x8x1xi32> to vector<1x8x1xf32>
    %c2_i32_36 = arith.constant 2 : i32
    %247 = vector.broadcast %c2_i32_36 : i32 to vector<8x1xi32>
    %248 = arith.cmpi eq, %4, %247 : vector<8x1xi32>
    %249 = arith.extui %248 : vector<8x1xi1> to vector<8x1xi32>
    %250 = arith.sitofp %249 : vector<8x1xi32> to vector<8x1xf32>
    %cst_37 = arith.constant 1.000000e+00 : f32
    %251 = vector.broadcast %cst_37 : f32 to vector<8x1xf32>
    %252 = arith.subf %251, %250 : vector<8x1xf32>
    %253 = vector.extract_strided_slice %200 {offsets = [2, 0, 0], sizes = [1, 8, 128], strides = [1, 1, 1]} : vector<8x8x128xf32> to vector<1x8x128xf32>
    %254 = vector.shape_cast %253 : vector<1x8x128xf32> to vector<8x128xf32>
    %255 = vector.extract_strided_slice %238 {offsets = [2, 0, 0], sizes = [1, 8, 128], strides = [1, 1, 1]} : vector<8x8x128xf32> to vector<1x8x128xf32>
    %256 = vector.shape_cast %255 : vector<1x8x128xf32> to vector<8x128xf32>
    %257 = vector.broadcast %252 : vector<8x1xf32> to vector<8x128xf32>
    %258 = arith.mulf %254, %257 : vector<8x128xf32>
    %259 = vector.broadcast %252 : vector<8x1xf32> to vector<8x128xf32>
    %260 = arith.mulf %256, %259 : vector<8x128xf32>
    %261 = vector.extract_strided_slice %254 {offsets = [2, 0], sizes = [1, 128], strides = [1, 1]} : vector<8x128xf32> to vector<1x128xf32>
    %262 = vector.extract_strided_slice %256 {offsets = [2, 0], sizes = [1, 128], strides = [1, 1]} : vector<8x128xf32> to vector<1x128xf32>
    %cst_38 = arith.constant 1.000000e+00 : f32
    %263 = vector.broadcast %cst_38 : f32 to vector<1x128xf32>
    %264 = arith.divf %263, %262 : vector<1x128xf32>
    %c2 = arith.constant 2 : index
    %c0_39 = arith.constant 0 : index
    %c0_40 = arith.constant 0 : index
    %265 = vector.load %arg1[%c2, %c0_39, %c0_40] : memref<5x8x8xf32, #tpu.memory_space<vmem>>, vector<1x8x8xf32>
    %266 = vector.shape_cast %265 : vector<1x8x8xf32> to vector<8x8xf32>
    %cst_41 = arith.constant dense<0.000000e+00> : vector<8x128xf32>
    %267 = tpu.matmul %266, %258, %cst_41 {dimension_numbers = #tpu.dot_dimension_numbers<[1], [0], [0], [1], [0, 0, 1, 1], [], []>} : vector<8x8xf32>, vector<8x128xf32>, vector<8x128xf32> -> vector<8x128xf32>
    %268 = vector.shape_cast %267 : vector<8x128xf32> to vector<1x8x128xf32>
    %269 = vector.broadcast %268 : vector<1x8x128xf32> to vector<8x8x128xf32>
    %270 = arith.mulf %238, %269 : vector<8x8x128xf32>
    %cst_42 = arith.constant dense<0.000000e+00> : vector<8x128xf32>
    %271 = vector.multi_reduction <add>, %270, %cst_42 [1] : vector<8x8x128xf32> to vector<8x128xf32>
    %272 = vector.shape_cast %258 : vector<8x128xf32> to vector<1x8x128xf32>
    %273 = vector.broadcast %272 : vector<1x8x128xf32> to vector<8x8x128xf32>
    %274 = arith.mulf %238, %273 : vector<8x8x128xf32>
    %cst_43 = arith.constant dense<0.000000e+00> : vector<8x128xf32>
    %275 = vector.multi_reduction <add>, %274, %cst_43 [1] : vector<8x8x128xf32> to vector<8x128xf32>
    %276 = arith.mulf %260, %267 : vector<8x128xf32>
    %cst_44 = arith.constant dense<0.000000e+00> : vector<128xf32>
    %277 = vector.multi_reduction <add>, %276, %cst_44 [0] : vector<8x128xf32> to vector<128xf32>
    %278 = vector.shape_cast %277 : vector<128xf32> to vector<1x128xf32>
    %279 = arith.mulf %260, %258 : vector<8x128xf32>
    %cst_45 = arith.constant dense<0.000000e+00> : vector<128xf32>
    %280 = vector.multi_reduction <add>, %279, %cst_45 [0] : vector<8x128xf32> to vector<128xf32>
    %281 = vector.shape_cast %280 : vector<128xf32> to vector<1x128xf32>
    %282 = vector.broadcast %252 : vector<8x1xf32> to vector<8x128xf32>
    %283 = arith.mulf %282, %271 : vector<8x128xf32>
    %284 = arith.mulf %278, %264 : vector<1x128xf32>
    %285 = vector.broadcast %284 : vector<1x128xf32> to vector<8x128xf32>
    %286 = arith.mulf %260, %285 : vector<8x128xf32>
    %287 = arith.subf %283, %286 : vector<8x128xf32>
    %288 = vector.broadcast %252 : vector<8x1xf32> to vector<8x128xf32>
    %289 = arith.mulf %288, %275 : vector<8x128xf32>
    %290 = arith.mulf %281, %264 : vector<1x128xf32>
    %291 = vector.broadcast %290 : vector<1x128xf32> to vector<8x128xf32>
    %292 = arith.mulf %260, %291 : vector<8x128xf32>
    %293 = arith.subf %289, %292 : vector<8x128xf32>
    %294 = arith.mulf %267, %287 : vector<8x128xf32>
    %cst_46 = arith.constant dense<0.000000e+00> : vector<128xf32>
    %295 = vector.multi_reduction <add>, %294, %cst_46 [0] : vector<8x128xf32> to vector<128xf32>
    %296 = vector.shape_cast %295 : vector<128xf32> to vector<1x128xf32>
    %297 = arith.mulf %258, %293 : vector<8x128xf32>
    %cst_47 = arith.constant dense<0.000000e+00> : vector<128xf32>
    %298 = vector.multi_reduction <add>, %297, %cst_47 [0] : vector<8x128xf32> to vector<128xf32>
    %299 = vector.shape_cast %298 : vector<128xf32> to vector<1x128xf32>
    %300 = arith.subf %261, %299 : vector<1x128xf32>
    %301 = arith.addf %300, %296 : vector<1x128xf32>
    %302 = arith.subf %267, %258 : vector<8x128xf32>
    %303 = arith.subf %301, %261 : vector<1x128xf32>
    %304 = vector.broadcast %303 : vector<1x128xf32> to vector<8x128xf32>
    %305 = vector.broadcast %250 : vector<8x1xf32> to vector<8x128xf32>
    %306 = arith.mulf %304, %305 : vector<8x128xf32>
    %307 = arith.addf %302, %306 : vector<8x128xf32>
    %308 = vector.shape_cast %307 : vector<8x128xf32> to vector<8x1x128xf32>
    %309 = vector.broadcast %246 : vector<1x8x1xf32> to vector<8x8x128xf32>
    %310 = vector.broadcast %308 : vector<8x1x128xf32> to vector<8x8x128xf32>
    %311 = arith.mulf %309, %310 : vector<8x8x128xf32>
    %312 = arith.addf %200, %311 : vector<8x8x128xf32>
    %313 = vector.shape_cast %302 : vector<8x128xf32> to vector<1x8x128xf32>
    %314 = vector.broadcast %242 : vector<8x1x1xf32> to vector<8x8x128xf32>
    %315 = vector.broadcast %313 : vector<1x8x128xf32> to vector<8x8x128xf32>
    %316 = arith.mulf %314, %315 : vector<8x8x128xf32>
    %317 = arith.addf %312, %316 : vector<8x8x128xf32>
    %cst_48 = arith.constant 1.000000e+00 : f32
    %318 = vector.broadcast %cst_48 : f32 to vector<1x128xf32>
    %319 = arith.divf %318, %300 : vector<1x128xf32>
    %cst_49 = arith.constant 0.000000e+00 : f32
    %320 = vector.broadcast %cst_49 : f32 to vector<1x128xf32>
    %321 = arith.subf %320, %319 : vector<1x128xf32>
    %322 = vector.broadcast %321 : vector<1x128xf32> to vector<8x128xf32>
    %323 = arith.mulf %322, %287 : vector<8x128xf32>
    %324 = vector.broadcast %264 : vector<1x128xf32> to vector<8x128xf32>
    %325 = arith.mulf %260, %324 : vector<8x128xf32>
    %326 = vector.shape_cast %325 : vector<8x128xf32> to vector<8x1x128xf32>
    %327 = vector.shape_cast %260 : vector<8x128xf32> to vector<1x8x128xf32>
    %328 = vector.broadcast %326 : vector<8x1x128xf32> to vector<8x8x128xf32>
    %329 = vector.broadcast %327 : vector<1x8x128xf32> to vector<8x8x128xf32>
    %330 = arith.mulf %328, %329 : vector<8x8x128xf32>
    %331 = vector.broadcast %300 : vector<1x128xf32> to vector<8x128xf32>
    %332 = arith.mulf %331, %323 : vector<8x128xf32>
    %333 = vector.shape_cast %332 : vector<8x128xf32> to vector<8x1x128xf32>
    %334 = vector.shape_cast %323 : vector<8x128xf32> to vector<1x8x128xf32>
    %335 = vector.broadcast %333 : vector<8x1x128xf32> to vector<8x8x128xf32>
    %336 = vector.broadcast %334 : vector<1x8x128xf32> to vector<8x8x128xf32>
    %337 = arith.mulf %335, %336 : vector<8x8x128xf32>
    %338 = arith.subf %330, %337 : vector<8x8x128xf32>
    %339 = arith.subf %260, %323 : vector<8x128xf32>
    %340 = arith.subf %262, %319 : vector<1x128xf32>
    %341 = vector.broadcast %340 : vector<1x128xf32> to vector<8x128xf32>
    %342 = vector.broadcast %250 : vector<8x1xf32> to vector<8x128xf32>
    %343 = arith.mulf %341, %342 : vector<8x128xf32>
    %344 = arith.addf %339, %343 : vector<8x128xf32>
    %345 = arith.addf %238, %338 : vector<8x8x128xf32>
    %346 = vector.shape_cast %344 : vector<8x128xf32> to vector<8x1x128xf32>
    %347 = vector.broadcast %246 : vector<1x8x1xf32> to vector<8x8x128xf32>
    %348 = vector.broadcast %346 : vector<8x1x128xf32> to vector<8x8x128xf32>
    %349 = arith.mulf %347, %348 : vector<8x8x128xf32>
    %350 = arith.addf %345, %349 : vector<8x8x128xf32>
    %351 = vector.shape_cast %339 : vector<8x128xf32> to vector<1x8x128xf32>
    %352 = vector.broadcast %242 : vector<8x1x1xf32> to vector<8x8x128xf32>
    %353 = vector.broadcast %351 : vector<1x8x128xf32> to vector<8x8x128xf32>
    %354 = arith.mulf %352, %353 : vector<8x8x128xf32>
    %355 = arith.addf %350, %354 : vector<8x8x128xf32>
    %c3_i32 = arith.constant 3 : i32
    %356 = vector.broadcast %c3_i32 : i32 to vector<8x1x1xi32>
    %357 = arith.cmpi eq, %2, %356 : vector<8x1x1xi32>
    %358 = arith.extui %357 : vector<8x1x1xi1> to vector<8x1x1xi32>
    %359 = arith.sitofp %358 : vector<8x1x1xi32> to vector<8x1x1xf32>
    %c3_i32_50 = arith.constant 3 : i32
    %360 = vector.broadcast %c3_i32_50 : i32 to vector<1x8x1xi32>
    %361 = arith.cmpi eq, %3, %360 : vector<1x8x1xi32>
    %362 = arith.extui %361 : vector<1x8x1xi1> to vector<1x8x1xi32>
    %363 = arith.sitofp %362 : vector<1x8x1xi32> to vector<1x8x1xf32>
    %c3_i32_51 = arith.constant 3 : i32
    %364 = vector.broadcast %c3_i32_51 : i32 to vector<8x1xi32>
    %365 = arith.cmpi eq, %4, %364 : vector<8x1xi32>
    %366 = arith.extui %365 : vector<8x1xi1> to vector<8x1xi32>
    %367 = arith.sitofp %366 : vector<8x1xi32> to vector<8x1xf32>
    %cst_52 = arith.constant 1.000000e+00 : f32
    %368 = vector.broadcast %cst_52 : f32 to vector<8x1xf32>
    %369 = arith.subf %368, %367 : vector<8x1xf32>
    %370 = vector.extract_strided_slice %317 {offsets = [3, 0, 0], sizes = [1, 8, 128], strides = [1, 1, 1]} : vector<8x8x128xf32> to vector<1x8x128xf32>
    %371 = vector.shape_cast %370 : vector<1x8x128xf32> to vector<8x128xf32>
    %372 = vector.extract_strided_slice %355 {offsets = [3, 0, 0], sizes = [1, 8, 128], strides = [1, 1, 1]} : vector<8x8x128xf32> to vector<1x8x128xf32>
    %373 = vector.shape_cast %372 : vector<1x8x128xf32> to vector<8x128xf32>
    %374 = vector.broadcast %369 : vector<8x1xf32> to vector<8x128xf32>
    %375 = arith.mulf %371, %374 : vector<8x128xf32>
    %376 = vector.broadcast %369 : vector<8x1xf32> to vector<8x128xf32>
    %377 = arith.mulf %373, %376 : vector<8x128xf32>
    %378 = vector.extract_strided_slice %371 {offsets = [3, 0], sizes = [1, 128], strides = [1, 1]} : vector<8x128xf32> to vector<1x128xf32>
    %379 = vector.extract_strided_slice %373 {offsets = [3, 0], sizes = [1, 128], strides = [1, 1]} : vector<8x128xf32> to vector<1x128xf32>
    %cst_53 = arith.constant 1.000000e+00 : f32
    %380 = vector.broadcast %cst_53 : f32 to vector<1x128xf32>
    %381 = arith.divf %380, %379 : vector<1x128xf32>
    %c3 = arith.constant 3 : index
    %c0_54 = arith.constant 0 : index
    %c0_55 = arith.constant 0 : index
    %382 = vector.load %arg1[%c3, %c0_54, %c0_55] : memref<5x8x8xf32, #tpu.memory_space<vmem>>, vector<1x8x8xf32>
    %383 = vector.shape_cast %382 : vector<1x8x8xf32> to vector<8x8xf32>
    %cst_56 = arith.constant dense<0.000000e+00> : vector<8x128xf32>
    %384 = tpu.matmul %383, %375, %cst_56 {dimension_numbers = #tpu.dot_dimension_numbers<[1], [0], [0], [1], [0, 0, 1, 1], [], []>} : vector<8x8xf32>, vector<8x128xf32>, vector<8x128xf32> -> vector<8x128xf32>
    %385 = vector.shape_cast %384 : vector<8x128xf32> to vector<1x8x128xf32>
    %386 = vector.broadcast %385 : vector<1x8x128xf32> to vector<8x8x128xf32>
    %387 = arith.mulf %355, %386 : vector<8x8x128xf32>
    %cst_57 = arith.constant dense<0.000000e+00> : vector<8x128xf32>
    %388 = vector.multi_reduction <add>, %387, %cst_57 [1] : vector<8x8x128xf32> to vector<8x128xf32>
    %389 = vector.shape_cast %375 : vector<8x128xf32> to vector<1x8x128xf32>
    %390 = vector.broadcast %389 : vector<1x8x128xf32> to vector<8x8x128xf32>
    %391 = arith.mulf %355, %390 : vector<8x8x128xf32>
    %cst_58 = arith.constant dense<0.000000e+00> : vector<8x128xf32>
    %392 = vector.multi_reduction <add>, %391, %cst_58 [1] : vector<8x8x128xf32> to vector<8x128xf32>
    %393 = arith.mulf %377, %384 : vector<8x128xf32>
    %cst_59 = arith.constant dense<0.000000e+00> : vector<128xf32>
    %394 = vector.multi_reduction <add>, %393, %cst_59 [0] : vector<8x128xf32> to vector<128xf32>
    %395 = vector.shape_cast %394 : vector<128xf32> to vector<1x128xf32>
    %396 = arith.mulf %377, %375 : vector<8x128xf32>
    %cst_60 = arith.constant dense<0.000000e+00> : vector<128xf32>
    %397 = vector.multi_reduction <add>, %396, %cst_60 [0] : vector<8x128xf32> to vector<128xf32>
    %398 = vector.shape_cast %397 : vector<128xf32> to vector<1x128xf32>
    %399 = vector.broadcast %369 : vector<8x1xf32> to vector<8x128xf32>
    %400 = arith.mulf %399, %388 : vector<8x128xf32>
    %401 = arith.mulf %395, %381 : vector<1x128xf32>
    %402 = vector.broadcast %401 : vector<1x128xf32> to vector<8x128xf32>
    %403 = arith.mulf %377, %402 : vector<8x128xf32>
    %404 = arith.subf %400, %403 : vector<8x128xf32>
    %405 = vector.broadcast %369 : vector<8x1xf32> to vector<8x128xf32>
    %406 = arith.mulf %405, %392 : vector<8x128xf32>
    %407 = arith.mulf %398, %381 : vector<1x128xf32>
    %408 = vector.broadcast %407 : vector<1x128xf32> to vector<8x128xf32>
    %409 = arith.mulf %377, %408 : vector<8x128xf32>
    %410 = arith.subf %406, %409 : vector<8x128xf32>
    %411 = arith.mulf %384, %404 : vector<8x128xf32>
    %cst_61 = arith.constant dense<0.000000e+00> : vector<128xf32>
    %412 = vector.multi_reduction <add>, %411, %cst_61 [0] : vector<8x128xf32> to vector<128xf32>
    %413 = vector.shape_cast %412 : vector<128xf32> to vector<1x128xf32>
    %414 = arith.mulf %375, %410 : vector<8x128xf32>
    %cst_62 = arith.constant dense<0.000000e+00> : vector<128xf32>
    %415 = vector.multi_reduction <add>, %414, %cst_62 [0] : vector<8x128xf32> to vector<128xf32>
    %416 = vector.shape_cast %415 : vector<128xf32> to vector<1x128xf32>
    %417 = arith.subf %378, %416 : vector<1x128xf32>
    %418 = arith.addf %417, %413 : vector<1x128xf32>
    %419 = arith.subf %384, %375 : vector<8x128xf32>
    %420 = arith.subf %418, %378 : vector<1x128xf32>
    %421 = vector.broadcast %420 : vector<1x128xf32> to vector<8x128xf32>
    %422 = vector.broadcast %367 : vector<8x1xf32> to vector<8x128xf32>
    %423 = arith.mulf %421, %422 : vector<8x128xf32>
    %424 = arith.addf %419, %423 : vector<8x128xf32>
    %425 = vector.shape_cast %424 : vector<8x128xf32> to vector<8x1x128xf32>
    %426 = vector.broadcast %363 : vector<1x8x1xf32> to vector<8x8x128xf32>
    %427 = vector.broadcast %425 : vector<8x1x128xf32> to vector<8x8x128xf32>
    %428 = arith.mulf %426, %427 : vector<8x8x128xf32>
    %429 = arith.addf %317, %428 : vector<8x8x128xf32>
    %430 = vector.shape_cast %419 : vector<8x128xf32> to vector<1x8x128xf32>
    %431 = vector.broadcast %359 : vector<8x1x1xf32> to vector<8x8x128xf32>
    %432 = vector.broadcast %430 : vector<1x8x128xf32> to vector<8x8x128xf32>
    %433 = arith.mulf %431, %432 : vector<8x8x128xf32>
    %434 = arith.addf %429, %433 : vector<8x8x128xf32>
    %cst_63 = arith.constant 1.000000e+00 : f32
    %435 = vector.broadcast %cst_63 : f32 to vector<1x128xf32>
    %436 = arith.divf %435, %417 : vector<1x128xf32>
    %cst_64 = arith.constant 0.000000e+00 : f32
    %437 = vector.broadcast %cst_64 : f32 to vector<1x128xf32>
    %438 = arith.subf %437, %436 : vector<1x128xf32>
    %439 = vector.broadcast %438 : vector<1x128xf32> to vector<8x128xf32>
    %440 = arith.mulf %439, %404 : vector<8x128xf32>
    %441 = vector.broadcast %381 : vector<1x128xf32> to vector<8x128xf32>
    %442 = arith.mulf %377, %441 : vector<8x128xf32>
    %443 = vector.shape_cast %442 : vector<8x128xf32> to vector<8x1x128xf32>
    %444 = vector.shape_cast %377 : vector<8x128xf32> to vector<1x8x128xf32>
    %445 = vector.broadcast %443 : vector<8x1x128xf32> to vector<8x8x128xf32>
    %446 = vector.broadcast %444 : vector<1x8x128xf32> to vector<8x8x128xf32>
    %447 = arith.mulf %445, %446 : vector<8x8x128xf32>
    %448 = vector.broadcast %417 : vector<1x128xf32> to vector<8x128xf32>
    %449 = arith.mulf %448, %440 : vector<8x128xf32>
    %450 = vector.shape_cast %449 : vector<8x128xf32> to vector<8x1x128xf32>
    %451 = vector.shape_cast %440 : vector<8x128xf32> to vector<1x8x128xf32>
    %452 = vector.broadcast %450 : vector<8x1x128xf32> to vector<8x8x128xf32>
    %453 = vector.broadcast %451 : vector<1x8x128xf32> to vector<8x8x128xf32>
    %454 = arith.mulf %452, %453 : vector<8x8x128xf32>
    %455 = arith.subf %447, %454 : vector<8x8x128xf32>
    %456 = arith.subf %377, %440 : vector<8x128xf32>
    %457 = arith.subf %379, %436 : vector<1x128xf32>
    %458 = vector.broadcast %457 : vector<1x128xf32> to vector<8x128xf32>
    %459 = vector.broadcast %367 : vector<8x1xf32> to vector<8x128xf32>
    %460 = arith.mulf %458, %459 : vector<8x128xf32>
    %461 = arith.addf %456, %460 : vector<8x128xf32>
    %462 = arith.addf %355, %455 : vector<8x8x128xf32>
    %463 = vector.shape_cast %461 : vector<8x128xf32> to vector<8x1x128xf32>
    %464 = vector.broadcast %363 : vector<1x8x1xf32> to vector<8x8x128xf32>
    %465 = vector.broadcast %463 : vector<8x1x128xf32> to vector<8x8x128xf32>
    %466 = arith.mulf %464, %465 : vector<8x8x128xf32>
    %467 = arith.addf %462, %466 : vector<8x8x128xf32>
    %468 = vector.shape_cast %456 : vector<8x128xf32> to vector<1x8x128xf32>
    %469 = vector.broadcast %359 : vector<8x1x1xf32> to vector<8x8x128xf32>
    %470 = vector.broadcast %468 : vector<1x8x128xf32> to vector<8x8x128xf32>
    %471 = arith.mulf %469, %470 : vector<8x8x128xf32>
    %472 = arith.addf %467, %471 : vector<8x8x128xf32>
    %c4_i32 = arith.constant 4 : i32
    %473 = vector.broadcast %c4_i32 : i32 to vector<8x1x1xi32>
    %474 = arith.cmpi eq, %2, %473 : vector<8x1x1xi32>
    %475 = arith.extui %474 : vector<8x1x1xi1> to vector<8x1x1xi32>
    %476 = arith.sitofp %475 : vector<8x1x1xi32> to vector<8x1x1xf32>
    %c4_i32_65 = arith.constant 4 : i32
    %477 = vector.broadcast %c4_i32_65 : i32 to vector<1x8x1xi32>
    %478 = arith.cmpi eq, %3, %477 : vector<1x8x1xi32>
    %479 = arith.extui %478 : vector<1x8x1xi1> to vector<1x8x1xi32>
    %480 = arith.sitofp %479 : vector<1x8x1xi32> to vector<1x8x1xf32>
    %c4_i32_66 = arith.constant 4 : i32
    %481 = vector.broadcast %c4_i32_66 : i32 to vector<8x1xi32>
    %482 = arith.cmpi eq, %4, %481 : vector<8x1xi32>
    %483 = arith.extui %482 : vector<8x1xi1> to vector<8x1xi32>
    %484 = arith.sitofp %483 : vector<8x1xi32> to vector<8x1xf32>
    %cst_67 = arith.constant 1.000000e+00 : f32
    %485 = vector.broadcast %cst_67 : f32 to vector<8x1xf32>
    %486 = arith.subf %485, %484 : vector<8x1xf32>
    %487 = vector.extract_strided_slice %434 {offsets = [4, 0, 0], sizes = [1, 8, 128], strides = [1, 1, 1]} : vector<8x8x128xf32> to vector<1x8x128xf32>
    %488 = vector.shape_cast %487 : vector<1x8x128xf32> to vector<8x128xf32>
    %489 = vector.extract_strided_slice %472 {offsets = [4, 0, 0], sizes = [1, 8, 128], strides = [1, 1, 1]} : vector<8x8x128xf32> to vector<1x8x128xf32>
    %490 = vector.shape_cast %489 : vector<1x8x128xf32> to vector<8x128xf32>
    %491 = vector.broadcast %486 : vector<8x1xf32> to vector<8x128xf32>
    %492 = arith.mulf %488, %491 : vector<8x128xf32>
    %493 = vector.broadcast %486 : vector<8x1xf32> to vector<8x128xf32>
    %494 = arith.mulf %490, %493 : vector<8x128xf32>
    %495 = vector.extract_strided_slice %488 {offsets = [4, 0], sizes = [1, 128], strides = [1, 1]} : vector<8x128xf32> to vector<1x128xf32>
    %496 = vector.extract_strided_slice %490 {offsets = [4, 0], sizes = [1, 128], strides = [1, 1]} : vector<8x128xf32> to vector<1x128xf32>
    %cst_68 = arith.constant 1.000000e+00 : f32
    %497 = vector.broadcast %cst_68 : f32 to vector<1x128xf32>
    %498 = arith.divf %497, %496 : vector<1x128xf32>
    %c4 = arith.constant 4 : index
    %c0_69 = arith.constant 0 : index
    %c0_70 = arith.constant 0 : index
    %499 = vector.load %arg1[%c4, %c0_69, %c0_70] : memref<5x8x8xf32, #tpu.memory_space<vmem>>, vector<1x8x8xf32>
    %500 = vector.shape_cast %499 : vector<1x8x8xf32> to vector<8x8xf32>
    %cst_71 = arith.constant dense<0.000000e+00> : vector<8x128xf32>
    %501 = tpu.matmul %500, %492, %cst_71 {dimension_numbers = #tpu.dot_dimension_numbers<[1], [0], [0], [1], [0, 0, 1, 1], [], []>} : vector<8x8xf32>, vector<8x128xf32>, vector<8x128xf32> -> vector<8x128xf32>
    %502 = vector.shape_cast %501 : vector<8x128xf32> to vector<1x8x128xf32>
    %503 = vector.broadcast %502 : vector<1x8x128xf32> to vector<8x8x128xf32>
    %504 = arith.mulf %472, %503 : vector<8x8x128xf32>
    %cst_72 = arith.constant dense<0.000000e+00> : vector<8x128xf32>
    %505 = vector.multi_reduction <add>, %504, %cst_72 [1] : vector<8x8x128xf32> to vector<8x128xf32>
    %506 = vector.shape_cast %492 : vector<8x128xf32> to vector<1x8x128xf32>
    %507 = vector.broadcast %506 : vector<1x8x128xf32> to vector<8x8x128xf32>
    %508 = arith.mulf %472, %507 : vector<8x8x128xf32>
    %cst_73 = arith.constant dense<0.000000e+00> : vector<8x128xf32>
    %509 = vector.multi_reduction <add>, %508, %cst_73 [1] : vector<8x8x128xf32> to vector<8x128xf32>
    %510 = arith.mulf %494, %501 : vector<8x128xf32>
    %cst_74 = arith.constant dense<0.000000e+00> : vector<128xf32>
    %511 = vector.multi_reduction <add>, %510, %cst_74 [0] : vector<8x128xf32> to vector<128xf32>
    %512 = vector.shape_cast %511 : vector<128xf32> to vector<1x128xf32>
    %513 = arith.mulf %494, %492 : vector<8x128xf32>
    %cst_75 = arith.constant dense<0.000000e+00> : vector<128xf32>
    %514 = vector.multi_reduction <add>, %513, %cst_75 [0] : vector<8x128xf32> to vector<128xf32>
    %515 = vector.shape_cast %514 : vector<128xf32> to vector<1x128xf32>
    %516 = vector.broadcast %486 : vector<8x1xf32> to vector<8x128xf32>
    %517 = arith.mulf %516, %505 : vector<8x128xf32>
    %518 = arith.mulf %512, %498 : vector<1x128xf32>
    %519 = vector.broadcast %518 : vector<1x128xf32> to vector<8x128xf32>
    %520 = arith.mulf %494, %519 : vector<8x128xf32>
    %521 = arith.subf %517, %520 : vector<8x128xf32>
    %522 = vector.broadcast %486 : vector<8x1xf32> to vector<8x128xf32>
    %523 = arith.mulf %522, %509 : vector<8x128xf32>
    %524 = arith.mulf %515, %498 : vector<1x128xf32>
    %525 = vector.broadcast %524 : vector<1x128xf32> to vector<8x128xf32>
    %526 = arith.mulf %494, %525 : vector<8x128xf32>
    %527 = arith.subf %523, %526 : vector<8x128xf32>
    %528 = arith.mulf %501, %521 : vector<8x128xf32>
    %cst_76 = arith.constant dense<0.000000e+00> : vector<128xf32>
    %529 = vector.multi_reduction <add>, %528, %cst_76 [0] : vector<8x128xf32> to vector<128xf32>
    %530 = vector.shape_cast %529 : vector<128xf32> to vector<1x128xf32>
    %531 = arith.mulf %492, %527 : vector<8x128xf32>
    %cst_77 = arith.constant dense<0.000000e+00> : vector<128xf32>
    %532 = vector.multi_reduction <add>, %531, %cst_77 [0] : vector<8x128xf32> to vector<128xf32>
    %533 = vector.shape_cast %532 : vector<128xf32> to vector<1x128xf32>
    %534 = arith.subf %495, %533 : vector<1x128xf32>
    %535 = arith.addf %534, %530 : vector<1x128xf32>
    %536 = arith.subf %501, %492 : vector<8x128xf32>
    %537 = arith.subf %535, %495 : vector<1x128xf32>
    %538 = vector.broadcast %537 : vector<1x128xf32> to vector<8x128xf32>
    %539 = vector.broadcast %484 : vector<8x1xf32> to vector<8x128xf32>
    %540 = arith.mulf %538, %539 : vector<8x128xf32>
    %541 = arith.addf %536, %540 : vector<8x128xf32>
    %542 = vector.shape_cast %541 : vector<8x128xf32> to vector<8x1x128xf32>
    %543 = vector.broadcast %480 : vector<1x8x1xf32> to vector<8x8x128xf32>
    %544 = vector.broadcast %542 : vector<8x1x128xf32> to vector<8x8x128xf32>
    %545 = arith.mulf %543, %544 : vector<8x8x128xf32>
    %546 = arith.addf %434, %545 : vector<8x8x128xf32>
    %547 = vector.shape_cast %536 : vector<8x128xf32> to vector<1x8x128xf32>
    %548 = vector.broadcast %476 : vector<8x1x1xf32> to vector<8x8x128xf32>
    %549 = vector.broadcast %547 : vector<1x8x128xf32> to vector<8x8x128xf32>
    %550 = arith.mulf %548, %549 : vector<8x8x128xf32>
    %551 = arith.addf %546, %550 : vector<8x8x128xf32>
    %c0_78 = arith.constant 0 : index
    %c0_79 = arith.constant 0 : index
    %c0_80 = arith.constant 0 : index
    %552 = vector.load %arg4[%c0_78, %c0_79, %c0_80] : memref<8x8x128xf32, #tpu.memory_space<vmem>>, vector<8x8x128xf32>
    tpu.vector_store %arg4[%c0_78, %c0_79, %c0_80], %551 {strides = array<i32>} : memref<8x8x128xf32, #tpu.memory_space<vmem>>, vector<8x8x128xf32>,
    return
  }
  func.func @transform_0(%arg0: i32) -> (i32, i32, i32) {
    %c0_i32 = arith.constant 0 : i32
    %c0_i32_0 = arith.constant 0 : i32
    %c0_i32_1 = arith.constant 0 : i32
    %c0_i32_2 = arith.constant 0 : i32
    return %c0_i32, %c0_i32_0, %c0_i32_1 : i32, i32, i32
  }
  func.func @transform_1(%arg0: i32) -> (i32, i32, i32) {
    %c0_i32 = arith.constant 0 : i32
    %c0_i32_0 = arith.constant 0 : i32
    %c0_i32_1 = arith.constant 0 : i32
    return %c0_i32, %c0_i32_0, %arg0 : i32, i32, i32
  }
  func.func @transform_2(%arg0: i32) -> (i32, i32, i32) {
    %c0_i32 = arith.constant 0 : i32
    %c0_i32_0 = arith.constant 0 : i32
    %c0_i32_1 = arith.constant 0 : i32
    return %c0_i32, %c0_i32_0, %arg0 : i32, i32, i32
  }
  func.func @transform_3(%arg0: i32) -> (i32, i32, i32) {
    %c0_i32 = arith.constant 0 : i32
    %c0_i32_0 = arith.constant 0 : i32
    %c0_i32_1 = arith.constant 0 : i32
    return %c0_i32, %c0_i32_0, %arg0 : i32, i32, i32
  }
}

</mosaic_0001>

<llo_original>
// kernel: tpu_custom_call.1
$region0: #{tpu_custom_call.1}
  #allocation0 [shape = 'u32[]', space=smem, size = 0x4, offset = 0x4, fixed_abs, tag = 'smem constant byte address 0x4 - core index']
  #allocation1 [shape = 'u32[144,128]{1,0:T(1,128)}', space=vmem, size = 0x12000, scoped, tag = 'internal scratch']
  %s0 = inlined_call_operand.hbm [shape: f32[5,8,8], index: 0, kind: input, shape index: {}]
  %s1 = inlined_call_operand.hbm [shape: f32[8,8,128], index: 1, kind: input, shape index: {}]
  %s2 = inlined_call_operand.hbm [shape: f32[8,8,128], index: 2, kind: input, shape index: {}]
  %s3 = inlined_call_operand.hbm [shape: f32[8,8,128], index: 3, kind: output, shape index: {}]
  %s4 = sld [smem:[#allocation0]]
  $region34: #{tpu_custom_call.1} parent=0
    _
  %s6 = ssub.s32 1, %s4
  %s7 = scalar_select 0, %s6, %s4
  $region1: #{tpu_custom_call.1} parent=0
    #allocation2 [shape = 'u8[20480]{0}', space=vmem, size = 0x5000, scoped, tag = 'input window, operand 0, single buffered']
    #allocation3 [shape = 's32[1]{0}', space=sflag, size = 0x4, scoped, tag = 'scoped memory for tpu_custom_call.1']
    #allocation4 [shape = 's32[1]{0}', space=sflag, size = 0x4, scoped, tag = 'scoped memory for tpu_custom_call.1']
    #allocation5 [shape = 'u8[32768]{0}', space=vmem, size = 0x8000, scoped, tag = 'input window, operand 1, single buffered']
    #allocation6 [shape = 's32[1]{0}', space=sflag, size = 0x4, scoped, tag = 'scoped memory for tpu_custom_call.1']
    #allocation7 [shape = 'u8[32768]{0}', space=vmem, size = 0x8000, scoped, tag = 'input window, operand 2, single buffered']
    #allocation8 [shape = 'u8[32768]{0}', space=vmem, size = 0x8000, scoped, tag = 'output window, operand 0, single buffered']
    %8 = vsyncpa [#allocation3], 0
    %9 = vsyncpa [#allocation6], 0
    %10 = vsyncpa [#allocation4], 0
    // Predicated region
    $region2: #{tpu_custom_call.1} parent=1 // pred_check
      _
    $region3: #{tpu_custom_call.1} parent=1 // pred_check_branch
      %12 = sbr.rel (0) target = $region5
    $region4: #{tpu_custom_call.1} parent=1 // pred_region
      %s14 = ssub.s32 640, 640
      %15 = vsyncadd [#allocation3], %s14
      %s16 = sshll.u32 [#allocation2], 4
      %s17 = int_to_ptr.vmem [resolvable:$true] %s16
      %22 = dma.hbm_to_vmem [thread:$0]  %s0, 640, %s17, [#allocation3], 128, 128, 8
    $region5: #{tpu_custom_call.1} parent=1 // pred_fallthru
      _
    // Predicated region
    $region6: #{tpu_custom_call.1} parent=1 // pred_check
      _
    $region7: #{tpu_custom_call.1} parent=1 // pred_check_branch
      %24 = sbr.rel (0) target = $region9
    $region8: #{tpu_custom_call.1} parent=1 // pred_region
      %s26 = ssub.s32 1024, 1024
      %27 = vsyncadd [#allocation6], %s26
      %s28 = sshll.u32 [#allocation5], 4
      %s29 = int_to_ptr.vmem [resolvable:$true] %s28
      %34 = dma.hbm_to_vmem [thread:$0]  %s1, 1024, %s29, [#allocation6], 128, 128, 8
    $region9: #{tpu_custom_call.1} parent=1 // pred_fallthru
      _
    // Predicated region
    $region10: #{tpu_custom_call.1} parent=1 // pred_check
      _
    $region11: #{tpu_custom_call.1} parent=1 // pred_check_branch
      %36 = sbr.rel (0) target = $region13
    $region12: #{tpu_custom_call.1} parent=1 // pred_region
      %s38 = ssub.s32 1024, 1024
      %39 = vsyncadd [#allocation6], %s38
      %s40 = sshll.u32 [#allocation7], 4
      %s41 = int_to_ptr.vmem [resolvable:$true] %s40
      %46 = dma.hbm_to_vmem [thread:$0]  %s2, 1024, %s41, [#allocation6], 128, 128, 8
    $region13: #{tpu_custom_call.1} parent=1 // pred_fallthru
      _
    // Predicated region
    $region14: #{tpu_custom_call.1} parent=1 // pred_check
      _
    $region15: #{tpu_custom_call.1} parent=1 // pred_check_branch
      %48 = sbr.rel (0) target = $region17
    $region16: #{tpu_custom_call.1} parent=1 // pred_region
      %49 = dma.done [#allocation3], 640
    $region17: #{tpu_custom_call.1} parent=1 // pred_fallthru
      _
    // Predicated region
    $region18: #{tpu_custom_call.1} parent=1 // pred_check
      _
    $region19: #{tpu_custom_call.1} parent=1 // pred_check_branch
      %51 = sbr.rel (0) target = $region21
    $region20: #{tpu_custom_call.1} parent=1 // pred_region
      %52 = dma.done [#allocation6], 1024
    $region21: #{tpu_custom_call.1} parent=1 // pred_fallthru
      _
    // Predicated region
    $region22: #{tpu_custom_call.1} parent=1 // pred_check
      _
    $region23: #{tpu_custom_call.1} parent=1 // pred_check_branch
      %54 = sbr.rel (0) target = $region25
    $region24: #{tpu_custom_call.1} parent=1 // pred_region
      %55 = dma.done [#allocation6], 1024
    $region25: #{tpu_custom_call.1} parent=1 // pred_fallthru
      _
    %v56 = vld [vmem:[#allocation5] sm:$0xff]
    %v57 = vld [vmem:[#allocation5 + $0x8] sm:$0xff]
    %v58 = vld [vmem:[#allocation5 + $0x10] sm:$0xff]
    %v59 = vld [vmem:[#allocation5 + $0x18] sm:$0xff]
    %v60 = vld [vmem:[#allocation5 + $0x20] sm:$0xff]
    %v61 = vld [vmem:[#allocation5 + $0x28] sm:$0xff]
    %v62 = vld [vmem:[#allocation5 + $0x30] sm:$0xff]
    %v63 = vld [vmem:[#allocation5 + $0x38] sm:$0xff]
    %v64 = vld [vmem:[#allocation7] sm:$0xff]
    %v65 = vld [vmem:[#allocation7 + $0x8] sm:$0xff]
    %v66 = vld [vmem:[#allocation7 + $0x10] sm:$0xff]
    %v67 = vld [vmem:[#allocation7 + $0x18] sm:$0xff]
    %v68 = vld [vmem:[#allocation7 + $0x20] sm:$0xff]
    %v69 = vld [vmem:[#allocation7 + $0x28] sm:$0xff]
    %v70 = vld [vmem:[#allocation7 + $0x30] sm:$0xff]
    %v71 = vld [vmem:[#allocation7 + $0x38] sm:$0xff]
    %v72 = vlaneseq
    %v73 = vshrl.u32 %v72, 7
    %v74 = vcvt.s32.f32 1
    %v75 = vcvt.s32.f32 0
    %vm76 = vcmp.eq.s32.totalorder %v73, 0
    %v77 = vsel %vm76, 1, 0
    %v78 = vcvt.s32.f32 %v77
    %v79 = vsub.f32 1.0, %v78
    %v80 = vmul.f32 %v56, %v79
    %v81 = vmul.f32 %v64, %v79
    %v82 = vrcp.pop %v64
    %v83 = vmul.f32 1.0, %v82
    %v84 = vld [vmem:[#allocation2] sm:$0xff]
    %vm85 = vcmask 64512
    %v87 = vsel %vm85, %v84, 0
    %89 = vmatprep.subr.mxu0 0.0
    %90 = vmatpush1.msra.mxu0 %v80
    %91 = vmatprep.subr.mxu0 0.0
    %92 = vmatpush1.msra.mxu0 0.0
    %93 = vmatprep.subr.mxu0 0.0
    %94 = vmatpush1.msra.mxu0 0.0
    %95 = vmatprep.subr.mxu0 0.0
    %96 = vmatpush1.msra.mxu0 0.0
    %97 = vmatprep.subr.mxu0 0.0
    %98 = vmatpush1.msra.mxu0 0.0
    %99 = vmatprep.subr.mxu0 0.0
    %100 = vmatpush1.msra.mxu0 0.0
    %101 = vmatprep.subr.mxu0 0.0
    %102 = vmatpush1.msra.mxu0 0.0
    %103 = vmatprep.subr.mxu0 0.0
    %104 = vmatpush1.msra.mxu0 0.0
    %105 = vmatprep.subr.mxu0 0.0
    %106 = vmatpush1.msra.mxu0 0.0
    %107 = vmatprep.subr.mxu0 0.0
    %108 = vmatpush1.msra.mxu0 0.0
    %109 = vmatprep.subr.mxu0 0.0
    %110 = vmatpush1.msra.mxu0 0.0
    %111 = vmatprep.subr.mxu0 0.0
    %112 = vmatpush1.msra.mxu0 0.0
    %113 = vmatprep.subr.mxu0 0.0
    %114 = vmatpush1.msra.mxu0 0.0
    %115 = vmatprep.subr.mxu0 0.0
    %116 = vmatpush1.msra.mxu0 0.0
    %117 = vmatprep.subr.mxu0 0.0
    %118 = vmatpush1.msra.mxu0 0.0
    %119 = vmatprep.subr.mxu0 0.0
    %120 = vmatpush1.msra.mxu0 0.0
    %121 = vmatprep.subr.mxu0 0.0
    %122 = vmatpush1.msra.mxu0 0.0
    %123 = vmatprep.subr.mxu0 0.0
    %124 = vmatpush1.msra.mxu0 0.0
    %125 = vmatprep.subr.mxu0 0.0
    %126 = vmatpush1.msra.mxu0 0.0
    %127 = vmatprep.subr.mxu0 0.0
    %128 = vmatpush1.msra.mxu0 0.0
    %129 = vmatprep.subr.mxu0 0.0
    %130 = vmatpush1.msra.mxu0 0.0
    %131 = vmatprep.subr.mxu0 0.0
    %132 = vmatpush1.msra.mxu0 0.0
    %133 = vmatprep.subr.mxu0 0.0
    %134 = vmatpush1.msra.mxu0 0.0
    %135 = vmatprep.subr.mxu0 0.0
    %136 = vmatpush1.msra.mxu0 0.0
    %137 = vmatprep.subr.mxu0 0.0
    %138 = vmatpush1.msra.mxu0 0.0
    %139 = vmatprep.subr.mxu0 0.0
    %140 = vmatpush1.msra.mxu0 0.0
    %141 = vmatprep.subr.mxu0 0.0
    %142 = vmatpush1.msra.mxu0 0.0
    %143 = vmatprep.subr.mxu0 0.0
    %144 = vmatpush1.msra.mxu0 0.0
    %145 = vmatprep.subr.mxu0 0.0
    %146 = vmatpush1.msra.mxu0 0.0
    %147 = vmatprep.subr.mxu0 0.0
    %148 = vmatpush1.msra.mxu0 0.0
    %149 = vmatprep.subr.mxu0 0.0
    %150 = vmatpush1.msra.mxu0 0.0
    %151 = vmatprep.subr.mxu0 0.0
    %152 = vmatpush1.msra.mxu0 0.0
    %153 = vmatprep.mubr.f32.mxu0 0.0
    %154 = vmatmul.mubr.f32.gmra.mrb[0].mxu0 %v87
    %v155 = vpop.f32.mrb[0].mxu0
    %v156 = vadd.f32 0.0, %v155
    %v157 = vpop.f32.mrb[0].mxu0
    %158 = vdwg.mxu0
    %v159 = vmul.f32 %v64, %v156
    %v160 = vmul.f32 %v65, %v156
    %v161 = vmul.f32 %v66, %v156
    %v162 = vmul.f32 %v67, %v156
    %v163 = vmul.f32 %v68, %v156
    %v164 = vmul.f32 %v69, %v156
    %v165 = vmul.f32 %v70, %v156
    %v166 = vmul.f32 %v71, %v156
    %v167 = vrot.slane %v159, 4
    %v168 = vadd.f32 %v159, %v167
    %v169 = vrot.slane %v168, 2
    %v170 = vadd.f32 %v168, %v169
    %v171 = vrot.slane %v170, 1
    %v172 = vadd.f32 %v170, %v171
    %v173 = vrot.slane %v160, 4
    %v174 = vadd.f32 %v160, %v173
    %v175 = vrot.slane %v174, 2
    %v176 = vadd.f32 %v174, %v175
    %v177 = vrot.slane %v176, 1
    %v178 = vadd.f32 %v176, %v177
    %v179 = vrot.slane %v161, 4
    %v180 = vadd.f32 %v161, %v179
    %v181 = vrot.slane %v180, 2
    %v182 = vadd.f32 %v180, %v181
    %v183 = vrot.slane %v182, 1
    %v184 = vadd.f32 %v182, %v183
    %v185 = vrot.slane %v162, 4
    %v186 = vadd.f32 %v162, %v185
    %v187 = vrot.slane %v186, 2
    %v188 = vadd.f32 %v186, %v187
    %v189 = vrot.slane %v188, 1
    %v190 = vadd.f32 %v188, %v189
    %v191 = vrot.slane %v163, 4
    %v192 = vadd.f32 %v163, %v191
    %v193 = vrot.slane %v192, 2
    %v194 = vadd.f32 %v192, %v193
    %v195 = vrot.slane %v194, 1
    %v196 = vadd.f32 %v194, %v195
    %v197 = vrot.slane %v164, 4
    %v198 = vadd.f32 %v164, %v197
    %v199 = vrot.slane %v198, 2
    %v200 = vadd.f32 %v198, %v199
    %v201 = vrot.slane %v200, 1
    %v202 = vadd.f32 %v200, %v201
    %v203 = vrot.slane %v165, 4
    %v204 = vadd.f32 %v165, %v203
    %v205 = vrot.slane %v204, 2
    %v206 = vadd.f32 %v204, %v205
    %v207 = vrot.slane %v206, 1
    %v208 = vadd.f32 %v206, %v207
    %v209 = vrot.slane %v166, 4
    %v210 = vadd.f32 %v166, %v209
    %v211 = vrot.slane %v210, 2
    %v212 = vadd.f32 %v210, %v211
    %v213 = vrot.slane %v212, 1
    %v214 = vadd.f32 %v212, %v213
    %v215 = vmul.f32 %v64, %v80
    %v216 = vmul.f32 %v65, %v80
    %v217 = vmul.f32 %v66, %v80
    %v218 = vmul.f32 %v67, %v80
    %v219 = vmul.f32 %v68, %v80
    %v220 = vmul.f32 %v69, %v80
    %v221 = vmul.f32 %v70, %v80
    %v222 = vmul.f32 %v71, %v80
    %v223 = vrot.slane %v215, 4
    %v224 = vadd.f32 %v215, %v223
    %v225 = vrot.slane %v224, 2
    %v226 = vadd.f32 %v224, %v225
    %v227 = vrot.slane %v226, 1
    %v228 = vadd.f32 %v226, %v227
    %v229 = vrot.slane %v216, 4
    %v230 = vadd.f32 %v216, %v229
    %v231 = vrot.slane %v230, 2
    %v232 = vadd.f32 %v230, %v231
    %v233 = vrot.slane %v232, 1
    %v234 = vadd.f32 %v232, %v233
    %v235 = vrot.slane %v217, 4
    %v236 = vadd.f32 %v217, %v235
    %v237 = vrot.slane %v236, 2
    %v238 = vadd.f32 %v236, %v237
    %v239 = vrot.slane %v238, 1
    %v240 = vadd.f32 %v238, %v239
    %v241 = vrot.slane %v218, 4
    %v242 = vadd.f32 %v218, %v241
    %v243 = vrot.slane %v242, 2
    %v244 = vadd.f32 %v242, %v243
    %v245 = vrot.slane %v244, 1
    %v246 = vadd.f32 %v244, %v245
    %v247 = vrot.slane %v219, 4
    %v248 = vadd.f32 %v219, %v247
    %v249 = vrot.slane %v248, 2
    %v250 = vadd.f32 %v248, %v249
    %v251 = vrot.slane %v250, 1
    %v252 = vadd.f32 %v250, %v251
    %v253 = vrot.slane %v220, 4
    %v254 = vadd.f32 %v220, %v253
    %v255 = vrot.slane %v254, 2
    %v256 = vadd.f32 %v254, %v255
    %v257 = vrot.slane %v256, 1
    %v258 = vadd.f32 %v256, %v257
    %v259 = vrot.slane %v221, 4
    %v260 = vadd.f32 %v221, %v259
    %v261 = vrot.slane %v260, 2
    %v262 = vadd.f32 %v260, %v261
    %v263 = vrot.slane %v262, 1
    %v264 = vadd.f32 %v262, %v263
    %v265 = vrot.slane %v222, 4
    %v266 = vadd.f32 %v222, %v265
    %v267 = vrot.slane %v266, 2
    %v268 = vadd.f32 %v266, %v267
    %v269 = vrot.slane %v268, 1
    %v270 = vadd.f32 %v268, %v269
    %v271 = vmul.f32 %v81, %v156
    %v272 = vrot.slane %v271, 4
    %v273 = vadd.f32 %v271, %v272
    %v274 = vrot.slane %v273, 2
    %v275 = vadd.f32 %v273, %v274
    %v276 = vrot.slane %v275, 1
    %v277 = vadd.f32 %v275, %v276
    %v278 = vmul.f32 %v81, %v80
    %v279 = vrot.slane %v278, 4
    %v280 = vadd.f32 %v278, %v279
    %v281 = vrot.slane %v280, 2
    %v282 = vadd.f32 %v280, %v281
    %v283 = vrot.slane %v282, 1
    %v284 = vadd.f32 %v282, %v283
    %vm293 = vcmask 1041409
    %v294 = vsel %vm293, %v178, %v172
    %vm295 = vcmask 1042434
    %v296 = vsel %vm295, %v184, %v294
    %vm297 = vcmask 1043459
    %v298 = vsel %vm297, %v190, %v296
    %vm299 = vcmask 1044484
    %v300 = vsel %vm299, %v196, %v298
    %vm301 = vcmask 1045509
    %v302 = vsel %vm301, %v202, %v300
    %vm303 = vcmask 1046534
    %v304 = vsel %vm303, %v208, %v302
    %vm305 = vcmask 1047559
    %v306 = vsel %vm305, %v214, %v304
    %v308 = vmul.f32 %v79, %v306
    %v309 = vmul.f32 %v277, %v83
    %v310 = vlaneseq
    %v311 = vshrl.u32 %v310, 7
    %v312 = vsub.s32 0, %v311
    %v313 = vrot.slane %v309, %v312
    %v314 = vmul.f32 %v81, %v313
    %v315 = vsub.f32 %v308, %v314
    %v324 = vsel %vm293, %v234, %v228
    %v325 = vsel %vm295, %v240, %v324
    %v326 = vsel %vm297, %v246, %v325
    %v327 = vsel %vm299, %v252, %v326
    %v328 = vsel %vm301, %v258, %v327
    %v329 = vsel %vm303, %v264, %v328
    %v330 = vsel %vm305, %v270, %v329
    %v332 = vmul.f32 %v79, %v330
    %v333 = vmul.f32 %v284, %v83
    %v334 = vlaneseq
    %v335 = vshrl.u32 %v334, 7
    %v336 = vsub.s32 0, %v335
    %v337 = vrot.slane %v333, %v336
    %v338 = vmul.f32 %v81, %v337
    %v339 = vsub.f32 %v332, %v338
    %v340 = vmul.f32 %v156, %v315
    %v341 = vrot.slane %v340, 4
    %v342 = vadd.f32 %v340, %v341
    %v343 = vrot.slane %v342, 2
    %v344 = vadd.f32 %v342, %v343
    %v345 = vrot.slane %v344, 1
    %v346 = vadd.f32 %v344, %v345
    %v347 = vmul.f32 %v80, %v339
    %v348 = vrot.slane %v347, 4
    %v349 = vadd.f32 %v347, %v348
    %v350 = vrot.slane %v349, 2
    %v351 = vadd.f32 %v349, %v350
    %v352 = vrot.slane %v351, 1
    %v353 = vadd.f32 %v351, %v352
    %v354 = vsub.f32 %v56, %v353
    %v355 = vadd.f32 %v354, %v346
    %v356 = vsub.f32 %v156, %v80
    %v357 = vsub.f32 %v355, %v56
    %v358 = vlaneseq
    %v359 = vshrl.u32 %v358, 7
    %v360 = vsub.s32 0, %v359
    %v361 = vrot.slane %v357, %v360
    %v362 = vmul.f32 %v361, %v78
    %v363 = vadd.f32 %v356, %v362
    %v365 = vcombine.high %v363, %v363
    %v367 = vunpack.c.l.s4 1966171168
    %v368 = vunpack.c.0.s8 %v367
    %v369 = vlaneseq
    %v370 = vshrl.u32 %v369, 7
    %v371 = vsub.s32 %v368, %v370
    %v372 = vrot.slane %v363, %v371
    %v374 = vunpack.c.l.s4 1966171168
    %v375 = vunpack.c.0.s8 %v374
    %v376 = vlaneseq
    %v377 = vshrl.u32 %v376, 7
    %v378 = vsub.s32 %v375, %v377
    %v379 = vrot.slane %v365, %v378
    %v380 = vcombine.high %v372, %v372
    %v381 = vcombine.high %v379, %v379
    %v383 = vunpack.c.l.s4 1966171168
    %v384 = vunpack.c.0.s8 %v383
    %v385 = vlaneseq
    %v386 = vshrl.u32 %v385, 7
    %v387 = vsub.s32 %v384, %v386
    %v388 = vrot.slane %v372, %v387
    %v390 = vunpack.c.l.s4 1966171168
    %v391 = vunpack.c.0.s8 %v390
    %v392 = vlaneseq
    %v393 = vshrl.u32 %v392, 7
    %v394 = vsub.s32 %v391, %v393
    %v395 = vrot.slane %v379, %v394
    %v397 = vunpack.c.l.s4 1966171168
    %v398 = vunpack.c.0.s8 %v397
    %v399 = vlaneseq
    %v400 = vshrl.u32 %v399, 7
    %v401 = vsub.s32 %v398, %v400
    %v402 = vrot.slane %v380, %v401
    %v404 = vunpack.c.l.s4 1966171168
    %v405 = vunpack.c.0.s8 %v404
    %v406 = vlaneseq
    %v407 = vshrl.u32 %v406, 7
    %v408 = vsub.s32 %v405, %v407
    %v409 = vrot.slane %v381, %v408
    %v410 = vcombine.high %v388, %v388
    %v411 = vcombine.high %v395, %v395
    %v412 = vcombine.high %v402, %v402
    %v413 = vcombine.high %v409, %v409
    %v414 = vlaneseq
    %v415 = vshrl.u32 %v414, 7
    %v416 = vsub.s32 0, %v415
    %v417 = vrot.slane %v388, %v416
    %v418 = vlaneseq
    %v419 = vshrl.u32 %v418, 7
    %v420 = vsub.s32 0, %v419
    %v421 = vrot.slane %v402, %v420
    %v422 = vlaneseq
    %v423 = vshrl.u32 %v422, 7
    %v424 = vsub.s32 0, %v423
    %v425 = vrot.slane %v410, %v424
    %v426 = vlaneseq
    %v427 = vshrl.u32 %v426, 7
    %v428 = vsub.s32 0, %v427
    %v429 = vrot.slane %v412, %v428
    %v430 = vlaneseq
    %v431 = vshrl.u32 %v430, 7
    %v432 = vsub.s32 0, %v431
    %v433 = vrot.slane %v395, %v432
    %v434 = vlaneseq
    %v435 = vshrl.u32 %v434, 7
    %v436 = vsub.s32 0, %v435
    %v437 = vrot.slane %v409, %v436
    %v438 = vlaneseq
    %v439 = vshrl.u32 %v438, 7
    %v440 = vsub.s32 0, %v439
    %v441 = vrot.slane %v411, %v440
    %v442 = vlaneseq
    %v443 = vshrl.u32 %v442, 7
    %v444 = vsub.s32 0, %v443
    %v445 = vrot.slane %v413, %v444
    %v454 = vmul.f32 %v78, %v417
    %v455 = vmul.f32 %v78, %v421
    %v456 = vmul.f32 %v78, %v425
    %v457 = vmul.f32 %v78, %v429
    %v458 = vmul.f32 %v78, %v433
    %v459 = vmul.f32 %v78, %v437
    %v460 = vmul.f32 %v78, %v441
    %v461 = vmul.f32 %v78, %v445
    %v462 = vadd.f32 %v56, %v454
    %v463 = vadd.f32 %v57, %v455
    %v464 = vadd.f32 %v58, %v456
    %v465 = vadd.f32 %v59, %v457
    %v466 = vadd.f32 %v60, %v458
    %v467 = vadd.f32 %v61, %v459
    %v468 = vadd.f32 %v62, %v460
    %v469 = vadd.f32 %v63, %v461
    %v470 = vmul.f32 %v74, %v356
    %v471 = vmul.f32 %v75, %v356
    %v472 = vadd.f32 %v462, %v470
    %v473 = vadd.f32 %v463, %v471
    %v474 = vadd.f32 %v464, %v471
    %v475 = vadd.f32 %v465, %v471
    %v476 = vadd.f32 %v466, %v471
    %v477 = vadd.f32 %v467, %v471
    %v478 = vadd.f32 %v468, %v471
    %v479 = vadd.f32 %v469, %v471
    %v480 = vrcp.pop %v354
    %v481 = vmul.f32 1.0, %v480
    %v482 = vsub.f32 0.0, %v481
    %v483 = vlaneseq
    %v484 = vshrl.u32 %v483, 7
    %v485 = vsub.s32 0, %v484
    %v486 = vrot.slane %v482, %v485
    %v487 = vmul.f32 %v486, %v315
    %v488 = vlaneseq
    %v489 = vshrl.u32 %v488, 7
    %v490 = vsub.s32 0, %v489
    %v491 = vrot.slane %v83, %v490
    %v492 = vmul.f32 %v81, %v491
    %v494 = vcombine.high %v492, %v492
    %v496 = vunpack.c.l.s4 1966171168
    %v497 = vunpack.c.0.s8 %v496
    %v498 = vlaneseq
    %v499 = vshrl.u32 %v498, 7
    %v500 = vsub.s32 %v497, %v499
    %v501 = vrot.slane %v492, %v500
    %v503 = vunpack.c.l.s4 1966171168
    %v504 = vunpack.c.0.s8 %v503
    %v505 = vlaneseq
    %v506 = vshrl.u32 %v505, 7
    %v507 = vsub.s32 %v504, %v506
    %v508 = vrot.slane %v494, %v507
    %v509 = vcombine.high %v501, %v501
    %v510 = vcombine.high %v508, %v508
    %v512 = vunpack.c.l.s4 1966171168
    %v513 = vunpack.c.0.s8 %v512
    %v514 = vlaneseq
    %v515 = vshrl.u32 %v514, 7
    %v516 = vsub.s32 %v513, %v515
    %v517 = vrot.slane %v501, %v516
    %v519 = vunpack.c.l.s4 1966171168
    %v520 = vunpack.c.0.s8 %v519
    %v521 = vlaneseq
    %v522 = vshrl.u32 %v521, 7
    %v523 = vsub.s32 %v520, %v522
    %v524 = vrot.slane %v508, %v523
    %v526 = vunpack.c.l.s4 1966171168
    %v527 = vunpack.c.0.s8 %v526
    %v528 = vlaneseq
    %v529 = vshrl.u32 %v528, 7
    %v530 = vsub.s32 %v527, %v529
    %v531 = vrot.slane %v509, %v530
    %v533 = vunpack.c.l.s4 1966171168
    %v534 = vunpack.c.0.s8 %v533
    %v535 = vlaneseq
    %v536 = vshrl.u32 %v535, 7
    %v537 = vsub.s32 %v534, %v536
    %v538 = vrot.slane %v510, %v537
    %v539 = vcombine.high %v517, %v517
    %v540 = vcombine.high %v524, %v524
    %v541 = vcombine.high %v531, %v531
    %v542 = vcombine.high %v538, %v538
    %v543 = vlaneseq
    %v544 = vshrl.u32 %v543, 7
    %v545 = vsub.s32 0, %v544
    %v546 = vrot.slane %v517, %v545
    %v547 = vlaneseq
    %v548 = vshrl.u32 %v547, 7
    %v549 = vsub.s32 0, %v548
    %v550 = vrot.slane %v531, %v549
    %v551 = vlaneseq
    %v552 = vshrl.u32 %v551, 7
    %v553 = vsub.s32 0, %v552
    %v554 = vrot.slane %v539, %v553
    %v555 = vlaneseq
    %v556 = vshrl.u32 %v555, 7
    %v557 = vsub.s32 0, %v556
    %v558 = vrot.slane %v541, %v557
    %v559 = vlaneseq
    %v560 = vshrl.u32 %v559, 7
    %v561 = vsub.s32 0, %v560
    %v562 = vrot.slane %v524, %v561
    %v563 = vlaneseq
    %v564 = vshrl.u32 %v563, 7
    %v565 = vsub.s32 0, %v564
    %v566 = vrot.slane %v538, %v565
    %v567 = vlaneseq
    %v568 = vshrl.u32 %v567, 7
    %v569 = vsub.s32 0, %v568
    %v570 = vrot.slane %v540, %v569
    %v571 = vlaneseq
    %v572 = vshrl.u32 %v571, 7
    %v573 = vsub.s32 0, %v572
    %v574 = vrot.slane %v542, %v573
    %v583 = vmul.f32 %v546, %v81
    %v584 = vmul.f32 %v550, %v81
    %v585 = vmul.f32 %v554, %v81
    %v586 = vmul.f32 %v558, %v81
    %v587 = vmul.f32 %v562, %v81
    %v588 = vmul.f32 %v566, %v81
    %v589 = vmul.f32 %v570, %v81
    %v590 = vmul.f32 %v574, %v81
    %v591 = vlaneseq
    %v592 = vshrl.u32 %v591, 7
    %v593 = vsub.s32 0, %v592
    %v594 = vrot.slane %v354, %v593
    %v595 = vmul.f32 %v594, %v487
    %v597 = vcombine.high %v595, %v595
    %v599 = vunpack.c.l.s4 1966171168
    %v600 = vunpack.c.0.s8 %v599
    %v601 = vlaneseq
    %v602 = vshrl.u32 %v601, 7
    %v603 = vsub.s32 %v600, %v602
    %v604 = vrot.slane %v595, %v603
    %v606 = vunpack.c.l.s4 1966171168
    %v607 = vunpack.c.0.s8 %v606
    %v608 = vlaneseq
    %v609 = vshrl.u32 %v608, 7
    %v610 = vsub.s32 %v607, %v609
    %v611 = vrot.slane %v597, %v610
    %v612 = vcombine.high %v604, %v604
    %v613 = vcombine.high %v611, %v611
    %v615 = vunpack.c.l.s4 1966171168
    %v616 = vunpack.c.0.s8 %v615
    %v617 = vlaneseq
    %v618 = vshrl.u32 %v617, 7
    %v619 = vsub.s32 %v616, %v618
    %v620 = vrot.slane %v604, %v619
    %v622 = vunpack.c.l.s4 1966171168
    %v623 = vunpack.c.0.s8 %v622
    %v624 = vlaneseq
    %v625 = vshrl.u32 %v624, 7
    %v626 = vsub.s32 %v623, %v625
    %v627 = vrot.slane %v611, %v626
    %v629 = vunpack.c.l.s4 1966171168
    %v630 = vunpack.c.0.s8 %v629
    %v631 = vlaneseq
    %v632 = vshrl.u32 %v631, 7
    %v633 = vsub.s32 %v630, %v632
    %v634 = vrot.slane %v612, %v633
    %v636 = vunpack.c.l.s4 1966171168
    %v637 = vunpack.c.0.s8 %v636
    %v638 = vlaneseq
    %v639 = vshrl.u32 %v638, 7
    %v640 = vsub.s32 %v637, %v639
    %v641 = vrot.slane %v613, %v640
    %v642 = vcombine.high %v620, %v620
    %v643 = vcombine.high %v627, %v627
    %v644 = vcombine.high %v634, %v634
    %v645 = vcombine.high %v641, %v641
    %v646 = vlaneseq
    %v647 = vshrl.u32 %v646, 7
    %v648 = vsub.s32 0, %v647
    %v649 = vrot.slane %v620, %v648
    %v650 = vlaneseq
    %v651 = vshrl.u32 %v650, 7
    %v652 = vsub.s32 0, %v651
    %v653 = vrot.slane %v634, %v652
    %v654 = vlaneseq
    %v655 = vshrl.u32 %v654, 7
    %v656 = vsub.s32 0, %v655
    %v657 = vrot.slane %v642, %v656
    %v658 = vlaneseq
    %v659 = vshrl.u32 %v658, 7
    %v660 = vsub.s32 0, %v659
    %v661 = vrot.slane %v644, %v660
    %v662 = vlaneseq
    %v663 = vshrl.u32 %v662, 7
    %v664 = vsub.s32 0, %v663
    %v665 = vrot.slane %v627, %v664
    %v666 = vlaneseq
    %v667 = vshrl.u32 %v666, 7
    %v668 = vsub.s32 0, %v667
    %v669 = vrot.slane %v641, %v668
    %v670 = vlaneseq
    %v671 = vshrl.u32 %v670, 7
    %v672 = vsub.s32 0, %v671
    %v673 = vrot.slane %v643, %v672
    %v674 = vlaneseq
    %v675 = vshrl.u32 %v674, 7
    %v676 = vsub.s32 0, %v675
    %v677 = vrot.slane %v645, %v676
    %v686 = vmul.f32 %v649, %v487
    %v687 = vmul.f32 %v653, %v487
    %v688 = vmul.f32 %v657, %v487
    %v689 = vmul.f32 %v661, %v487
    %v690 = vmul.f32 %v665, %v487
    %v691 = vmul.f32 %v669, %v487
    %v692 = vmul.f32 %v673, %v487
    %v693 = vmul.f32 %v677, %v487
    %v694 = vsub.f32 %v583, %v686
    %v695 = vsub.f32 %v584, %v687
    %v696 = vsub.f32 %v585, %v688
    %v697 = vsub.f32 %v586, %v689
    %v698 = vsub.f32 %v587, %v690
    %v699 = vsub.f32 %v588, %v691
    %v700 = vsub.f32 %v589, %v692
    %v701 = vsub.f32 %v590, %v693
    %v702 = vsub.f32 %v81, %v487
    %v703 = vsub.f32 %v64, %v481
    %v704 = vlaneseq
    %v705 = vshrl.u32 %v704, 7
    %v706 = vsub.s32 0, %v705
    %v707 = vrot.slane %v703, %v706
    %v708 = vmul.f32 %v707, %v78
    %v709 = vadd.f32 %v702, %v708
    %v710 = vadd.f32 %v64, %v694
    %v711 = vadd.f32 %v65, %v695
    %v712 = vadd.f32 %v66, %v696
    %v713 = vadd.f32 %v67, %v697
    %v714 = vadd.f32 %v68, %v698
    %v715 = vadd.f32 %v69, %v699
    %v716 = vadd.f32 %v70, %v700
    %v717 = vadd.f32 %v71, %v701
    %v719 = vcombine.high %v709, %v709
    %v721 = vunpack.c.l.s4 1966171168
    %v722 = vunpack.c.0.s8 %v721
    %v723 = vlaneseq
    %v724 = vshrl.u32 %v723, 7
    %v725 = vsub.s32 %v722, %v724
    %v726 = vrot.slane %v709, %v725
    %v728 = vunpack.c.l.s4 1966171168
    %v729 = vunpack.c.0.s8 %v728
    %v730 = vlaneseq
    %v731 = vshrl.u32 %v730, 7
    %v732 = vsub.s32 %v729, %v731
    %v733 = vrot.slane %v719, %v732
    %v734 = vcombine.high %v726, %v726
    %v735 = vcombine.high %v733, %v733
    %v737 = vunpack.c.l.s4 1966171168
    %v738 = vunpack.c.0.s8 %v737
    %v739 = vlaneseq
    %v740 = vshrl.u32 %v739, 7
    %v741 = vsub.s32 %v738, %v740
    %v742 = vrot.slane %v726, %v741
    %v744 = vunpack.c.l.s4 1966171168
    %v745 = vunpack.c.0.s8 %v744
    %v746 = vlaneseq
    %v747 = vshrl.u32 %v746, 7
    %v748 = vsub.s32 %v745, %v747
    %v749 = vrot.slane %v733, %v748
    %v751 = vunpack.c.l.s4 1966171168
    %v752 = vunpack.c.0.s8 %v751
    %v753 = vlaneseq
    %v754 = vshrl.u32 %v753, 7
    %v755 = vsub.s32 %v752, %v754
    %v756 = vrot.slane %v734, %v755
    %v758 = vunpack.c.l.s4 1966171168
    %v759 = vunpack.c.0.s8 %v758
    %v760 = vlaneseq
    %v761 = vshrl.u32 %v760, 7
    %v762 = vsub.s32 %v759, %v761
    %v763 = vrot.slane %v735, %v762
    %v764 = vcombine.high %v742, %v742
    %v765 = vcombine.high %v749, %v749
    %v766 = vcombine.high %v756, %v756
    %v767 = vcombine.high %v763, %v763
    %v768 = vlaneseq
    %v769 = vshrl.u32 %v768, 7
    %v770 = vsub.s32 0, %v769
    %v771 = vrot.slane %v742, %v770
    %v772 = vlaneseq
    %v773 = vshrl.u32 %v772, 7
    %v774 = vsub.s32 0, %v773
    %v775 = vrot.slane %v756, %v774
    %v776 = vlaneseq
    %v777 = vshrl.u32 %v776, 7
    %v778 = vsub.s32 0, %v777
    %v779 = vrot.slane %v764, %v778
    %v780 = vlaneseq
    %v781 = vshrl.u32 %v780, 7
    %v782 = vsub.s32 0, %v781
    %v783 = vrot.slane %v766, %v782
    %v784 = vlaneseq
    %v785 = vshrl.u32 %v784, 7
    %v786 = vsub.s32 0, %v785
    %v787 = vrot.slane %v749, %v786
    %v788 = vlaneseq
    %v789 = vshrl.u32 %v788, 7
    %v790 = vsub.s32 0, %v789
    %v791 = vrot.slane %v763, %v790
    %v792 = vlaneseq
    %v793 = vshrl.u32 %v792, 7
    %v794 = vsub.s32 0, %v793
    %v795 = vrot.slane %v765, %v794
    %v796 = vlaneseq
    %v797 = vshrl.u32 %v796, 7
    %v798 = vsub.s32 0, %v797
    %v799 = vrot.slane %v767, %v798
    %v808 = vmul.f32 %v78, %v771
    %v809 = vmul.f32 %v78, %v775
    %v810 = vmul.f32 %v78, %v779
    %v811 = vmul.f32 %v78, %v783
    %v812 = vmul.f32 %v78, %v787
    %v813 = vmul.f32 %v78, %v791
    %v814 = vmul.f32 %v78, %v795
    %v815 = vmul.f32 %v78, %v799
    %v816 = vadd.f32 %v710, %v808
    %v817 = vadd.f32 %v711, %v809
    %v818 = vadd.f32 %v712, %v810
    %v819 = vadd.f32 %v713, %v811
    %v820 = vadd.f32 %v714, %v812
    %v821 = vadd.f32 %v715, %v813
    %v822 = vadd.f32 %v716, %v814
    %v823 = vadd.f32 %v717, %v815
    %v824 = vmul.f32 %v74, %v702
    %v825 = vmul.f32 %v75, %v702
    %v826 = vadd.f32 %v816, %v824
    %v827 = vadd.f32 %v817, %v825
    %v828 = vadd.f32 %v818, %v825
    %v829 = vadd.f32 %v819, %v825
    %v830 = vadd.f32 %v820, %v825
    %v831 = vadd.f32 %v821, %v825
    %v832 = vadd.f32 %v822, %v825
    %v833 = vadd.f32 %v823, %v825
    %vm834 = vcmp.eq.s32.totalorder %v73, 1
    %v835 = vsel %vm834, 1, 0
    %v836 = vcvt.s32.f32 %v835
    %v837 = vsub.f32 1.0, %v836
    %v838 = vmul.f32 %v473, %v837
    %v839 = vmul.f32 %v827, %v837
    %v840 = vrcp.pop %v827
    %v841 = vmul.f32 1.0, %v840
    %s842 = scalar_lea.vmem [#allocation2], 8
    %v843 = vld [vmem:[%s842] sm:$0xff]
    %v845 = vsel %vm85, %v843, 0
    %847 = vmatprep.subr.mxu0 0.0
    %848 = vmatpush1.msra.mxu0 %v838
    %849 = vmatprep.subr.mxu0 0.0
    %850 = vmatpush1.msra.mxu0 0.0
    %851 = vmatprep.subr.mxu0 0.0
    %852 = vmatpush1.msra.mxu0 0.0
    %853 = vmatprep.subr.mxu0 0.0
    %854 = vmatpush1.msra.mxu0 0.0
    %855 = vmatprep.subr.mxu0 0.0
    %856 = vmatpush1.msra.mxu0 0.0
    %857 = vmatprep.subr.mxu0 0.0
    %858 = vmatpush1.msra.mxu0 0.0
    %859 = vmatprep.subr.mxu0 0.0
    %860 = vmatpush1.msra.mxu0 0.0
    %861 = vmatprep.subr.mxu0 0.0
    %862 = vmatpush1.msra.mxu0 0.0
    %863 = vmatprep.subr.mxu0 0.0
    %864 = vmatpush1.msra.mxu0 0.0
    %865 = vmatprep.subr.mxu0 0.0
    %866 = vmatpush1.msra.mxu0 0.0
    %867 = vmatprep.subr.mxu0 0.0
    %868 = vmatpush1.msra.mxu0 0.0
    %869 = vmatprep.subr.mxu0 0.0
    %870 = vmatpush1.msra.mxu0 0.0
    %871 = vmatprep.subr.mxu0 0.0
    %872 = vmatpush1.msra.mxu0 0.0
    %873 = vmatprep.subr.mxu0 0.0
    %874 = vmatpush1.msra.mxu0 0.0
    %875 = vmatprep.subr.mxu0 0.0
    %876 = vmatpush1.msra.mxu0 0.0
    %877 = vmatprep.subr.mxu0 0.0
    %878 = vmatpush1.msra.mxu0 0.0
    %879 = vmatprep.subr.mxu0 0.0
    %880 = vmatpush1.msra.mxu0 0.0
    %881 = vmatprep.subr.mxu0 0.0
    %882 = vmatpush1.msra.mxu0 0.0
    %883 = vmatprep.subr.mxu0 0.0
    %884 = vmatpush1.msra.mxu0 0.0
    %885 = vmatprep.subr.mxu0 0.0
    %886 = vmatpush1.msra.mxu0 0.0
    %887 = vmatprep.subr.mxu0 0.0
    %888 = vmatpush1.msra.mxu0 0.0
    %889 = vmatprep.subr.mxu0 0.0
    %890 = vmatpush1.msra.mxu0 0.0
    %891 = vmatprep.subr.mxu0 0.0
    %892 = vmatpush1.msra.mxu0 0.0
    %893 = vmatprep.subr.mxu0 0.0
    %894 = vmatpush1.msra.mxu0 0.0
    %895 = vmatprep.subr.mxu0 0.0
    %896 = vmatpush1.msra.mxu0 0.0
    %897 = vmatprep.subr.mxu0 0.0
    %898 = vmatpush1.msra.mxu0 0.0
    %899 = vmatprep.subr.mxu0 0.0
    %900 = vmatpush1.msra.mxu0 0.0
    %901 = vmatprep.subr.mxu0 0.0
    %902 = vmatpush1.msra.mxu0 0.0
    %903 = vmatprep.subr.mxu0 0.0
    %904 = vmatpush1.msra.mxu0 0.0
    %905 = vmatprep.subr.mxu0 0.0
    %906 = vmatpush1.msra.mxu0 0.0
    %907 = vmatprep.subr.mxu0 0.0
    %908 = vmatpush1.msra.mxu0 0.0
    %909 = vmatprep.subr.mxu0 0.0
    %910 = vmatpush1.msra.mxu0 0.0
    %911 = vmatprep.mubr.f32.mxu0 0.0
    %912 = vmatmul.mubr.f32.gmra.mrb[0].mxu0 %v845
    %v913 = vpop.f32.mrb[0].mxu0
    %v914 = vadd.f32 0.0, %v913
    %v915 = vpop.f32.mrb[0].mxu0
    %916 = vdwg.mxu0
    %v917 = vmul.f32 %v826, %v914
    %v918 = vmul.f32 %v827, %v914
    %v919 = vmul.f32 %v828, %v914
    %v920 = vmul.f32 %v829, %v914
    %v921 = vmul.f32 %v830, %v914
    %v922 = vmul.f32 %v831, %v914
    %v923 = vmul.f32 %v832, %v914
    %v924 = vmul.f32 %v833, %v914
    %v925 = vrot.slane %v917, 4
    %v926 = vadd.f32 %v917, %v925
    %v927 = vrot.slane %v926, 2
    %v928 = vadd.f32 %v926, %v927
    %v929 = vrot.slane %v928, 1
    %v930 = vadd.f32 %v928, %v929
    %v931 = vrot.slane %v918, 4
    %v932 = vadd.f32 %v918, %v931
    %v933 = vrot.slane %v932, 2
    %v934 = vadd.f32 %v932, %v933
    %v935 = vrot.slane %v934, 1
    %v936 = vadd.f32 %v934, %v935
    %v937 = vrot.slane %v919, 4
    %v938 = vadd.f32 %v919, %v937
    %v939 = vrot.slane %v938, 2
    %v940 = vadd.f32 %v938, %v939
    %v941 = vrot.slane %v940, 1
    %v942 = vadd.f32 %v940, %v941
    %v943 = vrot.slane %v920, 4
    %v944 = vadd.f32 %v920, %v943
    %v945 = vrot.slane %v944, 2
    %v946 = vadd.f32 %v944, %v945
    %v947 = vrot.slane %v946, 1
    %v948 = vadd.f32 %v946, %v947
    %v949 = vrot.slane %v921, 4
    %v950 = vadd.f32 %v921, %v949
    %v951 = vrot.slane %v950, 2
    %v952 = vadd.f32 %v950, %v951
    %v953 = vrot.slane %v952, 1
    %v954 = vadd.f32 %v952, %v953
    %v955 = vrot.slane %v922, 4
    %v956 = vadd.f32 %v922, %v955
    %v957 = vrot.slane %v956, 2
    %v958 = vadd.f32 %v956, %v957
    %v959 = vrot.slane %v958, 1
    %v960 = vadd.f32 %v958, %v959
    %v961 = vrot.slane %v923, 4
    %v962 = vadd.f32 %v923, %v961
    %v963 = vrot.slane %v962, 2
    %v964 = vadd.f32 %v962, %v963
    %v965 = vrot.slane %v964, 1
    %v966 = vadd.f32 %v964, %v965
    %v967 = vrot.slane %v924, 4
    %v968 = vadd.f32 %v924, %v967
    %v969 = vrot.slane %v968, 2
    %v970 = vadd.f32 %v968, %v969
    %v971 = vrot.slane %v970, 1
    %v972 = vadd.f32 %v970, %v971
    %v973 = vmul.f32 %v826, %v838
    %v974 = vmul.f32 %v827, %v838
    %v975 = vmul.f32 %v828, %v838
    %v976 = vmul.f32 %v829, %v838
    %v977 = vmul.f32 %v830, %v838
    %v978 = vmul.f32 %v831, %v838
    %v979 = vmul.f32 %v832, %v838
    %v980 = vmul.f32 %v833, %v838
    %v981 = vrot.slane %v973, 4
    %v982 = vadd.f32 %v973, %v981
    %v983 = vrot.slane %v982, 2
    %v984 = vadd.f32 %v982, %v983
    %v985 = vrot.slane %v984, 1
    %v986 = vadd.f32 %v984, %v985
    %v987 = vrot.slane %v974, 4
    %v988 = vadd.f32 %v974, %v987
    %v989 = vrot.slane %v988, 2
    %v990 = vadd.f32 %v988, %v989
    %v991 = vrot.slane %v990, 1
    %v992 = vadd.f32 %v990, %v991
    %v993 = vrot.slane %v975, 4
    %v994 = vadd.f32 %v975, %v993
    %v995 = vrot.slane %v994, 2
    %v996 = vadd.f32 %v994, %v995
    %v997 = vrot.slane %v996, 1
    %v998 = vadd.f32 %v996, %v997
    %v999 = vrot.slane %v976, 4
    %v1000 = vadd.f32 %v976, %v999
    %v1001 = vrot.slane %v1000, 2
    %v1002 = vadd.f32 %v1000, %v1001
    %v1003 = vrot.slane %v1002, 1
    %v1004 = vadd.f32 %v1002, %v1003
    %v1005 = vrot.slane %v977, 4
    %v1006 = vadd.f32 %v977, %v1005
    %v1007 = vrot.slane %v1006, 2
    %v1008 = vadd.f32 %v1006, %v1007
    %v1009 = vrot.slane %v1008, 1
    %v1010 = vadd.f32 %v1008, %v1009
    %v1011 = vrot.slane %v978, 4
    %v1012 = vadd.f32 %v978, %v1011
    %v1013 = vrot.slane %v1012, 2
    %v1014 = vadd.f32 %v1012, %v1013
    %v1015 = vrot.slane %v1014, 1
    %v1016 = vadd.f32 %v1014, %v1015
    %v1017 = vrot.slane %v979, 4
    %v1018 = vadd.f32 %v979, %v1017
    %v1019 = vrot.slane %v1018, 2
    %v1020 = vadd.f32 %v1018, %v1019
    %v1021 = vrot.slane %v1020, 1
    %v1022 = vadd.f32 %v1020, %v1021
    %v1023 = vrot.slane %v980, 4
    %v1024 = vadd.f32 %v980, %v1023
    %v1025 = vrot.slane %v1024, 2
    %v1026 = vadd.f32 %v1024, %v1025
    %v1027 = vrot.slane %v1026, 1
    %v1028 = vadd.f32 %v1026, %v1027
    %v1029 = vmul.f32 %v839, %v914
    %v1030 = vrot.slane %v1029, 4
    %v1031 = vadd.f32 %v1029, %v1030
    %v1032 = vrot.slane %v1031, 2
    %v1033 = vadd.f32 %v1031, %v1032
    %v1034 = vrot.slane %v1033, 1
    %v1035 = vadd.f32 %v1033, %v1034
    %v1036 = vmul.f32 %v839, %v838
    %v1037 = vrot.slane %v1036, 4
    %v1038 = vadd.f32 %v1036, %v1037
    %v1039 = vrot.slane %v1038, 2
    %v1040 = vadd.f32 %v1038, %v1039
    %v1041 = vrot.slane %v1040, 1
    %v1042 = vadd.f32 %v1040, %v1041
    %v1051 = vsel %vm293, %v936, %v930
    %v1052 = vsel %vm295, %v942, %v1051
    %v1053 = vsel %vm297, %v948, %v1052
    %v1054 = vsel %vm299, %v954, %v1053
    %v1055 = vsel %vm301, %v960, %v1054
    %v1056 = vsel %vm303, %v966, %v1055
    %v1057 = vsel %vm305, %v972, %v1056
    %v1059 = vmul.f32 %v837, %v1057
    %v1060 = vmul.f32 %v1035, %v841
    %v1061 = vlaneseq
    %v1062 = vshrl.u32 %v1061, 7
    %v1063 = vsub.s32 1, %v1062
    %v1064 = vrot.slane %v1060, %v1063
    %v1065 = vmul.f32 %v839, %v1064
    %v1066 = vsub.f32 %v1059, %v1065
    %v1075 = vsel %vm293, %v992, %v986
    %v1076 = vsel %vm295, %v998, %v1075
    %v1077 = vsel %vm297, %v1004, %v1076
    %v1078 = vsel %vm299, %v1010, %v1077
    %v1079 = vsel %vm301, %v1016, %v1078
    %v1080 = vsel %vm303, %v1022, %v1079
    %v1081 = vsel %vm305, %v1028, %v1080
    %v1083 = vmul.f32 %v837, %v1081
    %v1084 = vmul.f32 %v1042, %v841
    %v1085 = vlaneseq
    %v1086 = vshrl.u32 %v1085, 7
    %v1087 = vsub.s32 1, %v1086
    %v1088 = vrot.slane %v1084, %v1087
    %v1089 = vmul.f32 %v839, %v1088
    %v1090 = vsub.f32 %v1083, %v1089
    %v1091 = vmul.f32 %v914, %v1066
    %v1092 = vrot.slane %v1091, 4
    %v1093 = vadd.f32 %v1091, %v1092
    %v1094 = vrot.slane %v1093, 2
    %v1095 = vadd.f32 %v1093, %v1094
    %v1096 = vrot.slane %v1095, 1
    %v1097 = vadd.f32 %v1095, %v1096
    %v1098 = vmul.f32 %v838, %v1090
    %v1099 = vrot.slane %v1098, 4
    %v1100 = vadd.f32 %v1098, %v1099
    %v1101 = vrot.slane %v1100, 2
    %v1102 = vadd.f32 %v1100, %v1101
    %v1103 = vrot.slane %v1102, 1
    %v1104 = vadd.f32 %v1102, %v1103
    %v1105 = vsub.f32 %v473, %v1104
    %v1106 = vadd.f32 %v1105, %v1097
    %v1107 = vsub.f32 %v914, %v838
    %v1108 = vsub.f32 %v1106, %v473
    %v1109 = vlaneseq
    %v1110 = vshrl.u32 %v1109, 7
    %v1111 = vsub.s32 1, %v1110
    %v1112 = vrot.slane %v1108, %v1111
    %v1113 = vmul.f32 %v1112, %v836
    %v1114 = vadd.f32 %v1107, %v1113
    %v1116 = vcombine.high %v1114, %v1114
    %v1118 = vunpack.c.l.s4 1966171168
    %v1119 = vunpack.c.0.s8 %v1118
    %v1120 = vlaneseq
    %v1121 = vshrl.u32 %v1120, 7
    %v1122 = vsub.s32 %v1119, %v1121
    %v1123 = vrot.slane %v1114, %v1122
    %v1125 = vunpack.c.l.s4 1966171168
    %v1126 = vunpack.c.0.s8 %v1125
    %v1127 = vlaneseq
    %v1128 = vshrl.u32 %v1127, 7
    %v1129 = vsub.s32 %v1126, %v1128
    %v1130 = vrot.slane %v1116, %v1129
    %v1131 = vcombine.high %v1123, %v1123
    %v1132 = vcombine.high %v1130, %v1130
    %v1134 = vunpack.c.l.s4 1966171168
    %v1135 = vunpack.c.0.s8 %v1134
    %v1136 = vlaneseq
    %v1137 = vshrl.u32 %v1136, 7
    %v1138 = vsub.s32 %v1135, %v1137
    %v1139 = vrot.slane %v1123, %v1138
    %v1141 = vunpack.c.l.s4 1966171168
    %v1142 = vunpack.c.0.s8 %v1141
    %v1143 = vlaneseq
    %v1144 = vshrl.u32 %v1143, 7
    %v1145 = vsub.s32 %v1142, %v1144
    %v1146 = vrot.slane %v1130, %v1145
    %v1148 = vunpack.c.l.s4 1966171168
    %v1149 = vunpack.c.0.s8 %v1148
    %v1150 = vlaneseq
    %v1151 = vshrl.u32 %v1150, 7
    %v1152 = vsub.s32 %v1149, %v1151
    %v1153 = vrot.slane %v1131, %v1152
    %v1155 = vunpack.c.l.s4 1966171168
    %v1156 = vunpack.c.0.s8 %v1155
    %v1157 = vlaneseq
    %v1158 = vshrl.u32 %v1157, 7
    %v1159 = vsub.s32 %v1156, %v1158
    %v1160 = vrot.slane %v1132, %v1159
    %v1161 = vcombine.high %v1139, %v1139
    %v1162 = vcombine.high %v1146, %v1146
    %v1163 = vcombine.high %v1153, %v1153
    %v1164 = vcombine.high %v1160, %v1160
    %v1165 = vlaneseq
    %v1166 = vshrl.u32 %v1165, 7
    %v1167 = vsub.s32 0, %v1166
    %v1168 = vrot.slane %v1139, %v1167
    %v1169 = vlaneseq
    %v1170 = vshrl.u32 %v1169, 7
    %v1171 = vsub.s32 0, %v1170
    %v1172 = vrot.slane %v1153, %v1171
    %v1173 = vlaneseq
    %v1174 = vshrl.u32 %v1173, 7
    %v1175 = vsub.s32 0, %v1174
    %v1176 = vrot.slane %v1161, %v1175
    %v1177 = vlaneseq
    %v1178 = vshrl.u32 %v1177, 7
    %v1179 = vsub.s32 0, %v1178
    %v1180 = vrot.slane %v1163, %v1179
    %v1181 = vlaneseq
    %v1182 = vshrl.u32 %v1181, 7
    %v1183 = vsub.s32 0, %v1182
    %v1184 = vrot.slane %v1146, %v1183
    %v1185 = vlaneseq
    %v1186 = vshrl.u32 %v1185, 7
    %v1187 = vsub.s32 0, %v1186
    %v1188 = vrot.slane %v1160, %v1187
    %v1189 = vlaneseq
    %v1190 = vshrl.u32 %v1189, 7
    %v1191 = vsub.s32 0, %v1190
    %v1192 = vrot.slane %v1162, %v1191
    %v1193 = vlaneseq
    %v1194 = vshrl.u32 %v1193, 7
    %v1195 = vsub.s32 0, %v1194
    %v1196 = vrot.slane %v1164, %v1195
    %v1205 = vmul.f32 %v836, %v1168
    %v1206 = vmul.f32 %v836, %v1172
    %v1207 = vmul.f32 %v836, %v1176
    %v1208 = vmul.f32 %v836, %v1180
    %v1209 = vmul.f32 %v836, %v1184
    %v1210 = vmul.f32 %v836, %v1188
    %v1211 = vmul.f32 %v836, %v1192
    %v1212 = vmul.f32 %v836, %v1196
    %v1213 = vadd.f32 %v472, %v1205
    %v1214 = vadd.f32 %v473, %v1206
    %v1215 = vadd.f32 %v474, %v1207
    %v1216 = vadd.f32 %v475, %v1208
    %v1217 = vadd.f32 %v476, %v1209
    %v1218 = vadd.f32 %v477, %v1210
    %v1219 = vadd.f32 %v478, %v1211
    %v1220 = vadd.f32 %v479, %v1212
    %v1221 = vmul.f32 %v75, %v1107
    %v1222 = vmul.f32 %v74, %v1107
    %v1223 = vadd.f32 %v1213, %v1221
    %v1224 = vadd.f32 %v1214, %v1222
    %v1225 = vadd.f32 %v1215, %v1221
    %v1226 = vadd.f32 %v1216, %v1221
    %v1227 = vadd.f32 %v1217, %v1221
    %v1228 = vadd.f32 %v1218, %v1221
    %v1229 = vadd.f32 %v1219, %v1221
    %v1230 = vadd.f32 %v1220, %v1221
    %v1231 = vrcp.pop %v1105
    %v1232 = vmul.f32 1.0, %v1231
    %v1233 = vsub.f32 0.0, %v1232
    %v1234 = vlaneseq
    %v1235 = vshrl.u32 %v1234, 7
    %v1236 = vsub.s32 1, %v1235
    %v1237 = vrot.slane %v1233, %v1236
    %v1238 = vmul.f32 %v1237, %v1066
    %v1239 = vlaneseq
    %v1240 = vshrl.u32 %v1239, 7
    %v1241 = vsub.s32 1, %v1240
    %v1242 = vrot.slane %v841, %v1241
    %v1243 = vmul.f32 %v839, %v1242
    %v1245 = vcombine.high %v1243, %v1243
    %v1247 = vunpack.c.l.s4 1966171168
    %v1248 = vunpack.c.0.s8 %v1247
    %v1249 = vlaneseq
    %v1250 = vshrl.u32 %v1249, 7
    %v1251 = vsub.s32 %v1248, %v1250
    %v1252 = vrot.slane %v1243, %v1251
    %v1254 = vunpack.c.l.s4 1966171168
    %v1255 = vunpack.c.0.s8 %v1254
    %v1256 = vlaneseq
    %v1257 = vshrl.u32 %v1256, 7
    %v1258 = vsub.s32 %v1255, %v1257
    %v1259 = vrot.slane %v1245, %v1258
    %v1260 = vcombine.high %v1252, %v1252
    %v1261 = vcombine.high %v1259, %v1259
    %v1263 = vunpack.c.l.s4 1966171168
    %v1264 = vunpack.c.0.s8 %v1263
    %v1265 = vlaneseq
    %v1266 = vshrl.u32 %v1265, 7
    %v1267 = vsub.s32 %v1264, %v1266
    %v1268 = vrot.slane %v1252, %v1267
    %v1270 = vunpack.c.l.s4 1966171168
    %v1271 = vunpack.c.0.s8 %v1270
    %v1272 = vlaneseq
    %v1273 = vshrl.u32 %v1272, 7
    %v1274 = vsub.s32 %v1271, %v1273
    %v1275 = vrot.slane %v1259, %v1274
    %v1277 = vunpack.c.l.s4 1966171168
    %v1278 = vunpack.c.0.s8 %v1277
    %v1279 = vlaneseq
    %v1280 = vshrl.u32 %v1279, 7
    %v1281 = vsub.s32 %v1278, %v1280
    %v1282 = vrot.slane %v1260, %v1281
    %v1284 = vunpack.c.l.s4 1966171168
    %v1285 = vunpack.c.0.s8 %v1284
    %v1286 = vlaneseq
    %v1287 = vshrl.u32 %v1286, 7
    %v1288 = vsub.s32 %v1285, %v1287
    %v1289 = vrot.slane %v1261, %v1288
    %v1290 = vcombine.high %v1268, %v1268
    %v1291 = vcombine.high %v1275, %v1275
    %v1292 = vcombine.high %v1282, %v1282
    %v1293 = vcombine.high %v1289, %v1289
    %v1294 = vlaneseq
    %v1295 = vshrl.u32 %v1294, 7
    %v1296 = vsub.s32 0, %v1295
    %v1297 = vrot.slane %v1268, %v1296
    %v1298 = vlaneseq
    %v1299 = vshrl.u32 %v1298, 7
    %v1300 = vsub.s32 0, %v1299
    %v1301 = vrot.slane %v1282, %v1300
    %v1302 = vlaneseq
    %v1303 = vshrl.u32 %v1302, 7
    %v1304 = vsub.s32 0, %v1303
    %v1305 = vrot.slane %v1290, %v1304
    %v1306 = vlaneseq
    %v1307 = vshrl.u32 %v1306, 7
    %v1308 = vsub.s32 0, %v1307
    %v1309 = vrot.slane %v1292, %v1308
    %v1310 = vlaneseq
    %v1311 = vshrl.u32 %v1310, 7
    %v1312 = vsub.s32 0, %v1311
    %v1313 = vrot.slane %v1275, %v1312
    %v1314 = vlaneseq
    %v1315 = vshrl.u32 %v1314, 7
    %v1316 = vsub.s32 0, %v1315
    %v1317 = vrot.slane %v1289, %v1316
    %v1318 = vlaneseq
    %v1319 = vshrl.u32 %v1318, 7
    %v1320 = vsub.s32 0, %v1319
    %v1321 = vrot.slane %v1291, %v1320
    %v1322 = vlaneseq
    %v1323 = vshrl.u32 %v1322, 7
    %v1324 = vsub.s32 0, %v1323
    %v1325 = vrot.slane %v1293, %v1324
    %v1334 = vmul.f32 %v1297, %v839
    %v1335 = vmul.f32 %v1301, %v839
    %v1336 = vmul.f32 %v1305, %v839
    %v1337 = vmul.f32 %v1309, %v839
    %v1338 = vmul.f32 %v1313, %v839
    %v1339 = vmul.f32 %v1317, %v839
    %v1340 = vmul.f32 %v1321, %v839
    %v1341 = vmul.f32 %v1325, %v839
    %v1342 = vlaneseq
    %v1343 = vshrl.u32 %v1342, 7
    %v1344 = vsub.s32 1, %v1343
    %v1345 = vrot.slane %v1105, %v1344
    %v1346 = vmul.f32 %v1345, %v1238
    %v1348 = vcombine.high %v1346, %v1346
    %v1350 = vunpack.c.l.s4 1966171168
    %v1351 = vunpack.c.0.s8 %v1350
    %v1352 = vlaneseq
    %v1353 = vshrl.u32 %v1352, 7
    %v1354 = vsub.s32 %v1351, %v1353
    %v1355 = vrot.slane %v1346, %v1354
    %v1357 = vunpack.c.l.s4 1966171168
    %v1358 = vunpack.c.0.s8 %v1357
    %v1359 = vlaneseq
    %v1360 = vshrl.u32 %v1359, 7
    %v1361 = vsub.s32 %v1358, %v1360
    %v1362 = vrot.slane %v1348, %v1361
    %v1363 = vcombine.high %v1355, %v1355
    %v1364 = vcombine.high %v1362, %v1362
    %v1366 = vunpack.c.l.s4 1966171168
    %v1367 = vunpack.c.0.s8 %v1366
    %v1368 = vlaneseq
    %v1369 = vshrl.u32 %v1368, 7
    %v1370 = vsub.s32 %v1367, %v1369
    %v1371 = vrot.slane %v1355, %v1370
    %v1373 = vunpack.c.l.s4 1966171168
    %v1374 = vunpack.c.0.s8 %v1373
    %v1375 = vlaneseq
    %v1376 = vshrl.u32 %v1375, 7
    %v1377 = vsub.s32 %v1374, %v1376
    %v1378 = vrot.slane %v1362, %v1377
    %v1380 = vunpack.c.l.s4 1966171168
    %v1381 = vunpack.c.0.s8 %v1380
    %v1382 = vlaneseq
    %v1383 = vshrl.u32 %v1382, 7
    %v1384 = vsub.s32 %v1381, %v1383
    %v1385 = vrot.slane %v1363, %v1384
    %v1387 = vunpack.c.l.s4 1966171168
    %v1388 = vunpack.c.0.s8 %v1387
    %v1389 = vlaneseq
    %v1390 = vshrl.u32 %v1389, 7
    %v1391 = vsub.s32 %v1388, %v1390
    %v1392 = vrot.slane %v1364, %v1391
    %v1393 = vcombine.high %v1371, %v1371
    %v1394 = vcombine.high %v1378, %v1378
    %v1395 = vcombine.high %v1385, %v1385
    %v1396 = vcombine.high %v1392, %v1392
    %v1397 = vlaneseq
    %v1398 = vshrl.u32 %v1397, 7
    %v1399 = vsub.s32 0, %v1398
    %v1400 = vrot.slane %v1371, %v1399
    %v1401 = vlaneseq
    %v1402 = vshrl.u32 %v1401, 7
    %v1403 = vsub.s32 0, %v1402
    %v1404 = vrot.slane %v1385, %v1403
    %v1405 = vlaneseq
    %v1406 = vshrl.u32 %v1405, 7
    %v1407 = vsub.s32 0, %v1406
    %v1408 = vrot.slane %v1393, %v1407
    %v1409 = vlaneseq
    %v1410 = vshrl.u32 %v1409, 7
    %v1411 = vsub.s32 0, %v1410
    %v1412 = vrot.slane %v1395, %v1411
    %v1413 = vlaneseq
    %v1414 = vshrl.u32 %v1413, 7
    %v1415 = vsub.s32 0, %v1414
    %v1416 = vrot.slane %v1378, %v1415
    %v1417 = vlaneseq
    %v1418 = vshrl.u32 %v1417, 7
    %v1419 = vsub.s32 0, %v1418
    %v1420 = vrot.slane %v1392, %v1419
    %v1421 = vlaneseq
    %v1422 = vshrl.u32 %v1421, 7
    %v1423 = vsub.s32 0, %v1422
    %v1424 = vrot.slane %v1394, %v1423
    %v1425 = vlaneseq
    %v1426 = vshrl.u32 %v1425, 7
    %v1427 = vsub.s32 0, %v1426
    %v1428 = vrot.slane %v1396, %v1427
    %v1437 = vmul.f32 %v1400, %v1238
    %v1438 = vmul.f32 %v1404, %v1238
    %v1439 = vmul.f32 %v1408, %v1238
    %v1440 = vmul.f32 %v1412, %v1238
    %v1441 = vmul.f32 %v1416, %v1238
    %v1442 = vmul.f32 %v1420, %v1238
    %v1443 = vmul.f32 %v1424, %v1238
    %v1444 = vmul.f32 %v1428, %v1238
    %v1445 = vsub.f32 %v1334, %v1437
    %v1446 = vsub.f32 %v1335, %v1438
    %v1447 = vsub.f32 %v1336, %v1439
    %v1448 = vsub.f32 %v1337, %v1440
    %v1449 = vsub.f32 %v1338, %v1441
    %v1450 = vsub.f32 %v1339, %v1442
    %v1451 = vsub.f32 %v1340, %v1443
    %v1452 = vsub.f32 %v1341, %v1444
    %v1453 = vsub.f32 %v839, %v1238
    %v1454 = vsub.f32 %v827, %v1232
    %v1455 = vlaneseq
    %v1456 = vshrl.u32 %v1455, 7
    %v1457 = vsub.s32 1, %v1456
    %v1458 = vrot.slane %v1454, %v1457
    %v1459 = vmul.f32 %v1458, %v836
    %v1460 = vadd.f32 %v1453, %v1459
    %v1461 = vadd.f32 %v826, %v1445
    %v1462 = vadd.f32 %v827, %v1446
    %v1463 = vadd.f32 %v828, %v1447
    %v1464 = vadd.f32 %v829, %v1448
    %v1465 = vadd.f32 %v830, %v1449
    %v1466 = vadd.f32 %v831, %v1450
    %v1467 = vadd.f32 %v832, %v1451
    %v1468 = vadd.f32 %v833, %v1452
    %v1470 = vcombine.high %v1460, %v1460
    %v1472 = vunpack.c.l.s4 1966171168
    %v1473 = vunpack.c.0.s8 %v1472
    %v1474 = vlaneseq
    %v1475 = vshrl.u32 %v1474, 7
    %v1476 = vsub.s32 %v1473, %v1475
    %v1477 = vrot.slane %v1460, %v1476
    %v1479 = vunpack.c.l.s4 1966171168
    %v1480 = vunpack.c.0.s8 %v1479
    %v1481 = vlaneseq
    %v1482 = vshrl.u32 %v1481, 7
    %v1483 = vsub.s32 %v1480, %v1482
    %v1484 = vrot.slane %v1470, %v1483
    %v1485 = vcombine.high %v1477, %v1477
    %v1486 = vcombine.high %v1484, %v1484
    %v1488 = vunpack.c.l.s4 1966171168
    %v1489 = vunpack.c.0.s8 %v1488
    %v1490 = vlaneseq
    %v1491 = vshrl.u32 %v1490, 7
    %v1492 = vsub.s32 %v1489, %v1491
    %v1493 = vrot.slane %v1477, %v1492
    %v1495 = vunpack.c.l.s4 1966171168
    %v1496 = vunpack.c.0.s8 %v1495
    %v1497 = vlaneseq
    %v1498 = vshrl.u32 %v1497, 7
    %v1499 = vsub.s32 %v1496, %v1498
    %v1500 = vrot.slane %v1484, %v1499
    %v1502 = vunpack.c.l.s4 1966171168
    %v1503 = vunpack.c.0.s8 %v1502
    %v1504 = vlaneseq
    %v1505 = vshrl.u32 %v1504, 7
    %v1506 = vsub.s32 %v1503, %v1505
    %v1507 = vrot.slane %v1485, %v1506
    %v1509 = vunpack.c.l.s4 1966171168
    %v1510 = vunpack.c.0.s8 %v1509
    %v1511 = vlaneseq
    %v1512 = vshrl.u32 %v1511, 7
    %v1513 = vsub.s32 %v1510, %v1512
    %v1514 = vrot.slane %v1486, %v1513
    %v1515 = vcombine.high %v1493, %v1493
    %v1516 = vcombine.high %v1500, %v1500
    %v1517 = vcombine.high %v1507, %v1507
    %v1518 = vcombine.high %v1514, %v1514
    %v1519 = vlaneseq
    %v1520 = vshrl.u32 %v1519, 7
    %v1521 = vsub.s32 0, %v1520
    %v1522 = vrot.slane %v1493, %v1521
    %v1523 = vlaneseq
    %v1524 = vshrl.u32 %v1523, 7
    %v1525 = vsub.s32 0, %v1524
    %v1526 = vrot.slane %v1507, %v1525
    %v1527 = vlaneseq
    %v1528 = vshrl.u32 %v1527, 7
    %v1529 = vsub.s32 0, %v1528
    %v1530 = vrot.slane %v1515, %v1529
    %v1531 = vlaneseq
    %v1532 = vshrl.u32 %v1531, 7
    %v1533 = vsub.s32 0, %v1532
    %v1534 = vrot.slane %v1517, %v1533
    %v1535 = vlaneseq
    %v1536 = vshrl.u32 %v1535, 7
    %v1537 = vsub.s32 0, %v1536
    %v1538 = vrot.slane %v1500, %v1537
    %v1539 = vlaneseq
    %v1540 = vshrl.u32 %v1539, 7
    %v1541 = vsub.s32 0, %v1540
    %v1542 = vrot.slane %v1514, %v1541
    %v1543 = vlaneseq
    %v1544 = vshrl.u32 %v1543, 7
    %v1545 = vsub.s32 0, %v1544
    %v1546 = vrot.slane %v1516, %v1545
    %v1547 = vlaneseq
    %v1548 = vshrl.u32 %v1547, 7
    %v1549 = vsub.s32 0, %v1548
    %v1550 = vrot.slane %v1518, %v1549
    %v1559 = vmul.f32 %v836, %v1522
    %v1560 = vmul.f32 %v836, %v1526
    %v1561 = vmul.f32 %v836, %v1530
    %v1562 = vmul.f32 %v836, %v1534
    %v1563 = vmul.f32 %v836, %v1538
    %v1564 = vmul.f32 %v836, %v1542
    %v1565 = vmul.f32 %v836, %v1546
    %v1566 = vmul.f32 %v836, %v1550
    %v1567 = vadd.f32 %v1461, %v1559
    %v1568 = vadd.f32 %v1462, %v1560
    %v1569 = vadd.f32 %v1463, %v1561
    %v1570 = vadd.f32 %v1464, %v1562
    %v1571 = vadd.f32 %v1465, %v1563
    %v1572 = vadd.f32 %v1466, %v1564
    %v1573 = vadd.f32 %v1467, %v1565
    %v1574 = vadd.f32 %v1468, %v1566
    %v1575 = vmul.f32 %v75, %v1453
    %v1576 = vmul.f32 %v74, %v1453
    %v1577 = vadd.f32 %v1567, %v1575
    %v1578 = vadd.f32 %v1568, %v1576
    %v1579 = vadd.f32 %v1569, %v1575
    %v1580 = vadd.f32 %v1570, %v1575
    %v1581 = vadd.f32 %v1571, %v1575
    %v1582 = vadd.f32 %v1572, %v1575
    %v1583 = vadd.f32 %v1573, %v1575
    %v1584 = vadd.f32 %v1574, %v1575
    %vm1585 = vcmp.eq.s32.totalorder %v73, 2
    %v1586 = vsel %vm1585, 1, 0
    %v1587 = vcvt.s32.f32 %v1586
    %v1588 = vsub.f32 1.0, %v1587
    %v1589 = vmul.f32 %v1225, %v1588
    %v1590 = vmul.f32 %v1579, %v1588
    %v1591 = vrcp.pop %v1579
    %v1592 = vmul.f32 1.0, %v1591
    %s1593 = scalar_lea.vmem [#allocation2], 16
    %v1594 = vld [vmem:[%s1593] sm:$0xff]
    %v1596 = vsel %vm85, %v1594, 0
    %1598 = vmatprep.subr.mxu0 0.0
    %1599 = vmatpush1.msra.mxu0 %v1589
    %1600 = vmatprep.subr.mxu0 0.0
    %1601 = vmatpush1.msra.mxu0 0.0
    %1602 = vmatprep.subr.mxu0 0.0
    %1603 = vmatpush1.msra.mxu0 0.0
    %1604 = vmatprep.subr.mxu0 0.0
    %1605 = vmatpush1.msra.mxu0 0.0
    %1606 = vmatprep.subr.mxu0 0.0
    %1607 = vmatpush1.msra.mxu0 0.0
    %1608 = vmatprep.subr.mxu0 0.0
    %1609 = vmatpush1.msra.mxu0 0.0
    %1610 = vmatprep.subr.mxu0 0.0
    %1611 = vmatpush1.msra.mxu0 0.0
    %1612 = vmatprep.subr.mxu0 0.0
    %1613 = vmatpush1.msra.mxu0 0.0
    %1614 = vmatprep.subr.mxu0 0.0
    %1615 = vmatpush1.msra.mxu0 0.0
    %1616 = vmatprep.subr.mxu0 0.0
    %1617 = vmatpush1.msra.mxu0 0.0
    %1618 = vmatprep.subr.mxu0 0.0
    %1619 = vmatpush1.msra.mxu0 0.0
    %1620 = vmatprep.subr.mxu0 0.0
    %1621 = vmatpush1.msra.mxu0 0.0
    %1622 = vmatprep.subr.mxu0 0.0
    %1623 = vmatpush1.msra.mxu0 0.0
    %1624 = vmatprep.subr.mxu0 0.0
    %1625 = vmatpush1.msra.mxu0 0.0
    %1626 = vmatprep.subr.mxu0 0.0
    %1627 = vmatpush1.msra.mxu0 0.0
    %1628 = vmatprep.subr.mxu0 0.0
    %1629 = vmatpush1.msra.mxu0 0.0
    %1630 = vmatprep.subr.mxu0 0.0
    %1631 = vmatpush1.msra.mxu0 0.0
    %1632 = vmatprep.subr.mxu0 0.0
    %1633 = vmatpush1.msra.mxu0 0.0
    %1634 = vmatprep.subr.mxu0 0.0
    %1635 = vmatpush1.msra.mxu0 0.0
    %1636 = vmatprep.subr.mxu0 0.0
    %1637 = vmatpush1.msra.mxu0 0.0
    %1638 = vmatprep.subr.mxu0 0.0
    %1639 = vmatpush1.msra.mxu0 0.0
    %1640 = vmatprep.subr.mxu0 0.0
    %1641 = vmatpush1.msra.mxu0 0.0
    %1642 = vmatprep.subr.mxu0 0.0
    %1643 = vmatpush1.msra.mxu0 0.0
    %1644 = vmatprep.subr.mxu0 0.0
    %1645 = vmatpush1.msra.mxu0 0.0
    %1646 = vmatprep.subr.mxu0 0.0
    %1647 = vmatpush1.msra.mxu0 0.0
    %1648 = vmatprep.subr.mxu0 0.0
    %1649 = vmatpush1.msra.mxu0 0.0
    %1650 = vmatprep.subr.mxu0 0.0
    %1651 = vmatpush1.msra.mxu0 0.0
    %1652 = vmatprep.subr.mxu0 0.0
    %1653 = vmatpush1.msra.mxu0 0.0
    %1654 = vmatprep.subr.mxu0 0.0
    %1655 = vmatpush1.msra.mxu0 0.0
    %1656 = vmatprep.subr.mxu0 0.0
    %1657 = vmatpush1.msra.mxu0 0.0
    %1658 = vmatprep.subr.mxu0 0.0
    %1659 = vmatpush1.msra.mxu0 0.0
    %1660 = vmatprep.subr.mxu0 0.0
    %1661 = vmatpush1.msra.mxu0 0.0
    %1662 = vmatprep.mubr.f32.mxu0 0.0
    %1663 = vmatmul.mubr.f32.gmra.mrb[0].mxu0 %v1596
    %v1664 = vpop.f32.mrb[0].mxu0
    %v1665 = vadd.f32 0.0, %v1664
    %v1666 = vpop.f32.mrb[0].mxu0
    %1667 = vdwg.mxu0
    %v1668 = vmul.f32 %v1577, %v1665
    %v1669 = vmul.f32 %v1578, %v1665
    %v1670 = vmul.f32 %v1579, %v1665
    %v1671 = vmul.f32 %v1580, %v1665
    %v1672 = vmul.f32 %v1581, %v1665
    %v1673 = vmul.f32 %v1582, %v1665
    %v1674 = vmul.f32 %v1583, %v1665
    %v1675 = vmul.f32 %v1584, %v1665
    %v1676 = vrot.slane %v1668, 4
    %v1677 = vadd.f32 %v1668, %v1676
    %v1678 = vrot.slane %v1677, 2
    %v1679 = vadd.f32 %v1677, %v1678
    %v1680 = vrot.slane %v1679, 1
    %v1681 = vadd.f32 %v1679, %v1680
    %v1682 = vrot.slane %v1669, 4
    %v1683 = vadd.f32 %v1669, %v1682
    %v1684 = vrot.slane %v1683, 2
    %v1685 = vadd.f32 %v1683, %v1684
    %v1686 = vrot.slane %v1685, 1
    %v1687 = vadd.f32 %v1685, %v1686
    %v1688 = vrot.slane %v1670, 4
    %v1689 = vadd.f32 %v1670, %v1688
    %v1690 = vrot.slane %v1689, 2
    %v1691 = vadd.f32 %v1689, %v1690
    %v1692 = vrot.slane %v1691, 1
    %v1693 = vadd.f32 %v1691, %v1692
    %v1694 = vrot.slane %v1671, 4
    %v1695 = vadd.f32 %v1671, %v1694
    %v1696 = vrot.slane %v1695, 2
    %v1697 = vadd.f32 %v1695, %v1696
    %v1698 = vrot.slane %v1697, 1
    %v1699 = vadd.f32 %v1697, %v1698
    %v1700 = vrot.slane %v1672, 4
    %v1701 = vadd.f32 %v1672, %v1700
    %v1702 = vrot.slane %v1701, 2
    %v1703 = vadd.f32 %v1701, %v1702
    %v1704 = vrot.slane %v1703, 1
    %v1705 = vadd.f32 %v1703, %v1704
    %v1706 = vrot.slane %v1673, 4
    %v1707 = vadd.f32 %v1673, %v1706
    %v1708 = vrot.slane %v1707, 2
    %v1709 = vadd.f32 %v1707, %v1708
    %v1710 = vrot.slane %v1709, 1
    %v1711 = vadd.f32 %v1709, %v1710
    %v1712 = vrot.slane %v1674, 4
    %v1713 = vadd.f32 %v1674, %v1712
    %v1714 = vrot.slane %v1713, 2
    %v1715 = vadd.f32 %v1713, %v1714
    %v1716 = vrot.slane %v1715, 1
    %v1717 = vadd.f32 %v1715, %v1716
    %v1718 = vrot.slane %v1675, 4
    %v1719 = vadd.f32 %v1675, %v1718
    %v1720 = vrot.slane %v1719, 2
    %v1721 = vadd.f32 %v1719, %v1720
    %v1722 = vrot.slane %v1721, 1
    %v1723 = vadd.f32 %v1721, %v1722
    %v1724 = vmul.f32 %v1577, %v1589
    %v1725 = vmul.f32 %v1578, %v1589
    %v1726 = vmul.f32 %v1579, %v1589
    %v1727 = vmul.f32 %v1580, %v1589
    %v1728 = vmul.f32 %v1581, %v1589
    %v1729 = vmul.f32 %v1582, %v1589
    %v1730 = vmul.f32 %v1583, %v1589
    %v1731 = vmul.f32 %v1584, %v1589
    %v1732 = vrot.slane %v1724, 4
    %v1733 = vadd.f32 %v1724, %v1732
    %v1734 = vrot.slane %v1733, 2
    %v1735 = vadd.f32 %v1733, %v1734
    %v1736 = vrot.slane %v1735, 1
    %v1737 = vadd.f32 %v1735, %v1736
    %v1738 = vrot.slane %v1725, 4
    %v1739 = vadd.f32 %v1725, %v1738
    %v1740 = vrot.slane %v1739, 2
    %v1741 = vadd.f32 %v1739, %v1740
    %v1742 = vrot.slane %v1741, 1
    %v1743 = vadd.f32 %v1741, %v1742
    %v1744 = vrot.slane %v1726, 4
    %v1745 = vadd.f32 %v1726, %v1744
    %v1746 = vrot.slane %v1745, 2
    %v1747 = vadd.f32 %v1745, %v1746
    %v1748 = vrot.slane %v1747, 1
    %v1749 = vadd.f32 %v1747, %v1748
    %v1750 = vrot.slane %v1727, 4
    %v1751 = vadd.f32 %v1727, %v1750
    %v1752 = vrot.slane %v1751, 2
    %v1753 = vadd.f32 %v1751, %v1752
    %v1754 = vrot.slane %v1753, 1
    %v1755 = vadd.f32 %v1753, %v1754
    %v1756 = vrot.slane %v1728, 4
    %v1757 = vadd.f32 %v1728, %v1756
    %v1758 = vrot.slane %v1757, 2
    %v1759 = vadd.f32 %v1757, %v1758
    %v1760 = vrot.slane %v1759, 1
    %v1761 = vadd.f32 %v1759, %v1760
    %v1762 = vrot.slane %v1729, 4
    %v1763 = vadd.f32 %v1729, %v1762
    %v1764 = vrot.slane %v1763, 2
    %v1765 = vadd.f32 %v1763, %v1764
    %v1766 = vrot.slane %v1765, 1
    %v1767 = vadd.f32 %v1765, %v1766
    %v1768 = vrot.slane %v1730, 4
    %v1769 = vadd.f32 %v1730, %v1768
    %v1770 = vrot.slane %v1769, 2
    %v1771 = vadd.f32 %v1769, %v1770
    %v1772 = vrot.slane %v1771, 1
    %v1773 = vadd.f32 %v1771, %v1772
    %v1774 = vrot.slane %v1731, 4
    %v1775 = vadd.f32 %v1731, %v1774
    %v1776 = vrot.slane %v1775, 2
    %v1777 = vadd.f32 %v1775, %v1776
    %v1778 = vrot.slane %v1777, 1
    %v1779 = vadd.f32 %v1777, %v1778
    %v1780 = vmul.f32 %v1590, %v1665
    %v1781 = vrot.slane %v1780, 4
    %v1782 = vadd.f32 %v1780, %v1781
    %v1783 = vrot.slane %v1782, 2
    %v1784 = vadd.f32 %v1782, %v1783
    %v1785 = vrot.slane %v1784, 1
    %v1786 = vadd.f32 %v1784, %v1785
    %v1787 = vmul.f32 %v1590, %v1589
    %v1788 = vrot.slane %v1787, 4
    %v1789 = vadd.f32 %v1787, %v1788
    %v1790 = vrot.slane %v1789, 2
    %v1791 = vadd.f32 %v1789, %v1790
    %v1792 = vrot.slane %v1791, 1
    %v1793 = vadd.f32 %v1791, %v1792
    %v1802 = vsel %vm293, %v1687, %v1681
    %v1803 = vsel %vm295, %v1693, %v1802
    %v1804 = vsel %vm297, %v1699, %v1803
    %v1805 = vsel %vm299, %v1705, %v1804
    %v1806 = vsel %vm301, %v1711, %v1805
    %v1807 = vsel %vm303, %v1717, %v1806
    %v1808 = vsel %vm305, %v1723, %v1807
    %v1810 = vmul.f32 %v1588, %v1808
    %v1811 = vmul.f32 %v1786, %v1592
    %v1812 = vlaneseq
    %v1813 = vshrl.u32 %v1812, 7
    %v1814 = vsub.s32 2, %v1813
    %v1815 = vrot.slane %v1811, %v1814
    %v1816 = vmul.f32 %v1590, %v1815
    %v1817 = vsub.f32 %v1810, %v1816
    %v1826 = vsel %vm293, %v1743, %v1737
    %v1827 = vsel %vm295, %v1749, %v1826
    %v1828 = vsel %vm297, %v1755, %v1827
    %v1829 = vsel %vm299, %v1761, %v1828
    %v1830 = vsel %vm301, %v1767, %v1829
    %v1831 = vsel %vm303, %v1773, %v1830
    %v1832 = vsel %vm305, %v1779, %v1831
    %v1834 = vmul.f32 %v1588, %v1832
    %v1835 = vmul.f32 %v1793, %v1592
    %v1836 = vlaneseq
    %v1837 = vshrl.u32 %v1836, 7
    %v1838 = vsub.s32 2, %v1837
    %v1839 = vrot.slane %v1835, %v1838
    %v1840 = vmul.f32 %v1590, %v1839
    %v1841 = vsub.f32 %v1834, %v1840
    %v1842 = vmul.f32 %v1665, %v1817
    %v1843 = vrot.slane %v1842, 4
    %v1844 = vadd.f32 %v1842, %v1843
    %v1845 = vrot.slane %v1844, 2
    %v1846 = vadd.f32 %v1844, %v1845
    %v1847 = vrot.slane %v1846, 1
    %v1848 = vadd.f32 %v1846, %v1847
    %v1849 = vmul.f32 %v1589, %v1841
    %v1850 = vrot.slane %v1849, 4
    %v1851 = vadd.f32 %v1849, %v1850
    %v1852 = vrot.slane %v1851, 2
    %v1853 = vadd.f32 %v1851, %v1852
    %v1854 = vrot.slane %v1853, 1
    %v1855 = vadd.f32 %v1853, %v1854
    %v1856 = vsub.f32 %v1225, %v1855
    %v1857 = vadd.f32 %v1856, %v1848
    %v1858 = vsub.f32 %v1665, %v1589
    %v1859 = vsub.f32 %v1857, %v1225
    %v1860 = vlaneseq
    %v1861 = vshrl.u32 %v1860, 7
    %v1862 = vsub.s32 2, %v1861
    %v1863 = vrot.slane %v1859, %v1862
    %v1864 = vmul.f32 %v1863, %v1587
    %v1865 = vadd.f32 %v1858, %v1864
    %v1867 = vcombine.high %v1865, %v1865
    %v1869 = vunpack.c.l.s4 1966171168
    %v1870 = vunpack.c.0.s8 %v1869
    %v1871 = vlaneseq
    %v1872 = vshrl.u32 %v1871, 7
    %v1873 = vsub.s32 %v1870, %v1872
    %v1874 = vrot.slane %v1865, %v1873
    %v1876 = vunpack.c.l.s4 1966171168
    %v1877 = vunpack.c.0.s8 %v1876
    %v1878 = vlaneseq
    %v1879 = vshrl.u32 %v1878, 7
    %v1880 = vsub.s32 %v1877, %v1879
    %v1881 = vrot.slane %v1867, %v1880
    %v1882 = vcombine.high %v1874, %v1874
    %v1883 = vcombine.high %v1881, %v1881
    %v1885 = vunpack.c.l.s4 1966171168
    %v1886 = vunpack.c.0.s8 %v1885
    %v1887 = vlaneseq
    %v1888 = vshrl.u32 %v1887, 7
    %v1889 = vsub.s32 %v1886, %v1888
    %v1890 = vrot.slane %v1874, %v1889
    %v1892 = vunpack.c.l.s4 1966171168
    %v1893 = vunpack.c.0.s8 %v1892
    %v1894 = vlaneseq
    %v1895 = vshrl.u32 %v1894, 7
    %v1896 = vsub.s32 %v1893, %v1895
    %v1897 = vrot.slane %v1881, %v1896
    %v1899 = vunpack.c.l.s4 1966171168
    %v1900 = vunpack.c.0.s8 %v1899
    %v1901 = vlaneseq
    %v1902 = vshrl.u32 %v1901, 7
    %v1903 = vsub.s32 %v1900, %v1902
    %v1904 = vrot.slane %v1882, %v1903
    %v1906 = vunpack.c.l.s4 1966171168
    %v1907 = vunpack.c.0.s8 %v1906
    %v1908 = vlaneseq
    %v1909 = vshrl.u32 %v1908, 7
    %v1910 = vsub.s32 %v1907, %v1909
    %v1911 = vrot.slane %v1883, %v1910
    %v1912 = vcombine.high %v1890, %v1890
    %v1913 = vcombine.high %v1897, %v1897
    %v1914 = vcombine.high %v1904, %v1904
    %v1915 = vcombine.high %v1911, %v1911
    %v1916 = vlaneseq
    %v1917 = vshrl.u32 %v1916, 7
    %v1918 = vsub.s32 0, %v1917
    %v1919 = vrot.slane %v1890, %v1918
    %v1920 = vlaneseq
    %v1921 = vshrl.u32 %v1920, 7
    %v1922 = vsub.s32 0, %v1921
    %v1923 = vrot.slane %v1904, %v1922
    %v1924 = vlaneseq
    %v1925 = vshrl.u32 %v1924, 7
    %v1926 = vsub.s32 0, %v1925
    %v1927 = vrot.slane %v1912, %v1926
    %v1928 = vlaneseq
    %v1929 = vshrl.u32 %v1928, 7
    %v1930 = vsub.s32 0, %v1929
    %v1931 = vrot.slane %v1914, %v1930
    %v1932 = vlaneseq
    %v1933 = vshrl.u32 %v1932, 7
    %v1934 = vsub.s32 0, %v1933
    %v1935 = vrot.slane %v1897, %v1934
    %v1936 = vlaneseq
    %v1937 = vshrl.u32 %v1936, 7
    %v1938 = vsub.s32 0, %v1937
    %v1939 = vrot.slane %v1911, %v1938
    %v1940 = vlaneseq
    %v1941 = vshrl.u32 %v1940, 7
    %v1942 = vsub.s32 0, %v1941
    %v1943 = vrot.slane %v1913, %v1942
    %v1944 = vlaneseq
    %v1945 = vshrl.u32 %v1944, 7
    %v1946 = vsub.s32 0, %v1945
    %v1947 = vrot.slane %v1915, %v1946
    %v1956 = vmul.f32 %v1587, %v1919
    %v1957 = vmul.f32 %v1587, %v1923
    %v1958 = vmul.f32 %v1587, %v1927
    %v1959 = vmul.f32 %v1587, %v1931
    %v1960 = vmul.f32 %v1587, %v1935
    %v1961 = vmul.f32 %v1587, %v1939
    %v1962 = vmul.f32 %v1587, %v1943
    %v1963 = vmul.f32 %v1587, %v1947
    %v1964 = vadd.f32 %v1223, %v1956
    %v1965 = vadd.f32 %v1224, %v1957
    %v1966 = vadd.f32 %v1225, %v1958
    %v1967 = vadd.f32 %v1226, %v1959
    %v1968 = vadd.f32 %v1227, %v1960
    %v1969 = vadd.f32 %v1228, %v1961
    %v1970 = vadd.f32 %v1229, %v1962
    %v1971 = vadd.f32 %v1230, %v1963
    %v1972 = vmul.f32 %v75, %v1858
    %v1973 = vmul.f32 %v74, %v1858
    %v1974 = vadd.f32 %v1964, %v1972
    %v1975 = vadd.f32 %v1965, %v1972
    %v1976 = vadd.f32 %v1966, %v1973
    %v1977 = vadd.f32 %v1967, %v1972
    %v1978 = vadd.f32 %v1968, %v1972
    %v1979 = vadd.f32 %v1969, %v1972
    %v1980 = vadd.f32 %v1970, %v1972
    %v1981 = vadd.f32 %v1971, %v1972
    %v1982 = vrcp.pop %v1856
    %v1983 = vmul.f32 1.0, %v1982
    %v1984 = vsub.f32 0.0, %v1983
    %v1985 = vlaneseq
    %v1986 = vshrl.u32 %v1985, 7
    %v1987 = vsub.s32 2, %v1986
    %v1988 = vrot.slane %v1984, %v1987
    %v1989 = vmul.f32 %v1988, %v1817
    %v1990 = vlaneseq
    %v1991 = vshrl.u32 %v1990, 7
    %v1992 = vsub.s32 2, %v1991
    %v1993 = vrot.slane %v1592, %v1992
    %v1994 = vmul.f32 %v1590, %v1993
    %v1996 = vcombine.high %v1994, %v1994
    %v1998 = vunpack.c.l.s4 1966171168
    %v1999 = vunpack.c.0.s8 %v1998
    %v2000 = vlaneseq
    %v2001 = vshrl.u32 %v2000, 7
    %v2002 = vsub.s32 %v1999, %v2001
    %v2003 = vrot.slane %v1994, %v2002
    %v2005 = vunpack.c.l.s4 1966171168
    %v2006 = vunpack.c.0.s8 %v2005
    %v2007 = vlaneseq
    %v2008 = vshrl.u32 %v2007, 7
    %v2009 = vsub.s32 %v2006, %v2008
    %v2010 = vrot.slane %v1996, %v2009
    %v2011 = vcombine.high %v2003, %v2003
    %v2012 = vcombine.high %v2010, %v2010
    %v2014 = vunpack.c.l.s4 1966171168
    %v2015 = vunpack.c.0.s8 %v2014
    %v2016 = vlaneseq
    %v2017 = vshrl.u32 %v2016, 7
    %v2018 = vsub.s32 %v2015, %v2017
    %v2019 = vrot.slane %v2003, %v2018
    %v2021 = vunpack.c.l.s4 1966171168
    %v2022 = vunpack.c.0.s8 %v2021
    %v2023 = vlaneseq
    %v2024 = vshrl.u32 %v2023, 7
    %v2025 = vsub.s32 %v2022, %v2024
    %v2026 = vrot.slane %v2010, %v2025
    %v2028 = vunpack.c.l.s4 1966171168
    %v2029 = vunpack.c.0.s8 %v2028
    %v2030 = vlaneseq
    %v2031 = vshrl.u32 %v2030, 7
    %v2032 = vsub.s32 %v2029, %v2031
    %v2033 = vrot.slane %v2011, %v2032
    %v2035 = vunpack.c.l.s4 1966171168
    %v2036 = vunpack.c.0.s8 %v2035
    %v2037 = vlaneseq
    %v2038 = vshrl.u32 %v2037, 7
    %v2039 = vsub.s32 %v2036, %v2038
    %v2040 = vrot.slane %v2012, %v2039
    %v2041 = vcombine.high %v2019, %v2019
    %v2042 = vcombine.high %v2026, %v2026
    %v2043 = vcombine.high %v2033, %v2033
    %v2044 = vcombine.high %v2040, %v2040
    %v2045 = vlaneseq
    %v2046 = vshrl.u32 %v2045, 7
    %v2047 = vsub.s32 0, %v2046
    %v2048 = vrot.slane %v2019, %v2047
    %v2049 = vlaneseq
    %v2050 = vshrl.u32 %v2049, 7
    %v2051 = vsub.s32 0, %v2050
    %v2052 = vrot.slane %v2033, %v2051
    %v2053 = vlaneseq
    %v2054 = vshrl.u32 %v2053, 7
    %v2055 = vsub.s32 0, %v2054
    %v2056 = vrot.slane %v2041, %v2055
    %v2057 = vlaneseq
    %v2058 = vshrl.u32 %v2057, 7
    %v2059 = vsub.s32 0, %v2058
    %v2060 = vrot.slane %v2043, %v2059
    %v2061 = vlaneseq
    %v2062 = vshrl.u32 %v2061, 7
    %v2063 = vsub.s32 0, %v2062
    %v2064 = vrot.slane %v2026, %v2063
    %v2065 = vlaneseq
    %v2066 = vshrl.u32 %v2065, 7
    %v2067 = vsub.s32 0, %v2066
    %v2068 = vrot.slane %v2040, %v2067
    %v2069 = vlaneseq
    %v2070 = vshrl.u32 %v2069, 7
    %v2071 = vsub.s32 0, %v2070
    %v2072 = vrot.slane %v2042, %v2071
    %v2073 = vlaneseq
    %v2074 = vshrl.u32 %v2073, 7
    %v2075 = vsub.s32 0, %v2074
    %v2076 = vrot.slane %v2044, %v2075
    %v2085 = vmul.f32 %v2048, %v1590
    %v2086 = vmul.f32 %v2052, %v1590
    %v2087 = vmul.f32 %v2056, %v1590
    %v2088 = vmul.f32 %v2060, %v1590
    %v2089 = vmul.f32 %v2064, %v1590
    %v2090 = vmul.f32 %v2068, %v1590
    %v2091 = vmul.f32 %v2072, %v1590
    %v2092 = vmul.f32 %v2076, %v1590
    %v2093 = vlaneseq
    %v2094 = vshrl.u32 %v2093, 7
    %v2095 = vsub.s32 2, %v2094
    %v2096 = vrot.slane %v1856, %v2095
    %v2097 = vmul.f32 %v2096, %v1989
    %v2099 = vcombine.high %v2097, %v2097
    %v2101 = vunpack.c.l.s4 1966171168
    %v2102 = vunpack.c.0.s8 %v2101
    %v2103 = vlaneseq
    %v2104 = vshrl.u32 %v2103, 7
    %v2105 = vsub.s32 %v2102, %v2104
    %v2106 = vrot.slane %v2097, %v2105
    %v2108 = vunpack.c.l.s4 1966171168
    %v2109 = vunpack.c.0.s8 %v2108
    %v2110 = vlaneseq
    %v2111 = vshrl.u32 %v2110, 7
    %v2112 = vsub.s32 %v2109, %v2111
    %v2113 = vrot.slane %v2099, %v2112
    %v2114 = vcombine.high %v2106, %v2106
    %v2115 = vcombine.high %v2113, %v2113
    %v2117 = vunpack.c.l.s4 1966171168
    %v2118 = vunpack.c.0.s8 %v2117
    %v2119 = vlaneseq
    %v2120 = vshrl.u32 %v2119, 7
    %v2121 = vsub.s32 %v2118, %v2120
    %v2122 = vrot.slane %v2106, %v2121
    %v2124 = vunpack.c.l.s4 1966171168
    %v2125 = vunpack.c.0.s8 %v2124
    %v2126 = vlaneseq
    %v2127 = vshrl.u32 %v2126, 7
    %v2128 = vsub.s32 %v2125, %v2127
    %v2129 = vrot.slane %v2113, %v2128
    %v2131 = vunpack.c.l.s4 1966171168
    %v2132 = vunpack.c.0.s8 %v2131
    %v2133 = vlaneseq
    %v2134 = vshrl.u32 %v2133, 7
    %v2135 = vsub.s32 %v2132, %v2134
    %v2136 = vrot.slane %v2114, %v2135
    %v2138 = vunpack.c.l.s4 1966171168
    %v2139 = vunpack.c.0.s8 %v2138
    %v2140 = vlaneseq
    %v2141 = vshrl.u32 %v2140, 7
    %v2142 = vsub.s32 %v2139, %v2141
    %v2143 = vrot.slane %v2115, %v2142
    %v2144 = vcombine.high %v2122, %v2122
    %v2145 = vcombine.high %v2129, %v2129
    %v2146 = vcombine.high %v2136, %v2136
    %v2147 = vcombine.high %v2143, %v2143
    %v2148 = vlaneseq
    %v2149 = vshrl.u32 %v2148, 7
    %v2150 = vsub.s32 0, %v2149
    %v2151 = vrot.slane %v2122, %v2150
    %v2152 = vlaneseq
    %v2153 = vshrl.u32 %v2152, 7
    %v2154 = vsub.s32 0, %v2153
    %v2155 = vrot.slane %v2136, %v2154
    %v2156 = vlaneseq
    %v2157 = vshrl.u32 %v2156, 7
    %v2158 = vsub.s32 0, %v2157
    %v2159 = vrot.slane %v2144, %v2158
    %v2160 = vlaneseq
    %v2161 = vshrl.u32 %v2160, 7
    %v2162 = vsub.s32 0, %v2161
    %v2163 = vrot.slane %v2146, %v2162
    %v2164 = vlaneseq
    %v2165 = vshrl.u32 %v2164, 7
    %v2166 = vsub.s32 0, %v2165
    %v2167 = vrot.slane %v2129, %v2166
    %v2168 = vlaneseq
    %v2169 = vshrl.u32 %v2168, 7
    %v2170 = vsub.s32 0, %v2169
    %v2171 = vrot.slane %v2143, %v2170
    %v2172 = vlaneseq
    %v2173 = vshrl.u32 %v2172, 7
    %v2174 = vsub.s32 0, %v2173
    %v2175 = vrot.slane %v2145, %v2174
    %v2176 = vlaneseq
    %v2177 = vshrl.u32 %v2176, 7
    %v2178 = vsub.s32 0, %v2177
    %v2179 = vrot.slane %v2147, %v2178
    %v2188 = vmul.f32 %v2151, %v1989
    %v2189 = vmul.f32 %v2155, %v1989
    %v2190 = vmul.f32 %v2159, %v1989
    %v2191 = vmul.f32 %v2163, %v1989
    %v2192 = vmul.f32 %v2167, %v1989
    %v2193 = vmul.f32 %v2171, %v1989
    %v2194 = vmul.f32 %v2175, %v1989
    %v2195 = vmul.f32 %v2179, %v1989
    %v2196 = vsub.f32 %v2085, %v2188
    %v2197 = vsub.f32 %v2086, %v2189
    %v2198 = vsub.f32 %v2087, %v2190
    %v2199 = vsub.f32 %v2088, %v2191
    %v2200 = vsub.f32 %v2089, %v2192
    %v2201 = vsub.f32 %v2090, %v2193
    %v2202 = vsub.f32 %v2091, %v2194
    %v2203 = vsub.f32 %v2092, %v2195
    %v2204 = vsub.f32 %v1590, %v1989
    %v2205 = vsub.f32 %v1579, %v1983
    %v2206 = vlaneseq
    %v2207 = vshrl.u32 %v2206, 7
    %v2208 = vsub.s32 2, %v2207
    %v2209 = vrot.slane %v2205, %v2208
    %v2210 = vmul.f32 %v2209, %v1587
    %v2211 = vadd.f32 %v2204, %v2210
    %v2212 = vadd.f32 %v1577, %v2196
    %v2213 = vadd.f32 %v1578, %v2197
    %v2214 = vadd.f32 %v1579, %v2198
    %v2215 = vadd.f32 %v1580, %v2199
    %v2216 = vadd.f32 %v1581, %v2200
    %v2217 = vadd.f32 %v1582, %v2201
    %v2218 = vadd.f32 %v1583, %v2202
    %v2219 = vadd.f32 %v1584, %v2203
    %v2221 = vcombine.high %v2211, %v2211
    %v2223 = vunpack.c.l.s4 1966171168
    %v2224 = vunpack.c.0.s8 %v2223
    %v2225 = vlaneseq
    %v2226 = vshrl.u32 %v2225, 7
    %v2227 = vsub.s32 %v2224, %v2226
    %v2228 = vrot.slane %v2211, %v2227
    %v2230 = vunpack.c.l.s4 1966171168
    %v2231 = vunpack.c.0.s8 %v2230
    %v2232 = vlaneseq
    %v2233 = vshrl.u32 %v2232, 7
    %v2234 = vsub.s32 %v2231, %v2233
    %v2235 = vrot.slane %v2221, %v2234
    %v2236 = vcombine.high %v2228, %v2228
    %v2237 = vcombine.high %v2235, %v2235
    %v2239 = vunpack.c.l.s4 1966171168
    %v2240 = vunpack.c.0.s8 %v2239
    %v2241 = vlaneseq
    %v2242 = vshrl.u32 %v2241, 7
    %v2243 = vsub.s32 %v2240, %v2242
    %v2244 = vrot.slane %v2228, %v2243
    %v2246 = vunpack.c.l.s4 1966171168
    %v2247 = vunpack.c.0.s8 %v2246
    %v2248 = vlaneseq
    %v2249 = vshrl.u32 %v2248, 7
    %v2250 = vsub.s32 %v2247, %v2249
    %v2251 = vrot.slane %v2235, %v2250
    %v2253 = vunpack.c.l.s4 1966171168
    %v2254 = vunpack.c.0.s8 %v2253
    %v2255 = vlaneseq
    %v2256 = vshrl.u32 %v2255, 7
    %v2257 = vsub.s32 %v2254, %v2256
    %v2258 = vrot.slane %v2236, %v2257
    %v2260 = vunpack.c.l.s4 1966171168
    %v2261 = vunpack.c.0.s8 %v2260
    %v2262 = vlaneseq
    %v2263 = vshrl.u32 %v2262, 7
    %v2264 = vsub.s32 %v2261, %v2263
    %v2265 = vrot.slane %v2237, %v2264
    %v2266 = vcombine.high %v2244, %v2244
    %v2267 = vcombine.high %v2251, %v2251
    %v2268 = vcombine.high %v2258, %v2258
    %v2269 = vcombine.high %v2265, %v2265
    %v2270 = vlaneseq
    %v2271 = vshrl.u32 %v2270, 7
    %v2272 = vsub.s32 0, %v2271
    %v2273 = vrot.slane %v2244, %v2272
    %v2274 = vlaneseq
    %v2275 = vshrl.u32 %v2274, 7
    %v2276 = vsub.s32 0, %v2275
    %v2277 = vrot.slane %v2258, %v2276
    %v2278 = vlaneseq
    %v2279 = vshrl.u32 %v2278, 7
    %v2280 = vsub.s32 0, %v2279
    %v2281 = vrot.slane %v2266, %v2280
    %v2282 = vlaneseq
    %v2283 = vshrl.u32 %v2282, 7
    %v2284 = vsub.s32 0, %v2283
    %v2285 = vrot.slane %v2268, %v2284
    %v2286 = vlaneseq
    %v2287 = vshrl.u32 %v2286, 7
    %v2288 = vsub.s32 0, %v2287
    %v2289 = vrot.slane %v2251, %v2288
    %v2290 = vlaneseq
    %v2291 = vshrl.u32 %v2290, 7
    %v2292 = vsub.s32 0, %v2291
    %v2293 = vrot.slane %v2265, %v2292
    %v2294 = vlaneseq
    %v2295 = vshrl.u32 %v2294, 7
    %v2296 = vsub.s32 0, %v2295
    %v2297 = vrot.slane %v2267, %v2296
    %v2298 = vlaneseq
    %v2299 = vshrl.u32 %v2298, 7
    %v2300 = vsub.s32 0, %v2299
    %v2301 = vrot.slane %v2269, %v2300
    %v2310 = vmul.f32 %v1587, %v2273
    %v2311 = vmul.f32 %v1587, %v2277
    %v2312 = vmul.f32 %v1587, %v2281
    %v2313 = vmul.f32 %v1587, %v2285
    %v2314 = vmul.f32 %v1587, %v2289
    %v2315 = vmul.f32 %v1587, %v2293
    %v2316 = vmul.f32 %v1587, %v2297
    %v2317 = vmul.f32 %v1587, %v2301
    %v2318 = vadd.f32 %v2212, %v2310
    %v2319 = vadd.f32 %v2213, %v2311
    %v2320 = vadd.f32 %v2214, %v2312
    %v2321 = vadd.f32 %v2215, %v2313
    %v2322 = vadd.f32 %v2216, %v2314
    %v2323 = vadd.f32 %v2217, %v2315
    %v2324 = vadd.f32 %v2218, %v2316
    %v2325 = vadd.f32 %v2219, %v2317
    %v2326 = vmul.f32 %v75, %v2204
    %v2327 = vmul.f32 %v74, %v2204
    %v2328 = vadd.f32 %v2318, %v2326
    %v2329 = vadd.f32 %v2319, %v2326
    %v2330 = vadd.f32 %v2320, %v2327
    %v2331 = vadd.f32 %v2321, %v2326
    %v2332 = vadd.f32 %v2322, %v2326
    %v2333 = vadd.f32 %v2323, %v2326
    %v2334 = vadd.f32 %v2324, %v2326
    %v2335 = vadd.f32 %v2325, %v2326
    %vm2336 = vcmp.eq.s32.totalorder %v73, 3
    %v2337 = vsel %vm2336, 1, 0
    %v2338 = vcvt.s32.f32 %v2337
    %v2339 = vsub.f32 1.0, %v2338
    %v2340 = vmul.f32 %v1977, %v2339
    %v2341 = vmul.f32 %v2331, %v2339
    %v2342 = vrcp.pop %v2331
    %v2343 = vmul.f32 1.0, %v2342
    %s2344 = scalar_lea.vmem [#allocation2], 24
    %v2345 = vld [vmem:[%s2344] sm:$0xff]
    %v2347 = vsel %vm85, %v2345, 0
    %2349 = vmatprep.subr.mxu0 0.0
    %2350 = vmatpush1.msra.mxu0 %v2340
    %2351 = vmatprep.subr.mxu0 0.0
    %2352 = vmatpush1.msra.mxu0 0.0
    %2353 = vmatprep.subr.mxu0 0.0
    %2354 = vmatpush1.msra.mxu0 0.0
    %2355 = vmatprep.subr.mxu0 0.0
    %2356 = vmatpush1.msra.mxu0 0.0
    %2357 = vmatprep.subr.mxu0 0.0
    %2358 = vmatpush1.msra.mxu0 0.0
    %2359 = vmatprep.subr.mxu0 0.0
    %2360 = vmatpush1.msra.mxu0 0.0
    %2361 = vmatprep.subr.mxu0 0.0
    %2362 = vmatpush1.msra.mxu0 0.0
    %2363 = vmatprep.subr.mxu0 0.0
    %2364 = vmatpush1.msra.mxu0 0.0
    %2365 = vmatprep.subr.mxu0 0.0
    %2366 = vmatpush1.msra.mxu0 0.0
    %2367 = vmatprep.subr.mxu0 0.0
    %2368 = vmatpush1.msra.mxu0 0.0
    %2369 = vmatprep.subr.mxu0 0.0
    %2370 = vmatpush1.msra.mxu0 0.0
    %2371 = vmatprep.subr.mxu0 0.0
    %2372 = vmatpush1.msra.mxu0 0.0
    %2373 = vmatprep.subr.mxu0 0.0
    %2374 = vmatpush1.msra.mxu0 0.0
    %2375 = vmatprep.subr.mxu0 0.0
    %2376 = vmatpush1.msra.mxu0 0.0
    %2377 = vmatprep.subr.mxu0 0.0
    %2378 = vmatpush1.msra.mxu0 0.0
    %2379 = vmatprep.subr.mxu0 0.0
    %2380 = vmatpush1.msra.mxu0 0.0
    %2381 = vmatprep.subr.mxu0 0.0
    %2382 = vmatpush1.msra.mxu0 0.0
    %2383 = vmatprep.subr.mxu0 0.0
    %2384 = vmatpush1.msra.mxu0 0.0
    %2385 = vmatprep.subr.mxu0 0.0
    %2386 = vmatpush1.msra.mxu0 0.0
    %2387 = vmatprep.subr.mxu0 0.0
    %2388 = vmatpush1.msra.mxu0 0.0
    %2389 = vmatprep.subr.mxu0 0.0
    %2390 = vmatpush1.msra.mxu0 0.0
    %2391 = vmatprep.subr.mxu0 0.0
    %2392 = vmatpush1.msra.mxu0 0.0
    %2393 = vmatprep.subr.mxu0 0.0
    %2394 = vmatpush1.msra.mxu0 0.0
    %2395 = vmatprep.subr.mxu0 0.0
    %2396 = vmatpush1.msra.mxu0 0.0
    %2397 = vmatprep.subr.mxu0 0.0
    %2398 = vmatpush1.msra.mxu0 0.0
    %2399 = vmatprep.subr.mxu0 0.0
    %2400 = vmatpush1.msra.mxu0 0.0
    %2401 = vmatprep.subr.mxu0 0.0
    %2402 = vmatpush1.msra.mxu0 0.0
    %2403 = vmatprep.subr.mxu0 0.0
    %2404 = vmatpush1.msra.mxu0 0.0
    %2405 = vmatprep.subr.mxu0 0.0
    %2406 = vmatpush1.msra.mxu0 0.0
    %2407 = vmatprep.subr.mxu0 0.0
    %2408 = vmatpush1.msra.mxu0 0.0
    %2409 = vmatprep.subr.mxu0 0.0
    %2410 = vmatpush1.msra.mxu0 0.0
    %2411 = vmatprep.subr.mxu0 0.0
    %2412 = vmatpush1.msra.mxu0 0.0
    %2413 = vmatprep.mubr.f32.mxu0 0.0
    %2414 = vmatmul.mubr.f32.gmra.mrb[0].mxu0 %v2347
    %v2415 = vpop.f32.mrb[0].mxu0
    %v2416 = vadd.f32 0.0, %v2415
    %v2417 = vpop.f32.mrb[0].mxu0
    %2418 = vdwg.mxu0
    %v2419 = vmul.f32 %v2328, %v2416
    %v2420 = vmul.f32 %v2329, %v2416
    %v2421 = vmul.f32 %v2330, %v2416
    %v2422 = vmul.f32 %v2331, %v2416
    %v2423 = vmul.f32 %v2332, %v2416
    %v2424 = vmul.f32 %v2333, %v2416
    %v2425 = vmul.f32 %v2334, %v2416
    %v2426 = vmul.f32 %v2335, %v2416
    %v2427 = vrot.slane %v2419, 4
    %v2428 = vadd.f32 %v2419, %v2427
    %v2429 = vrot.slane %v2428, 2
    %v2430 = vadd.f32 %v2428, %v2429
    %v2431 = vrot.slane %v2430, 1
    %v2432 = vadd.f32 %v2430, %v2431
    %v2433 = vrot.slane %v2420, 4
    %v2434 = vadd.f32 %v2420, %v2433
    %v2435 = vrot.slane %v2434, 2
    %v2436 = vadd.f32 %v2434, %v2435
    %v2437 = vrot.slane %v2436, 1
    %v2438 = vadd.f32 %v2436, %v2437
    %v2439 = vrot.slane %v2421, 4
    %v2440 = vadd.f32 %v2421, %v2439
    %v2441 = vrot.slane %v2440, 2
    %v2442 = vadd.f32 %v2440, %v2441
    %v2443 = vrot.slane %v2442, 1
    %v2444 = vadd.f32 %v2442, %v2443
    %v2445 = vrot.slane %v2422, 4
    %v2446 = vadd.f32 %v2422, %v2445
    %v2447 = vrot.slane %v2446, 2
    %v2448 = vadd.f32 %v2446, %v2447
    %v2449 = vrot.slane %v2448, 1
    %v2450 = vadd.f32 %v2448, %v2449
    %v2451 = vrot.slane %v2423, 4
    %v2452 = vadd.f32 %v2423, %v2451
    %v2453 = vrot.slane %v2452, 2
    %v2454 = vadd.f32 %v2452, %v2453
    %v2455 = vrot.slane %v2454, 1
    %v2456 = vadd.f32 %v2454, %v2455
    %v2457 = vrot.slane %v2424, 4
    %v2458 = vadd.f32 %v2424, %v2457
    %v2459 = vrot.slane %v2458, 2
    %v2460 = vadd.f32 %v2458, %v2459
    %v2461 = vrot.slane %v2460, 1
    %v2462 = vadd.f32 %v2460, %v2461
    %v2463 = vrot.slane %v2425, 4
    %v2464 = vadd.f32 %v2425, %v2463
    %v2465 = vrot.slane %v2464, 2
    %v2466 = vadd.f32 %v2464, %v2465
    %v2467 = vrot.slane %v2466, 1
    %v2468 = vadd.f32 %v2466, %v2467
    %v2469 = vrot.slane %v2426, 4
    %v2470 = vadd.f32 %v2426, %v2469
    %v2471 = vrot.slane %v2470, 2
    %v2472 = vadd.f32 %v2470, %v2471
    %v2473 = vrot.slane %v2472, 1
    %v2474 = vadd.f32 %v2472, %v2473
    %v2475 = vmul.f32 %v2328, %v2340
    %v2476 = vmul.f32 %v2329, %v2340
    %v2477 = vmul.f32 %v2330, %v2340
    %v2478 = vmul.f32 %v2331, %v2340
    %v2479 = vmul.f32 %v2332, %v2340
    %v2480 = vmul.f32 %v2333, %v2340
    %v2481 = vmul.f32 %v2334, %v2340
    %v2482 = vmul.f32 %v2335, %v2340
    %v2483 = vrot.slane %v2475, 4
    %v2484 = vadd.f32 %v2475, %v2483
    %v2485 = vrot.slane %v2484, 2
    %v2486 = vadd.f32 %v2484, %v2485
    %v2487 = vrot.slane %v2486, 1
    %v2488 = vadd.f32 %v2486, %v2487
    %v2489 = vrot.slane %v2476, 4
    %v2490 = vadd.f32 %v2476, %v2489
    %v2491 = vrot.slane %v2490, 2
    %v2492 = vadd.f32 %v2490, %v2491
    %v2493 = vrot.slane %v2492, 1
    %v2494 = vadd.f32 %v2492, %v2493
    %v2495 = vrot.slane %v2477, 4
    %v2496 = vadd.f32 %v2477, %v2495
    %v2497 = vrot.slane %v2496, 2
    %v2498 = vadd.f32 %v2496, %v2497
    %v2499 = vrot.slane %v2498, 1
    %v2500 = vadd.f32 %v2498, %v2499
    %v2501 = vrot.slane %v2478, 4
    %v2502 = vadd.f32 %v2478, %v2501
    %v2503 = vrot.slane %v2502, 2
    %v2504 = vadd.f32 %v2502, %v2503
    %v2505 = vrot.slane %v2504, 1
    %v2506 = vadd.f32 %v2504, %v2505
    %v2507 = vrot.slane %v2479, 4
    %v2508 = vadd.f32 %v2479, %v2507
    %v2509 = vrot.slane %v2508, 2
    %v2510 = vadd.f32 %v2508, %v2509
    %v2511 = vrot.slane %v2510, 1
    %v2512 = vadd.f32 %v2510, %v2511
    %v2513 = vrot.slane %v2480, 4
    %v2514 = vadd.f32 %v2480, %v2513
    %v2515 = vrot.slane %v2514, 2
    %v2516 = vadd.f32 %v2514, %v2515
    %v2517 = vrot.slane %v2516, 1
    %v2518 = vadd.f32 %v2516, %v2517
    %v2519 = vrot.slane %v2481, 4
    %v2520 = vadd.f32 %v2481, %v2519
    %v2521 = vrot.slane %v2520, 2
    %v2522 = vadd.f32 %v2520, %v2521
    %v2523 = vrot.slane %v2522, 1
    %v2524 = vadd.f32 %v2522, %v2523
    %v2525 = vrot.slane %v2482, 4
    %v2526 = vadd.f32 %v2482, %v2525
    %v2527 = vrot.slane %v2526, 2
    %v2528 = vadd.f32 %v2526, %v2527
    %v2529 = vrot.slane %v2528, 1
    %v2530 = vadd.f32 %v2528, %v2529
    %v2531 = vmul.f32 %v2341, %v2416
    %v2532 = vrot.slane %v2531, 4
    %v2533 = vadd.f32 %v2531, %v2532
    %v2534 = vrot.slane %v2533, 2
    %v2535 = vadd.f32 %v2533, %v2534
    %v2536 = vrot.slane %v2535, 1
    %v2537 = vadd.f32 %v2535, %v2536
    %v2538 = vmul.f32 %v2341, %v2340
    %v2539 = vrot.slane %v2538, 4
    %v2540 = vadd.f32 %v2538, %v2539
    %v2541 = vrot.slane %v2540, 2
    %v2542 = vadd.f32 %v2540, %v2541
    %v2543 = vrot.slane %v2542, 1
    %v2544 = vadd.f32 %v2542, %v2543
    %v2553 = vsel %vm293, %v2438, %v2432
    %v2554 = vsel %vm295, %v2444, %v2553
    %v2555 = vsel %vm297, %v2450, %v2554
    %v2556 = vsel %vm299, %v2456, %v2555
    %v2557 = vsel %vm301, %v2462, %v2556
    %v2558 = vsel %vm303, %v2468, %v2557
    %v2559 = vsel %vm305, %v2474, %v2558
    %v2561 = vmul.f32 %v2339, %v2559
    %v2562 = vmul.f32 %v2537, %v2343
    %v2563 = vlaneseq
    %v2564 = vshrl.u32 %v2563, 7
    %v2565 = vsub.s32 3, %v2564
    %v2566 = vrot.slane %v2562, %v2565
    %v2567 = vmul.f32 %v2341, %v2566
    %v2568 = vsub.f32 %v2561, %v2567
    %v2577 = vsel %vm293, %v2494, %v2488
    %v2578 = vsel %vm295, %v2500, %v2577
    %v2579 = vsel %vm297, %v2506, %v2578
    %v2580 = vsel %vm299, %v2512, %v2579
    %v2581 = vsel %vm301, %v2518, %v2580
    %v2582 = vsel %vm303, %v2524, %v2581
    %v2583 = vsel %vm305, %v2530, %v2582
    %v2585 = vmul.f32 %v2339, %v2583
    %v2586 = vmul.f32 %v2544, %v2343
    %v2587 = vlaneseq
    %v2588 = vshrl.u32 %v2587, 7
    %v2589 = vsub.s32 3, %v2588
    %v2590 = vrot.slane %v2586, %v2589
    %v2591 = vmul.f32 %v2341, %v2590
    %v2592 = vsub.f32 %v2585, %v2591
    %v2593 = vmul.f32 %v2416, %v2568
    %v2594 = vrot.slane %v2593, 4
    %v2595 = vadd.f32 %v2593, %v2594
    %v2596 = vrot.slane %v2595, 2
    %v2597 = vadd.f32 %v2595, %v2596
    %v2598 = vrot.slane %v2597, 1
    %v2599 = vadd.f32 %v2597, %v2598
    %v2600 = vmul.f32 %v2340, %v2592
    %v2601 = vrot.slane %v2600, 4
    %v2602 = vadd.f32 %v2600, %v2601
    %v2603 = vrot.slane %v2602, 2
    %v2604 = vadd.f32 %v2602, %v2603
    %v2605 = vrot.slane %v2604, 1
    %v2606 = vadd.f32 %v2604, %v2605
    %v2607 = vsub.f32 %v1977, %v2606
    %v2608 = vadd.f32 %v2607, %v2599
    %v2609 = vsub.f32 %v2416, %v2340
    %v2610 = vsub.f32 %v2608, %v1977
    %v2611 = vlaneseq
    %v2612 = vshrl.u32 %v2611, 7
    %v2613 = vsub.s32 3, %v2612
    %v2614 = vrot.slane %v2610, %v2613
    %v2615 = vmul.f32 %v2614, %v2338
    %v2616 = vadd.f32 %v2609, %v2615
    %v2618 = vcombine.high %v2616, %v2616
    %v2620 = vunpack.c.l.s4 1966171168
    %v2621 = vunpack.c.0.s8 %v2620
    %v2622 = vlaneseq
    %v2623 = vshrl.u32 %v2622, 7
    %v2624 = vsub.s32 %v2621, %v2623
    %v2625 = vrot.slane %v2616, %v2624
    %v2627 = vunpack.c.l.s4 1966171168
    %v2628 = vunpack.c.0.s8 %v2627
    %v2629 = vlaneseq
    %v2630 = vshrl.u32 %v2629, 7
    %v2631 = vsub.s32 %v2628, %v2630
    %v2632 = vrot.slane %v2618, %v2631
    %v2633 = vcombine.high %v2625, %v2625
    %v2634 = vcombine.high %v2632, %v2632
    %v2636 = vunpack.c.l.s4 1966171168
    %v2637 = vunpack.c.0.s8 %v2636
    %v2638 = vlaneseq
    %v2639 = vshrl.u32 %v2638, 7
    %v2640 = vsub.s32 %v2637, %v2639
    %v2641 = vrot.slane %v2625, %v2640
    %v2643 = vunpack.c.l.s4 1966171168
    %v2644 = vunpack.c.0.s8 %v2643
    %v2645 = vlaneseq
    %v2646 = vshrl.u32 %v2645, 7
    %v2647 = vsub.s32 %v2644, %v2646
    %v2648 = vrot.slane %v2632, %v2647
    %v2650 = vunpack.c.l.s4 1966171168
    %v2651 = vunpack.c.0.s8 %v2650
    %v2652 = vlaneseq
    %v2653 = vshrl.u32 %v2652, 7
    %v2654 = vsub.s32 %v2651, %v2653
    %v2655 = vrot.slane %v2633, %v2654
    %v2657 = vunpack.c.l.s4 1966171168
    %v2658 = vunpack.c.0.s8 %v2657
    %v2659 = vlaneseq
    %v2660 = vshrl.u32 %v2659, 7
    %v2661 = vsub.s32 %v2658, %v2660
    %v2662 = vrot.slane %v2634, %v2661
    %v2663 = vcombine.high %v2641, %v2641
    %v2664 = vcombine.high %v2648, %v2648
    %v2665 = vcombine.high %v2655, %v2655
    %v2666 = vcombine.high %v2662, %v2662
    %v2667 = vlaneseq
    %v2668 = vshrl.u32 %v2667, 7
    %v2669 = vsub.s32 0, %v2668
    %v2670 = vrot.slane %v2641, %v2669
    %v2671 = vlaneseq
    %v2672 = vshrl.u32 %v2671, 7
    %v2673 = vsub.s32 0, %v2672
    %v2674 = vrot.slane %v2655, %v2673
    %v2675 = vlaneseq
    %v2676 = vshrl.u32 %v2675, 7
    %v2677 = vsub.s32 0, %v2676
    %v2678 = vrot.slane %v2663, %v2677
    %v2679 = vlaneseq
    %v2680 = vshrl.u32 %v2679, 7
    %v2681 = vsub.s32 0, %v2680
    %v2682 = vrot.slane %v2665, %v2681
    %v2683 = vlaneseq
    %v2684 = vshrl.u32 %v2683, 7
    %v2685 = vsub.s32 0, %v2684
    %v2686 = vrot.slane %v2648, %v2685
    %v2687 = vlaneseq
    %v2688 = vshrl.u32 %v2687, 7
    %v2689 = vsub.s32 0, %v2688
    %v2690 = vrot.slane %v2662, %v2689
    %v2691 = vlaneseq
    %v2692 = vshrl.u32 %v2691, 7
    %v2693 = vsub.s32 0, %v2692
    %v2694 = vrot.slane %v2664, %v2693
    %v2695 = vlaneseq
    %v2696 = vshrl.u32 %v2695, 7
    %v2697 = vsub.s32 0, %v2696
    %v2698 = vrot.slane %v2666, %v2697
    %v2707 = vmul.f32 %v2338, %v2670
    %v2708 = vmul.f32 %v2338, %v2674
    %v2709 = vmul.f32 %v2338, %v2678
    %v2710 = vmul.f32 %v2338, %v2682
    %v2711 = vmul.f32 %v2338, %v2686
    %v2712 = vmul.f32 %v2338, %v2690
    %v2713 = vmul.f32 %v2338, %v2694
    %v2714 = vmul.f32 %v2338, %v2698
    %v2715 = vadd.f32 %v1974, %v2707
    %v2716 = vadd.f32 %v1975, %v2708
    %v2717 = vadd.f32 %v1976, %v2709
    %v2718 = vadd.f32 %v1977, %v2710
    %v2719 = vadd.f32 %v1978, %v2711
    %v2720 = vadd.f32 %v1979, %v2712
    %v2721 = vadd.f32 %v1980, %v2713
    %v2722 = vadd.f32 %v1981, %v2714
    %v2723 = vmul.f32 %v75, %v2609
    %v2724 = vmul.f32 %v74, %v2609
    %v2725 = vadd.f32 %v2715, %v2723
    %v2726 = vadd.f32 %v2716, %v2723
    %v2727 = vadd.f32 %v2717, %v2723
    %v2728 = vadd.f32 %v2718, %v2724
    %v2729 = vadd.f32 %v2719, %v2723
    %v2730 = vadd.f32 %v2720, %v2723
    %v2731 = vadd.f32 %v2721, %v2723
    %v2732 = vadd.f32 %v2722, %v2723
    %v2733 = vrcp.pop %v2607
    %v2734 = vmul.f32 1.0, %v2733
    %v2735 = vsub.f32 0.0, %v2734
    %v2736 = vlaneseq
    %v2737 = vshrl.u32 %v2736, 7
    %v2738 = vsub.s32 3, %v2737
    %v2739 = vrot.slane %v2735, %v2738
    %v2740 = vmul.f32 %v2739, %v2568
    %v2741 = vlaneseq
    %v2742 = vshrl.u32 %v2741, 7
    %v2743 = vsub.s32 3, %v2742
    %v2744 = vrot.slane %v2343, %v2743
    %v2745 = vmul.f32 %v2341, %v2744
    %v2747 = vcombine.high %v2745, %v2745
    %v2749 = vunpack.c.l.s4 1966171168
    %v2750 = vunpack.c.0.s8 %v2749
    %v2751 = vlaneseq
    %v2752 = vshrl.u32 %v2751, 7
    %v2753 = vsub.s32 %v2750, %v2752
    %v2754 = vrot.slane %v2745, %v2753
    %v2756 = vunpack.c.l.s4 1966171168
    %v2757 = vunpack.c.0.s8 %v2756
    %v2758 = vlaneseq
    %v2759 = vshrl.u32 %v2758, 7
    %v2760 = vsub.s32 %v2757, %v2759
    %v2761 = vrot.slane %v2747, %v2760
    %v2762 = vcombine.high %v2754, %v2754
    %v2763 = vcombine.high %v2761, %v2761
    %v2765 = vunpack.c.l.s4 1966171168
    %v2766 = vunpack.c.0.s8 %v2765
    %v2767 = vlaneseq
    %v2768 = vshrl.u32 %v2767, 7
    %v2769 = vsub.s32 %v2766, %v2768
    %v2770 = vrot.slane %v2754, %v2769
    %v2772 = vunpack.c.l.s4 1966171168
    %v2773 = vunpack.c.0.s8 %v2772
    %v2774 = vlaneseq
    %v2775 = vshrl.u32 %v2774, 7
    %v2776 = vsub.s32 %v2773, %v2775
    %v2777 = vrot.slane %v2761, %v2776
    %v2779 = vunpack.c.l.s4 1966171168
    %v2780 = vunpack.c.0.s8 %v2779
    %v2781 = vlaneseq
    %v2782 = vshrl.u32 %v2781, 7
    %v2783 = vsub.s32 %v2780, %v2782
    %v2784 = vrot.slane %v2762, %v2783
    %v2786 = vunpack.c.l.s4 1966171168
    %v2787 = vunpack.c.0.s8 %v2786
    %v2788 = vlaneseq
    %v2789 = vshrl.u32 %v2788, 7
    %v2790 = vsub.s32 %v2787, %v2789
    %v2791 = vrot.slane %v2763, %v2790
    %v2792 = vcombine.high %v2770, %v2770
    %v2793 = vcombine.high %v2777, %v2777
    %v2794 = vcombine.high %v2784, %v2784
    %v2795 = vcombine.high %v2791, %v2791
    %v2796 = vlaneseq
    %v2797 = vshrl.u32 %v2796, 7
    %v2798 = vsub.s32 0, %v2797
    %v2799 = vrot.slane %v2770, %v2798
    %v2800 = vlaneseq
    %v2801 = vshrl.u32 %v2800, 7
    %v2802 = vsub.s32 0, %v2801
    %v2803 = vrot.slane %v2784, %v2802
    %v2804 = vlaneseq
    %v2805 = vshrl.u32 %v2804, 7
    %v2806 = vsub.s32 0, %v2805
    %v2807 = vrot.slane %v2792, %v2806
    %v2808 = vlaneseq
    %v2809 = vshrl.u32 %v2808, 7
    %v2810 = vsub.s32 0, %v2809
    %v2811 = vrot.slane %v2794, %v2810
    %v2812 = vlaneseq
    %v2813 = vshrl.u32 %v2812, 7
    %v2814 = vsub.s32 0, %v2813
    %v2815 = vrot.slane %v2777, %v2814
    %v2816 = vlaneseq
    %v2817 = vshrl.u32 %v2816, 7
    %v2818 = vsub.s32 0, %v2817
    %v2819 = vrot.slane %v2791, %v2818
    %v2820 = vlaneseq
    %v2821 = vshrl.u32 %v2820, 7
    %v2822 = vsub.s32 0, %v2821
    %v2823 = vrot.slane %v2793, %v2822
    %v2824 = vlaneseq
    %v2825 = vshrl.u32 %v2824, 7
    %v2826 = vsub.s32 0, %v2825
    %v2827 = vrot.slane %v2795, %v2826
    %v2836 = vmul.f32 %v2799, %v2341
    %v2837 = vmul.f32 %v2803, %v2341
    %v2838 = vmul.f32 %v2807, %v2341
    %v2839 = vmul.f32 %v2811, %v2341
    %v2840 = vmul.f32 %v2815, %v2341
    %v2841 = vmul.f32 %v2819, %v2341
    %v2842 = vmul.f32 %v2823, %v2341
    %v2843 = vmul.f32 %v2827, %v2341
    %v2844 = vlaneseq
    %v2845 = vshrl.u32 %v2844, 7
    %v2846 = vsub.s32 3, %v2845
    %v2847 = vrot.slane %v2607, %v2846
    %v2848 = vmul.f32 %v2847, %v2740
    %v2850 = vcombine.high %v2848, %v2848
    %v2852 = vunpack.c.l.s4 1966171168
    %v2853 = vunpack.c.0.s8 %v2852
    %v2854 = vlaneseq
    %v2855 = vshrl.u32 %v2854, 7
    %v2856 = vsub.s32 %v2853, %v2855
    %v2857 = vrot.slane %v2848, %v2856
    %v2859 = vunpack.c.l.s4 1966171168
    %v2860 = vunpack.c.0.s8 %v2859
    %v2861 = vlaneseq
    %v2862 = vshrl.u32 %v2861, 7
    %v2863 = vsub.s32 %v2860, %v2862
    %v2864 = vrot.slane %v2850, %v2863
    %v2865 = vcombine.high %v2857, %v2857
    %v2866 = vcombine.high %v2864, %v2864
    %v2868 = vunpack.c.l.s4 1966171168
    %v2869 = vunpack.c.0.s8 %v2868
    %v2870 = vlaneseq
    %v2871 = vshrl.u32 %v2870, 7
    %v2872 = vsub.s32 %v2869, %v2871
    %v2873 = vrot.slane %v2857, %v2872
    %v2875 = vunpack.c.l.s4 1966171168
    %v2876 = vunpack.c.0.s8 %v2875
    %v2877 = vlaneseq
    %v2878 = vshrl.u32 %v2877, 7
    %v2879 = vsub.s32 %v2876, %v2878
    %v2880 = vrot.slane %v2864, %v2879
    %v2882 = vunpack.c.l.s4 1966171168
    %v2883 = vunpack.c.0.s8 %v2882
    %v2884 = vlaneseq
    %v2885 = vshrl.u32 %v2884, 7
    %v2886 = vsub.s32 %v2883, %v2885
    %v2887 = vrot.slane %v2865, %v2886
    %v2889 = vunpack.c.l.s4 1966171168
    %v2890 = vunpack.c.0.s8 %v2889
    %v2891 = vlaneseq
    %v2892 = vshrl.u32 %v2891, 7
    %v2893 = vsub.s32 %v2890, %v2892
    %v2894 = vrot.slane %v2866, %v2893
    %v2895 = vcombine.high %v2873, %v2873
    %v2896 = vcombine.high %v2880, %v2880
    %v2897 = vcombine.high %v2887, %v2887
    %v2898 = vcombine.high %v2894, %v2894
    %v2899 = vlaneseq
    %v2900 = vshrl.u32 %v2899, 7
    %v2901 = vsub.s32 0, %v2900
    %v2902 = vrot.slane %v2873, %v2901
    %v2903 = vlaneseq
    %v2904 = vshrl.u32 %v2903, 7
    %v2905 = vsub.s32 0, %v2904
    %v2906 = vrot.slane %v2887, %v2905
    %v2907 = vlaneseq
    %v2908 = vshrl.u32 %v2907, 7
    %v2909 = vsub.s32 0, %v2908
    %v2910 = vrot.slane %v2895, %v2909
    %v2911 = vlaneseq
    %v2912 = vshrl.u32 %v2911, 7
    %v2913 = vsub.s32 0, %v2912
    %v2914 = vrot.slane %v2897, %v2913
    %v2915 = vlaneseq
    %v2916 = vshrl.u32 %v2915, 7
    %v2917 = vsub.s32 0, %v2916
    %v2918 = vrot.slane %v2880, %v2917
    %v2919 = vlaneseq
    %v2920 = vshrl.u32 %v2919, 7
    %v2921 = vsub.s32 0, %v2920
    %v2922 = vrot.slane %v2894, %v2921
    %v2923 = vlaneseq
    %v2924 = vshrl.u32 %v2923, 7
    %v2925 = vsub.s32 0, %v2924
    %v2926 = vrot.slane %v2896, %v2925
    %v2927 = vlaneseq
    %v2928 = vshrl.u32 %v2927, 7
    %v2929 = vsub.s32 0, %v2928
    %v2930 = vrot.slane %v2898, %v2929
    %v2939 = vmul.f32 %v2902, %v2740
    %v2940 = vmul.f32 %v2906, %v2740
    %v2941 = vmul.f32 %v2910, %v2740
    %v2942 = vmul.f32 %v2914, %v2740
    %v2943 = vmul.f32 %v2918, %v2740
    %v2944 = vmul.f32 %v2922, %v2740
    %v2945 = vmul.f32 %v2926, %v2740
    %v2946 = vmul.f32 %v2930, %v2740
    %v2947 = vsub.f32 %v2836, %v2939
    %v2948 = vsub.f32 %v2837, %v2940
    %v2949 = vsub.f32 %v2838, %v2941
    %v2950 = vsub.f32 %v2839, %v2942
    %v2951 = vsub.f32 %v2840, %v2943
    %v2952 = vsub.f32 %v2841, %v2944
    %v2953 = vsub.f32 %v2842, %v2945
    %v2954 = vsub.f32 %v2843, %v2946
    %v2955 = vsub.f32 %v2341, %v2740
    %v2956 = vsub.f32 %v2331, %v2734
    %v2957 = vlaneseq
    %v2958 = vshrl.u32 %v2957, 7
    %v2959 = vsub.s32 3, %v2958
    %v2960 = vrot.slane %v2956, %v2959
    %v2961 = vmul.f32 %v2960, %v2338
    %v2962 = vadd.f32 %v2955, %v2961
    %v2963 = vadd.f32 %v2328, %v2947
    %v2964 = vadd.f32 %v2329, %v2948
    %v2965 = vadd.f32 %v2330, %v2949
    %v2966 = vadd.f32 %v2331, %v2950
    %v2967 = vadd.f32 %v2332, %v2951
    %v2968 = vadd.f32 %v2333, %v2952
    %v2969 = vadd.f32 %v2334, %v2953
    %v2970 = vadd.f32 %v2335, %v2954
    %v2972 = vcombine.high %v2962, %v2962
    %v2974 = vunpack.c.l.s4 1966171168
    %v2975 = vunpack.c.0.s8 %v2974
    %v2976 = vlaneseq
    %v2977 = vshrl.u32 %v2976, 7
    %v2978 = vsub.s32 %v2975, %v2977
    %v2979 = vrot.slane %v2962, %v2978
    %v2981 = vunpack.c.l.s4 1966171168
    %v2982 = vunpack.c.0.s8 %v2981
    %v2983 = vlaneseq
    %v2984 = vshrl.u32 %v2983, 7
    %v2985 = vsub.s32 %v2982, %v2984
    %v2986 = vrot.slane %v2972, %v2985
    %v2987 = vcombine.high %v2979, %v2979
    %v2988 = vcombine.high %v2986, %v2986
    %v2990 = vunpack.c.l.s4 1966171168
    %v2991 = vunpack.c.0.s8 %v2990
    %v2992 = vlaneseq
    %v2993 = vshrl.u32 %v2992, 7
    %v2994 = vsub.s32 %v2991, %v2993
    %v2995 = vrot.slane %v2979, %v2994
    %v2997 = vunpack.c.l.s4 1966171168
    %v2998 = vunpack.c.0.s8 %v2997
    %v2999 = vlaneseq
    %v3000 = vshrl.u32 %v2999, 7
    %v3001 = vsub.s32 %v2998, %v3000
    %v3002 = vrot.slane %v2986, %v3001
    %v3004 = vunpack.c.l.s4 1966171168
    %v3005 = vunpack.c.0.s8 %v3004
    %v3006 = vlaneseq
    %v3007 = vshrl.u32 %v3006, 7
    %v3008 = vsub.s32 %v3005, %v3007
    %v3009 = vrot.slane %v2987, %v3008
    %v3011 = vunpack.c.l.s4 1966171168
    %v3012 = vunpack.c.0.s8 %v3011
    %v3013 = vlaneseq
    %v3014 = vshrl.u32 %v3013, 7
    %v3015 = vsub.s32 %v3012, %v3014
    %v3016 = vrot.slane %v2988, %v3015
    %v3017 = vcombine.high %v2995, %v2995
    %v3018 = vcombine.high %v3002, %v3002
    %v3019 = vcombine.high %v3009, %v3009
    %v3020 = vcombine.high %v3016, %v3016
    %v3021 = vlaneseq
    %v3022 = vshrl.u32 %v3021, 7
    %v3023 = vsub.s32 0, %v3022
    %v3024 = vrot.slane %v2995, %v3023
    %v3025 = vlaneseq
    %v3026 = vshrl.u32 %v3025, 7
    %v3027 = vsub.s32 0, %v3026
    %v3028 = vrot.slane %v3009, %v3027
    %v3029 = vlaneseq
    %v3030 = vshrl.u32 %v3029, 7
    %v3031 = vsub.s32 0, %v3030
    %v3032 = vrot.slane %v3017, %v3031
    %v3033 = vlaneseq
    %v3034 = vshrl.u32 %v3033, 7
    %v3035 = vsub.s32 0, %v3034
    %v3036 = vrot.slane %v3019, %v3035
    %v3037 = vlaneseq
    %v3038 = vshrl.u32 %v3037, 7
    %v3039 = vsub.s32 0, %v3038
    %v3040 = vrot.slane %v3002, %v3039
    %v3041 = vlaneseq
    %v3042 = vshrl.u32 %v3041, 7
    %v3043 = vsub.s32 0, %v3042
    %v3044 = vrot.slane %v3016, %v3043
    %v3045 = vlaneseq
    %v3046 = vshrl.u32 %v3045, 7
    %v3047 = vsub.s32 0, %v3046
    %v3048 = vrot.slane %v3018, %v3047
    %v3049 = vlaneseq
    %v3050 = vshrl.u32 %v3049, 7
    %v3051 = vsub.s32 0, %v3050
    %v3052 = vrot.slane %v3020, %v3051
    %v3061 = vmul.f32 %v2338, %v3024
    %v3062 = vmul.f32 %v2338, %v3028
    %v3063 = vmul.f32 %v2338, %v3032
    %v3064 = vmul.f32 %v2338, %v3036
    %v3065 = vmul.f32 %v2338, %v3040
    %v3066 = vmul.f32 %v2338, %v3044
    %v3067 = vmul.f32 %v2338, %v3048
    %v3068 = vmul.f32 %v2338, %v3052
    %v3069 = vadd.f32 %v2963, %v3061
    %v3070 = vadd.f32 %v2964, %v3062
    %v3071 = vadd.f32 %v2965, %v3063
    %v3072 = vadd.f32 %v2966, %v3064
    %v3073 = vadd.f32 %v2967, %v3065
    %v3074 = vadd.f32 %v2968, %v3066
    %v3075 = vadd.f32 %v2969, %v3067
    %v3076 = vadd.f32 %v2970, %v3068
    %v3077 = vmul.f32 %v75, %v2955
    %v3078 = vmul.f32 %v74, %v2955
    %v3079 = vadd.f32 %v3069, %v3077
    %v3080 = vadd.f32 %v3070, %v3077
    %v3081 = vadd.f32 %v3071, %v3077
    %v3082 = vadd.f32 %v3072, %v3078
    %v3083 = vadd.f32 %v3073, %v3077
    %v3084 = vadd.f32 %v3074, %v3077
    %v3085 = vadd.f32 %v3075, %v3077
    %v3086 = vadd.f32 %v3076, %v3077
    %vm3087 = vcmp.eq.s32.totalorder %v73, 4
    %v3088 = vsel %vm3087, 1, 0
    %v3089 = vcvt.s32.f32 %v3088
    %v3090 = vsub.f32 1.0, %v3089
    %v3091 = vmul.f32 %v2729, %v3090
    %v3092 = vmul.f32 %v3083, %v3090
    %v3093 = vrcp.pop %v3083
    %v3094 = vmul.f32 1.0, %v3093
    %s3095 = scalar_lea.vmem [#allocation2], 32
    %v3096 = vld [vmem:[%s3095] sm:$0xff]
    %v3098 = vsel %vm85, %v3096, 0
    %3100 = vmatprep.subr.mxu0 0.0
    %3101 = vmatpush1.msra.mxu0 %v3091
    %3102 = vmatprep.subr.mxu0 0.0
    %3103 = vmatpush1.msra.mxu0 0.0
    %3104 = vmatprep.subr.mxu0 0.0
    %3105 = vmatpush1.msra.mxu0 0.0
    %3106 = vmatprep.subr.mxu0 0.0
    %3107 = vmatpush1.msra.mxu0 0.0
    %3108 = vmatprep.subr.mxu0 0.0
    %3109 = vmatpush1.msra.mxu0 0.0
    %3110 = vmatprep.subr.mxu0 0.0
    %3111 = vmatpush1.msra.mxu0 0.0
    %3112 = vmatprep.subr.mxu0 0.0
    %3113 = vmatpush1.msra.mxu0 0.0
    %3114 = vmatprep.subr.mxu0 0.0
    %3115 = vmatpush1.msra.mxu0 0.0
    %3116 = vmatprep.subr.mxu0 0.0
    %3117 = vmatpush1.msra.mxu0 0.0
    %3118 = vmatprep.subr.mxu0 0.0
    %3119 = vmatpush1.msra.mxu0 0.0
    %3120 = vmatprep.subr.mxu0 0.0
    %3121 = vmatpush1.msra.mxu0 0.0
    %3122 = vmatprep.subr.mxu0 0.0
    %3123 = vmatpush1.msra.mxu0 0.0
    %3124 = vmatprep.subr.mxu0 0.0
    %3125 = vmatpush1.msra.mxu0 0.0
    %3126 = vmatprep.subr.mxu0 0.0
    %3127 = vmatpush1.msra.mxu0 0.0
    %3128 = vmatprep.subr.mxu0 0.0
    %3129 = vmatpush1.msra.mxu0 0.0
    %3130 = vmatprep.subr.mxu0 0.0
    %3131 = vmatpush1.msra.mxu0 0.0
    %3132 = vmatprep.subr.mxu0 0.0
    %3133 = vmatpush1.msra.mxu0 0.0
    %3134 = vmatprep.subr.mxu0 0.0
    %3135 = vmatpush1.msra.mxu0 0.0
    %3136 = vmatprep.subr.mxu0 0.0
    %3137 = vmatpush1.msra.mxu0 0.0
    %3138 = vmatprep.subr.mxu0 0.0
    %3139 = vmatpush1.msra.mxu0 0.0
    %3140 = vmatprep.subr.mxu0 0.0
    %3141 = vmatpush1.msra.mxu0 0.0
    %3142 = vmatprep.subr.mxu0 0.0
    %3143 = vmatpush1.msra.mxu0 0.0
    %3144 = vmatprep.subr.mxu0 0.0
    %3145 = vmatpush1.msra.mxu0 0.0
    %3146 = vmatprep.subr.mxu0 0.0
    %3147 = vmatpush1.msra.mxu0 0.0
    %3148 = vmatprep.subr.mxu0 0.0
    %3149 = vmatpush1.msra.mxu0 0.0
    %3150 = vmatprep.subr.mxu0 0.0
    %3151 = vmatpush1.msra.mxu0 0.0
    %3152 = vmatprep.subr.mxu0 0.0
    %3153 = vmatpush1.msra.mxu0 0.0
    %3154 = vmatprep.subr.mxu0 0.0
    %3155 = vmatpush1.msra.mxu0 0.0
    %3156 = vmatprep.subr.mxu0 0.0
    %3157 = vmatpush1.msra.mxu0 0.0
    %3158 = vmatprep.subr.mxu0 0.0
    %3159 = vmatpush1.msra.mxu0 0.0
    %3160 = vmatprep.subr.mxu0 0.0
    %3161 = vmatpush1.msra.mxu0 0.0
    %3162 = vmatprep.subr.mxu0 0.0
    %3163 = vmatpush1.msra.mxu0 0.0
    %3164 = vmatprep.mubr.f32.mxu0 0.0
    %3165 = vmatmul.mubr.f32.gmra.mrb[0].mxu0 %v3098
    %v3166 = vpop.f32.mrb[0].mxu0
    %v3167 = vadd.f32 0.0, %v3166
    %v3168 = vpop.f32.mrb[0].mxu0
    %3169 = vdwg.mxu0
    %v3170 = vmul.f32 %v3079, %v3167
    %v3171 = vmul.f32 %v3080, %v3167
    %v3172 = vmul.f32 %v3081, %v3167
    %v3173 = vmul.f32 %v3082, %v3167
    %v3174 = vmul.f32 %v3083, %v3167
    %v3175 = vmul.f32 %v3084, %v3167
    %v3176 = vmul.f32 %v3085, %v3167
    %v3177 = vmul.f32 %v3086, %v3167
    %v3178 = vrot.slane %v3170, 4
    %v3179 = vadd.f32 %v3170, %v3178
    %v3180 = vrot.slane %v3179, 2
    %v3181 = vadd.f32 %v3179, %v3180
    %v3182 = vrot.slane %v3181, 1
    %v3183 = vadd.f32 %v3181, %v3182
    %v3184 = vrot.slane %v3171, 4
    %v3185 = vadd.f32 %v3171, %v3184
    %v3186 = vrot.slane %v3185, 2
    %v3187 = vadd.f32 %v3185, %v3186
    %v3188 = vrot.slane %v3187, 1
    %v3189 = vadd.f32 %v3187, %v3188
    %v3190 = vrot.slane %v3172, 4
    %v3191 = vadd.f32 %v3172, %v3190
    %v3192 = vrot.slane %v3191, 2
    %v3193 = vadd.f32 %v3191, %v3192
    %v3194 = vrot.slane %v3193, 1
    %v3195 = vadd.f32 %v3193, %v3194
    %v3196 = vrot.slane %v3173, 4
    %v3197 = vadd.f32 %v3173, %v3196
    %v3198 = vrot.slane %v3197, 2
    %v3199 = vadd.f32 %v3197, %v3198
    %v3200 = vrot.slane %v3199, 1
    %v3201 = vadd.f32 %v3199, %v3200
    %v3202 = vrot.slane %v3174, 4
    %v3203 = vadd.f32 %v3174, %v3202
    %v3204 = vrot.slane %v3203, 2
    %v3205 = vadd.f32 %v3203, %v3204
    %v3206 = vrot.slane %v3205, 1
    %v3207 = vadd.f32 %v3205, %v3206
    %v3208 = vrot.slane %v3175, 4
    %v3209 = vadd.f32 %v3175, %v3208
    %v3210 = vrot.slane %v3209, 2
    %v3211 = vadd.f32 %v3209, %v3210
    %v3212 = vrot.slane %v3211, 1
    %v3213 = vadd.f32 %v3211, %v3212
    %v3214 = vrot.slane %v3176, 4
    %v3215 = vadd.f32 %v3176, %v3214
    %v3216 = vrot.slane %v3215, 2
    %v3217 = vadd.f32 %v3215, %v3216
    %v3218 = vrot.slane %v3217, 1
    %v3219 = vadd.f32 %v3217, %v3218
    %v3220 = vrot.slane %v3177, 4
    %v3221 = vadd.f32 %v3177, %v3220
    %v3222 = vrot.slane %v3221, 2
    %v3223 = vadd.f32 %v3221, %v3222
    %v3224 = vrot.slane %v3223, 1
    %v3225 = vadd.f32 %v3223, %v3224
    %v3226 = vmul.f32 %v3079, %v3091
    %v3227 = vmul.f32 %v3080, %v3091
    %v3228 = vmul.f32 %v3081, %v3091
    %v3229 = vmul.f32 %v3082, %v3091
    %v3230 = vmul.f32 %v3083, %v3091
    %v3231 = vmul.f32 %v3084, %v3091
    %v3232 = vmul.f32 %v3085, %v3091
    %v3233 = vmul.f32 %v3086, %v3091
    %v3234 = vrot.slane %v3226, 4
    %v3235 = vadd.f32 %v3226, %v3234
    %v3236 = vrot.slane %v3235, 2
    %v3237 = vadd.f32 %v3235, %v3236
    %v3238 = vrot.slane %v3237, 1
    %v3239 = vadd.f32 %v3237, %v3238
    %v3240 = vrot.slane %v3227, 4
    %v3241 = vadd.f32 %v3227, %v3240
    %v3242 = vrot.slane %v3241, 2
    %v3243 = vadd.f32 %v3241, %v3242
    %v3244 = vrot.slane %v3243, 1
    %v3245 = vadd.f32 %v3243, %v3244
    %v3246 = vrot.slane %v3228, 4
    %v3247 = vadd.f32 %v3228, %v3246
    %v3248 = vrot.slane %v3247, 2
    %v3249 = vadd.f32 %v3247, %v3248
    %v3250 = vrot.slane %v3249, 1
    %v3251 = vadd.f32 %v3249, %v3250
    %v3252 = vrot.slane %v3229, 4
    %v3253 = vadd.f32 %v3229, %v3252
    %v3254 = vrot.slane %v3253, 2
    %v3255 = vadd.f32 %v3253, %v3254
    %v3256 = vrot.slane %v3255, 1
    %v3257 = vadd.f32 %v3255, %v3256
    %v3258 = vrot.slane %v3230, 4
    %v3259 = vadd.f32 %v3230, %v3258
    %v3260 = vrot.slane %v3259, 2
    %v3261 = vadd.f32 %v3259, %v3260
    %v3262 = vrot.slane %v3261, 1
    %v3263 = vadd.f32 %v3261, %v3262
    %v3264 = vrot.slane %v3231, 4
    %v3265 = vadd.f32 %v3231, %v3264
    %v3266 = vrot.slane %v3265, 2
    %v3267 = vadd.f32 %v3265, %v3266
    %v3268 = vrot.slane %v3267, 1
    %v3269 = vadd.f32 %v3267, %v3268
    %v3270 = vrot.slane %v3232, 4
    %v3271 = vadd.f32 %v3232, %v3270
    %v3272 = vrot.slane %v3271, 2
    %v3273 = vadd.f32 %v3271, %v3272
    %v3274 = vrot.slane %v3273, 1
    %v3275 = vadd.f32 %v3273, %v3274
    %v3276 = vrot.slane %v3233, 4
    %v3277 = vadd.f32 %v3233, %v3276
    %v3278 = vrot.slane %v3277, 2
    %v3279 = vadd.f32 %v3277, %v3278
    %v3280 = vrot.slane %v3279, 1
    %v3281 = vadd.f32 %v3279, %v3280
    %v3282 = vmul.f32 %v3092, %v3167
    %v3283 = vrot.slane %v3282, 4
    %v3284 = vadd.f32 %v3282, %v3283
    %v3285 = vrot.slane %v3284, 2
    %v3286 = vadd.f32 %v3284, %v3285
    %v3287 = vrot.slane %v3286, 1
    %v3288 = vadd.f32 %v3286, %v3287
    %v3289 = vmul.f32 %v3092, %v3091
    %v3290 = vrot.slane %v3289, 4
    %v3291 = vadd.f32 %v3289, %v3290
    %v3292 = vrot.slane %v3291, 2
    %v3293 = vadd.f32 %v3291, %v3292
    %v3294 = vrot.slane %v3293, 1
    %v3295 = vadd.f32 %v3293, %v3294
    %v3304 = vsel %vm293, %v3189, %v3183
    %v3305 = vsel %vm295, %v3195, %v3304
    %v3306 = vsel %vm297, %v3201, %v3305
    %v3307 = vsel %vm299, %v3207, %v3306
    %v3308 = vsel %vm301, %v3213, %v3307
    %v3309 = vsel %vm303, %v3219, %v3308
    %v3310 = vsel %vm305, %v3225, %v3309
    %v3312 = vmul.f32 %v3090, %v3310
    %v3313 = vmul.f32 %v3288, %v3094
    %v3314 = vlaneseq
    %v3315 = vshrl.u32 %v3314, 7
    %v3316 = vsub.s32 4, %v3315
    %v3317 = vrot.slane %v3313, %v3316
    %v3318 = vmul.f32 %v3092, %v3317
    %v3319 = vsub.f32 %v3312, %v3318
    %v3328 = vsel %vm293, %v3245, %v3239
    %v3329 = vsel %vm295, %v3251, %v3328
    %v3330 = vsel %vm297, %v3257, %v3329
    %v3331 = vsel %vm299, %v3263, %v3330
    %v3332 = vsel %vm301, %v3269, %v3331
    %v3333 = vsel %vm303, %v3275, %v3332
    %v3334 = vsel %vm305, %v3281, %v3333
    %v3336 = vmul.f32 %v3090, %v3334
    %v3337 = vmul.f32 %v3295, %v3094
    %v3338 = vlaneseq
    %v3339 = vshrl.u32 %v3338, 7
    %v3340 = vsub.s32 4, %v3339
    %v3341 = vrot.slane %v3337, %v3340
    %v3342 = vmul.f32 %v3092, %v3341
    %v3343 = vsub.f32 %v3336, %v3342
    %v3344 = vmul.f32 %v3167, %v3319
    %v3345 = vrot.slane %v3344, 4
    %v3346 = vadd.f32 %v3344, %v3345
    %v3347 = vrot.slane %v3346, 2
    %v3348 = vadd.f32 %v3346, %v3347
    %v3349 = vrot.slane %v3348, 1
    %v3350 = vadd.f32 %v3348, %v3349
    %v3351 = vmul.f32 %v3091, %v3343
    %v3352 = vrot.slane %v3351, 4
    %v3353 = vadd.f32 %v3351, %v3352
    %v3354 = vrot.slane %v3353, 2
    %v3355 = vadd.f32 %v3353, %v3354
    %v3356 = vrot.slane %v3355, 1
    %v3357 = vadd.f32 %v3355, %v3356
    %v3358 = vsub.f32 %v2729, %v3357
    %v3359 = vadd.f32 %v3358, %v3350
    %v3360 = vsub.f32 %v3167, %v3091
    %v3361 = vsub.f32 %v3359, %v2729
    %v3362 = vlaneseq
    %v3363 = vshrl.u32 %v3362, 7
    %v3364 = vsub.s32 4, %v3363
    %v3365 = vrot.slane %v3361, %v3364
    %v3366 = vmul.f32 %v3365, %v3089
    %v3367 = vadd.f32 %v3360, %v3366
    %v3369 = vcombine.high %v3367, %v3367
    %v3371 = vunpack.c.l.s4 1966171168
    %v3372 = vunpack.c.0.s8 %v3371
    %v3373 = vlaneseq
    %v3374 = vshrl.u32 %v3373, 7
    %v3375 = vsub.s32 %v3372, %v3374
    %v3376 = vrot.slane %v3367, %v3375
    %v3378 = vunpack.c.l.s4 1966171168
    %v3379 = vunpack.c.0.s8 %v3378
    %v3380 = vlaneseq
    %v3381 = vshrl.u32 %v3380, 7
    %v3382 = vsub.s32 %v3379, %v3381
    %v3383 = vrot.slane %v3369, %v3382
    %v3384 = vcombine.high %v3376, %v3376
    %v3385 = vcombine.high %v3383, %v3383
    %v3387 = vunpack.c.l.s4 1966171168
    %v3388 = vunpack.c.0.s8 %v3387
    %v3389 = vlaneseq
    %v3390 = vshrl.u32 %v3389, 7
    %v3391 = vsub.s32 %v3388, %v3390
    %v3392 = vrot.slane %v3376, %v3391
    %v3394 = vunpack.c.l.s4 1966171168
    %v3395 = vunpack.c.0.s8 %v3394
    %v3396 = vlaneseq
    %v3397 = vshrl.u32 %v3396, 7
    %v3398 = vsub.s32 %v3395, %v3397
    %v3399 = vrot.slane %v3383, %v3398
    %v3401 = vunpack.c.l.s4 1966171168
    %v3402 = vunpack.c.0.s8 %v3401
    %v3403 = vlaneseq
    %v3404 = vshrl.u32 %v3403, 7
    %v3405 = vsub.s32 %v3402, %v3404
    %v3406 = vrot.slane %v3384, %v3405
    %v3408 = vunpack.c.l.s4 1966171168
    %v3409 = vunpack.c.0.s8 %v3408
    %v3410 = vlaneseq
    %v3411 = vshrl.u32 %v3410, 7
    %v3412 = vsub.s32 %v3409, %v3411
    %v3413 = vrot.slane %v3385, %v3412
    %v3414 = vcombine.high %v3392, %v3392
    %v3415 = vcombine.high %v3399, %v3399
    %v3416 = vcombine.high %v3406, %v3406
    %v3417 = vcombine.high %v3413, %v3413
    %v3418 = vlaneseq
    %v3419 = vshrl.u32 %v3418, 7
    %v3420 = vsub.s32 0, %v3419
    %v3421 = vrot.slane %v3392, %v3420
    %v3422 = vlaneseq
    %v3423 = vshrl.u32 %v3422, 7
    %v3424 = vsub.s32 0, %v3423
    %v3425 = vrot.slane %v3406, %v3424
    %v3426 = vlaneseq
    %v3427 = vshrl.u32 %v3426, 7
    %v3428 = vsub.s32 0, %v3427
    %v3429 = vrot.slane %v3414, %v3428
    %v3430 = vlaneseq
    %v3431 = vshrl.u32 %v3430, 7
    %v3432 = vsub.s32 0, %v3431
    %v3433 = vrot.slane %v3416, %v3432
    %v3434 = vlaneseq
    %v3435 = vshrl.u32 %v3434, 7
    %v3436 = vsub.s32 0, %v3435
    %v3437 = vrot.slane %v3399, %v3436
    %v3438 = vlaneseq
    %v3439 = vshrl.u32 %v3438, 7
    %v3440 = vsub.s32 0, %v3439
    %v3441 = vrot.slane %v3413, %v3440
    %v3442 = vlaneseq
    %v3443 = vshrl.u32 %v3442, 7
    %v3444 = vsub.s32 0, %v3443
    %v3445 = vrot.slane %v3415, %v3444
    %v3446 = vlaneseq
    %v3447 = vshrl.u32 %v3446, 7
    %v3448 = vsub.s32 0, %v3447
    %v3449 = vrot.slane %v3417, %v3448
    %v3458 = vmul.f32 %v3089, %v3421
    %v3459 = vmul.f32 %v3089, %v3425
    %v3460 = vmul.f32 %v3089, %v3429
    %v3461 = vmul.f32 %v3089, %v3433
    %v3462 = vmul.f32 %v3089, %v3437
    %v3463 = vmul.f32 %v3089, %v3441
    %v3464 = vmul.f32 %v3089, %v3445
    %v3465 = vmul.f32 %v3089, %v3449
    %v3466 = vadd.f32 %v2725, %v3458
    %v3467 = vadd.f32 %v2726, %v3459
    %v3468 = vadd.f32 %v2727, %v3460
    %v3469 = vadd.f32 %v2728, %v3461
    %v3470 = vadd.f32 %v2729, %v3462
    %v3471 = vadd.f32 %v2730, %v3463
    %v3472 = vadd.f32 %v2731, %v3464
    %v3473 = vadd.f32 %v2732, %v3465
    %v3474 = vmul.f32 %v75, %v3360
    %v3475 = vmul.f32 %v74, %v3360
    %v3476 = vadd.f32 %v3466, %v3474
    %v3477 = vadd.f32 %v3467, %v3474
    %v3478 = vadd.f32 %v3468, %v3474
    %v3479 = vadd.f32 %v3469, %v3474
    %v3480 = vadd.f32 %v3470, %v3475
    %v3481 = vadd.f32 %v3471, %v3474
    %v3482 = vadd.f32 %v3472, %v3474
    %v3483 = vadd.f32 %v3473, %v3474
    %3484 = vst [vmem:[#allocation8] sm:$0xff] %v3476
    %3485 = vst [vmem:[#allocation8 + $0x8] sm:$0xff] %v3477
    %3486 = vst [vmem:[#allocation8 + $0x10] sm:$0xff] %v3478
    %3487 = vst [vmem:[#allocation8 + $0x18] sm:$0xff] %v3479
    %3488 = vst [vmem:[#allocation8 + $0x20] sm:$0xff] %v3480
    %3489 = vst [vmem:[#allocation8 + $0x28] sm:$0xff] %v3481
    %3490 = vst [vmem:[#allocation8 + $0x30] sm:$0xff] %v3482
    %3491 = vst [vmem:[#allocation8 + $0x38] sm:$0xff] %v3483
    // Predicated region
    $region26: #{tpu_custom_call.1} parent=1 // pred_check
      _
    $region27: #{tpu_custom_call.1} parent=1 // pred_check_branch
      %3493 = sbr.rel (0) target = $region29
    $region28: #{tpu_custom_call.1} parent=1 // pred_region
      %s3495 = ssub.s32 1024, 1024
      %3496 = vsyncadd [#allocation4], %s3495
      %s3497 = sshll.u32 [#allocation8], 4
      %s3498 = int_to_ptr.vmem [resolvable:$true] %s3497
      %3503 = dma.vmem_to_hbm [thread:$0]  %s3498, 1024, %s3, [#allocation4], 128, 128, 8
    $region29: #{tpu_custom_call.1} parent=1 // pred_fallthru
      _
    // Predicated region
    $region30: #{tpu_custom_call.1} parent=1 // pred_check
      _
    $region31: #{tpu_custom_call.1} parent=1 // pred_check_branch
      %3505 = sbr.rel (0) target = $region33
    $region32: #{tpu_custom_call.1} parent=1 // pred_region
      %3506 = dma.done [#allocation4], 1024
    $region33: #{tpu_custom_call.1} parent=1 // pred_fallthru
      _
    %3507 = vsyncpa [#allocation3], 1
    %3508 = vsyncpa [#allocation6], 1
    %3509 = vsyncpa [#allocation4], 1

</llo_original>
